<compile_context>
chip_gen: v7x
topology: tpu7x:2x2x1
jax: 0.10.0
libtpu: 0.0.40
codegen_flags: <defaults>
</compile_context>

<pallas_src>
import math
import jax
import jax.numpy as jnp
from jax.experimental import pallas as pl
from jax.experimental.pallas import tpu as pltpu

# ----------------------------- small hyper-params (consistent with module) --
IMG_SIZE      = 32
PATCH_SIZE    = 8
PATCH_OVERLAP = 0.5
STRIDE        = int(PATCH_SIZE * (1 - PATCH_OVERLAP))          # 4
IN_CH         = 1
EMBED_DIM     = 16
NP_H          = (IMG_SIZE - PATCH_SIZE) // STRIDE + 1          # 7
NUM_PATCH     = NP_H * NP_H                                    # 49
N_INPUT       = NUM_PATCH * EMBED_DIM                          # 784
N_HIDDEN      = 128                                            # == d_model
N_HIDDEN_RNN  = 64
N_STEPS       = 3
BETA          = 0.8
THRESH        = 0.5
R_BETA        = 0.95     # snn.RLeaky beta used in the module
R_THRESH      = 1.0      # snn.RLeaky default threshold
INV_SCALE     = 1.0 / math.sqrt(N_HIDDEN)   # num_heads = 1 -> head_dim = d_model
BATCH         = 2

H = N_HIDDEN
R = N_HIDDEN_RNN
# slab_h (128-row weights, bf16): w2 | w3 | wk|wv | wr | wo
SLAB_H_W = 4 * H + R + 1                      # 577
# slab_r (64-row weights, bf16): wq*scale | wrec
SLAB_R_W = H + R                              # 192
# fused f32 bias row: b1 | b2 | b3 | br | bq*scale | brec | bk|bv | bo
BIAS_W   = 6 * H + 2 * R + 1                  # 897


# ----------------------------- the fused recurrent-SNN + attention kernel ---
def _rsnn_kernel(x_ref, w1_ref, bias_ref, slab_h_hbm, slab_r_hbm,
                 spike_sum_ref, spk_total_ref,
                 wh_ref, wrq_ref, sem):
    f32 = jnp.float32
    bf16 = jnp.bfloat16
    b = x_ref.shape[0]

    # ---- overlap the per-step weight slab DMAs with the hoisted fc1 matmul -
    cp_h = pltpu.make_async_copy(slab_h_hbm, wh_ref, sem.at[0])
    cp_r = pltpu.make_async_copy(slab_r_hbm, wrq_ref, sem.at[1])
    cp_h.start()
    cp_r.start()

    def bias(lo, hi):
        return bias_ref[:, lo:hi]

    def dot(x, w):
        # spikes are exact 0/1 in bf16; accumulation stays f32.
        return jnp.dot(x.astype(bf16), w, preferred_element_type=f32)

    def leaky(mem, cur):
        # snn.Leaky, reset_mechanism="subtract": reset decided from prev mem.
        rst = (mem > THRESH).astype(f32)
        mem_new = BETA * mem + cur - rst * THRESH
        spk = (mem_new > THRESH).astype(f32)
        return spk, mem_new

    # ---- loop-invariant: fc1 of the static input, computed exactly once ----
    cur1 = dot(x_ref[...], w1_ref[...]) + bias(0, H)           # (B, H)

    cp_h.wait()
    cp_r.wait()

    # ---- neuron state / accumulators carried as values through a statically
    #      unrolled loop (stays in vregs, no grid / VMEM round trips) --------
    mem1 = jnp.zeros((b, H), f32)
    mem2 = jnp.zeros((b, H), f32)
    mem3 = jnp.zeros((b, H), f32)
    spk_r = jnp.zeros((b, R), f32)
    mem_r = jnp.zeros((b, R), f32)
    mem_o = jnp.zeros((b, 1), f32)

    spike_sum = jnp.zeros((b, 1), f32)            # sum of Leaky_out spikes
    spk_hid_acc = jnp.zeros((b, H), f32)          # spk1_rec + spk2_rec
    spk_r_acc = jnp.zeros((b, R), f32)            # spk3_rec (RLeaky)
    ones_row = jnp.ones((1, H), f32)

    for _ in range(N_STEPS):                      # static unroll (N_STEPS==3)
        # spk_out = layers[:2](x_flat); layers[:7](x_flat) re-runs the SAME
        # stateful Leaky1, so mem1 advances twice per timestep.
        spk_out, mem1 = leaky(mem1, cur1)
        spk1b, mem1 = leaky(mem1, cur1)
        spk2, mem2 = leaky(mem2, dot(spk1b, wh_ref[:, 0:H]) + bias(H, 2 * H))
        # nn.Dropout(0.2) -> identity (eval semantics)
        spk3, mem3 = leaky(mem3, dot(spk2, wh_ref[:, H:2 * H]) + bias(2 * H, 3 * H))

        # fcR + snn.RLeaky(beta=0.95, all-to-all recurrence, threshold=1.0).
        # Recurrence uses the PREVIOUS spk_r; q_proj (below) uses the NEW one.
        rin = dot(spk_out, wh_ref[:, 4 * H:4 * H + R]) + bias(3 * H, 3 * H + R)
        rec = dot(spk_r, wrq_ref[:, H:H + R]) + bias(4 * H + R, 4 * H + 2 * R)
        rst_r = (mem_r > R_THRESH).astype(f32)
        mem_r = R_BETA * mem_r + rin + rec - rst_r * R_THRESH
        spk_r = (mem_r > R_THRESH).astype(f32)

        # Spiking single-head cross attention (sequence length 1 -> scores are
        # a per-sample rank-1 outer product).  q is pre-scaled by 1/sqrt(d).
        q = dot(spk_r, wrq_ref[:, 0:H]) + bias(3 * H + R, 4 * H + R)       # (B,H)
        kv = dot(spk3, wh_ref[:, 2 * H:4 * H]) + bias(4 * H + 2 * R, 6 * H + 2 * R)
        k = kv[:, 0:H]
        v = kv[:, H:2 * H]

        # algebraic row max: max_j q_i*k_j = max(q_i*k_max, q_i*k_min)
        k_max = jnp.max(k, axis=-1, keepdims=True)              # (B, 1)
        k_min = jnp.min(k, axis=-1, keepdims=True)              # (B, 1)
        m = jnp.maximum(q * k_max, q * k_min)                   # (B, H)
        # key-major exp tensor: e_t[b, j, i] = exp(q_i * k_j - m_i)
        e_t = jnp.exp(q[:, None, :] * k[:, :, None] - m[:, None, :])  # (B,H,H)

        # Softmax numerator/denominator as one tiny MXU matmul per sample:
        # [v_b ; ones] (2,H) @ e_t[b] (H,H) -> rows [num_b ; den_b] lane-major.
        num_rows, den_rows = [], []
        for bi in range(b):
            lhs = jnp.concatenate([v[bi:bi + 1, :], ones_row], axis=0)   # (2,H)
            nd = jnp.dot(lhs, e_t[bi], preferred_element_type=f32)       # (2,H)
            num_rows.append(nd[0:1, :])
            den_rows.append(nd[1:2, :])
        num = jnp.concatenate(num_rows, axis=0)                 # (B, H)
        den = jnp.concatenate(den_rows, axis=0)                 # (B, H)
        # approx reciprocal (EUP slot is free); use approx=False for strict
        # numerical parity checks against a PyTorch reference.
        attn = num * pl.reciprocal(den, approx=True)            # (B, H)
        att_out = (jnp.dot(attn, wh_ref[:, 4 * H + R:4 * H + R + 1].astype(f32),
                           preferred_element_type=f32)
                   + bias(6 * H + 2 * R, 6 * H + 2 * R + 1))    # (B, 1)

        # Leaky_out (init_hidden=True, output=True)
        s_o, mem_o = leaky(mem_o, att_out)

        spike_sum = spike_sum + s_o
        spk_hid_acc = spk_hid_acc + spk_out + spk3
        spk_r_acc = spk_r_acc + spk_r

    spike_sum_ref[...] = spike_sum
    total = jnp.sum(spk_hid_acc) + jnp.sum(spk_r_acc) + jnp.sum(spike_sum)
    spk_total_ref[...] = jnp.zeros((1, 1), f32) + total


def _vmem_spec():
    return pl.BlockSpec(memory_space=pltpu.MemorySpace.VMEM)


def rsnn_recurrent(x_flat, rsnn_params):
    w1, bias_row, slab_h, slab_r = rsnn_params
    b = x_flat.shape[0]
    out_shape = (jax.ShapeDtypeStruct((b, 1), jnp.float32),
                 jax.ShapeDtypeStruct((1, 1), jnp.float32))
    spike_sum, spk_total = pl.pallas_call(
        _rsnn_kernel,
        out_shape=out_shape,
        in_specs=[_vmem_spec(),                        # x_flat
                  _vmem_spec(),                        # w1 (needed first)
                  _vmem_spec(),                        # fused bias row
                  pl.BlockSpec(memory_space=pl.ANY),   # slab_h (manual DMA)
                  pl.BlockSpec(memory_space=pl.ANY)],  # slab_r (manual DMA)
        out_specs=(_vmem_spec(), _vmem_spec()),
        scratch_shapes=[pltpu.VMEM((N_HIDDEN, SLAB_H_W), jnp.bfloat16),
                        pltpu.VMEM((N_HIDDEN_RNN, SLAB_R_W), jnp.bfloat16),
                        pltpu.SemaphoreType.DMA((2,))],
    )(x_flat, w1, bias_row, slab_h, slab_r)
    return spike_sum, spk_total


# ----------------------------- glue: im2col patch extraction ---------------
def extract_patches(data, ps, stride):
    b, c, h, w = data.shape
    nh = (h - ps) // stride + 1
    nw = (w - ps) // stride + 1
    rows = (jnp.arange(nh) * stride)[:, None] + jnp.arange(ps)[None, :]
    cols = (jnp.arange(nw) * stride)[:, None] + jnp.arange(ps)[None, :]
    x = data[:, :, rows, :]                    # (B, C, nh, ps, W)
    x = x[:, :, :, :, cols]                    # (B, C, nh, ps, nw, ps)
    x = jnp.transpose(x, (0, 2, 4, 1, 3, 5))   # (B, nh, nw, C, ps, ps)
    return x.reshape(b, nh * nw, c * ps * ps)


# ----------------------------- parameter init + packing (deterministic) ----
def _linear_params(key, fan_in, fan_out):
    k1, k2 = jax.random.split(key)
    bound = 1.0 / math.sqrt(fan_in)
    w = jax.random.uniform(k1, (fan_in, fan_out), jnp.float32, -bound, bound)
    b = jax.random.uniform(k2, (1, fan_out), jnp.float32, -bound, bound)
    return w, b


def init_params(key):
    keys = jax.random.split(key, 10)
    kp = IN_CH * PATCH_SIZE * PATCH_SIZE
    w_pe, b_pe = _linear_params(keys[0], kp, EMBED_DIM)         # Conv2d (im2col)
    pos = jnp.zeros((NUM_PATCH, EMBED_DIM), jnp.float32)        # nn.Parameter zeros
    w1, b1 = _linear_params(keys[1], N_INPUT, N_HIDDEN)         # layers[0]
    w2, b2 = _linear_params(keys[2], N_HIDDEN, N_HIDDEN)        # layers[2]
    w3, b3 = _linear_params(keys[3], N_HIDDEN, N_HIDDEN)        # layers[5]
    wr, br = _linear_params(keys[4], N_HIDDEN, N_HIDDEN_RNN)    # fcR
    wrec, brec = _linear_params(keys[5], N_HIDDEN_RNN, N_HIDDEN_RNN)  # RLeaky V
    wq, bq = _linear_params(keys[6], N_HIDDEN_RNN, N_HIDDEN)    # q_proj
    wk, bk = _linear_params(keys[7], N_HIDDEN, N_HIDDEN)        # k_proj
    wv, bv = _linear_params(keys[8], N_HIDDEN, N_HIDDEN)        # v_proj
    wo, bo = _linear_params(keys[9], N_HIDDEN, 1)               # output_proj

    bf16 = jnp.bfloat16
    # Host-side slab packing (done once): fewer / lane-dense DMA inputs,
    # k|v fused, attention scale folded into the q projection.
    slab_h = jnp.concatenate([w2, w3, wk, wv, wr, wo], axis=1).astype(bf16)
    slab_r = jnp.concatenate([wq * INV_SCALE, wrec], axis=1).astype(bf16)
    bias_row = jnp.concatenate(
        [b1, b2, b3, br, bq * INV_SCALE, brec, bk, bv, bo],
        axis=1).astype(jnp.float32)
    assert slab_h.shape == (N_HIDDEN, SLAB_H_W)
    assert slab_r.shape == (N_HIDDEN_RNN, SLAB_R_W)
    assert bias_row.shape == (1, BIAS_W)
    return {
        "patch": (w_pe, b_pe, pos),
        "rsnn": (w1.astype(bf16), bias_row, slab_h, slab_r),
    }


# ----------------------------- full forward ---------------------------------
def rsnn_vit2_forward(data, params):
    b = data.shape[0]
    w_pe, b_pe, pos = params["patch"]
    patches = extract_patches(data, PATCH_SIZE, STRIDE)          # (B, P, K)
    # Tiny patch-embed matmul in plain jnp: XLA fuses it with the im2col
    # gather; avoids a narrow (16-lane) extra Pallas call and HBM round trip.
    x = jnp.einsum("bpk,ke->bpe", patches, w_pe) + b_pe[None] + pos[None]
    x_flat = x.reshape(b, NUM_PATCH * EMBED_DIM)                 # (B, n_input)

    spike_sum, spk_total = rsnn_recurrent(x_flat, params["rsnn"])
    spike_train = jnp.squeeze(spike_sum)       # matches torch .squeeze()
    spk_total = spk_total[0, 0]                # scalar (torch .item())
    return spike_train, spk_total


# TODO(synk): nn.Dropout layers are identity (eval semantics); the PyTorch
# module's print()/.item() host side effects and the unused ln_attn_2 /
# memtot_aggregated tensors are not reproduced.  For large batches add a
# "parallel" batch grid axis (v7x dual-TC); at B=2 a single grid point is
# strictly cheaper (one weight DMA, no duplicated fixed overhead).

if __name__ == "__main__":
    key = jax.random.PRNGKey(0)
    k_data, k_params = jax.random.split(key)
    data = jax.random.normal(k_data, (BATCH, IN_CH, IMG_SIZE, IMG_SIZE),
                             jnp.float32)
    params = init_params(k_params)

    fwd = jax.jit(rsnn_vit2_forward)
    spike_train, spk_total = fwd(data, params)
    jax.block_until_ready((spike_train, spk_total))
    assert spike_train.shape == (BATCH,)
    assert spk_total.shape == ()
    print("KERNEL_OK")
</pallas_src>

<mosaic_0001>
module attributes {stable_mosaic.version = 11 : i64} {
  func.func @_rsnn_kernel(%arg0: memref<2x784xf32, #tpu.memory_space<vmem>>, %arg1: memref<784x128xbf16, #tpu.memory_space<vmem>>, %arg2: memref<1x897xf32, #tpu.memory_space<vmem>>, %arg3: memref<128x577xbf16, #tpu.memory_space<any>>, %arg4: memref<64x192xbf16, #tpu.memory_space<any>>, %arg5: memref<2x1xf32, #tpu.memory_space<vmem>>, %arg6: memref<1x1xf32, #tpu.memory_space<vmem>>, %arg7: memref<128x577xbf16, #tpu.memory_space<vmem>>, %arg8: memref<64x192xbf16, #tpu.memory_space<vmem>>, %arg9: memref<2x!tpu.dma_semaphore, #tpu.memory_space<semaphore_mem>>) attributes {dimension_semantics = [], scalar_prefetch = 0 : i64, scratch_operands = 3 : i64, tpu.core_type = #tpu.core_type<tc>} {
    %c0_i32 = arith.constant 0 : i32
    %0 = tpu.memref_slice %arg9[%c0_i32] : memref<2x!tpu.dma_semaphore, #tpu.memory_space<semaphore_mem>> -> memref<1x!tpu.dma_semaphore, #tpu.memory_space<semaphore_mem>>
    %1 = tpu.memref_squeeze %0 : memref<1x!tpu.dma_semaphore, #tpu.memory_space<semaphore_mem>> -> memref<!tpu.dma_semaphore, #tpu.memory_space<semaphore_mem>>
    tpu.enqueue_dma source(%arg3 : memref<128x577xbf16, #tpu.memory_space<any>>) target(%arg7 : memref<128x577xbf16, #tpu.memory_space<vmem>>) target_semaphore(%1 : memref<!tpu.dma_semaphore, #tpu.memory_space<semaphore_mem>>)
    %c1_i32 = arith.constant 1 : i32
    %2 = tpu.memref_slice %arg9[%c1_i32] : memref<2x!tpu.dma_semaphore, #tpu.memory_space<semaphore_mem>> -> memref<1x!tpu.dma_semaphore, #tpu.memory_space<semaphore_mem>>
    %3 = tpu.memref_squeeze %2 : memref<1x!tpu.dma_semaphore, #tpu.memory_space<semaphore_mem>> -> memref<!tpu.dma_semaphore, #tpu.memory_space<semaphore_mem>>
    tpu.enqueue_dma source(%arg4 : memref<64x192xbf16, #tpu.memory_space<any>>) target(%arg8 : memref<64x192xbf16, #tpu.memory_space<vmem>>) target_semaphore(%3 : memref<!tpu.dma_semaphore, #tpu.memory_space<semaphore_mem>>)
    %c0 = arith.constant 0 : index
    %c0_0 = arith.constant 0 : index
    %4 = vector.load %arg0[%c0, %c0_0] : memref<2x784xf32, #tpu.memory_space<vmem>>, vector<2x784xf32>
    %c0_1 = arith.constant 0 : index
    %c0_2 = arith.constant 0 : index
    %5 = vector.load %arg1[%c0_1, %c0_2] : memref<784x128xbf16, #tpu.memory_space<vmem>>, vector<784x128xbf16>
    %6 = arith.truncf %4 : vector<2x784xf32> to vector<2x784xbf16>
    %cst = arith.constant dense<0.000000e+00> : vector<2x128xf32>
    %7 = tpu.matmul %6, %5, %cst {dimension_numbers = #tpu.dot_dimension_numbers<[1], [0], [0], [1], [0, 0, 1, 1], [], []>} : vector<2x784xbf16>, vector<784x128xbf16>, vector<2x128xf32> -> vector<2x128xf32>
    %c0_3 = arith.constant 0 : index
    %c0_4 = arith.constant 0 : index
    %8 = vector.load %arg2[%c0_3, %c0_4] : memref<1x897xf32, #tpu.memory_space<vmem>>, vector<1x128xf32>
    %9 = vector.broadcast %8 : vector<1x128xf32> to vector<2x128xf32>
    %10 = arith.addf %7, %9 : vector<2x128xf32>
    %c0_i32_5 = arith.constant 0 : i32
    %11 = tpu.memref_slice %arg9[%c0_i32_5] : memref<2x!tpu.dma_semaphore, #tpu.memory_space<semaphore_mem>> -> memref<1x!tpu.dma_semaphore, #tpu.memory_space<semaphore_mem>>
    %12 = tpu.memref_squeeze %11 : memref<1x!tpu.dma_semaphore, #tpu.memory_space<semaphore_mem>> -> memref<!tpu.dma_semaphore, #tpu.memory_space<semaphore_mem>>
    tpu.wait_dma2 semaphore(%12 : memref<!tpu.dma_semaphore, #tpu.memory_space<semaphore_mem>>) src(%arg3 : memref<128x577xbf16, #tpu.memory_space<any>>) dst(%arg7 : memref<128x577xbf16, #tpu.memory_space<vmem>>)
    %c1_i32_6 = arith.constant 1 : i32
    %13 = tpu.memref_slice %arg9[%c1_i32_6] : memref<2x!tpu.dma_semaphore, #tpu.memory_space<semaphore_mem>> -> memref<1x!tpu.dma_semaphore, #tpu.memory_space<semaphore_mem>>
    %14 = tpu.memref_squeeze %13 : memref<1x!tpu.dma_semaphore, #tpu.memory_space<semaphore_mem>> -> memref<!tpu.dma_semaphore, #tpu.memory_space<semaphore_mem>>
    tpu.wait_dma2 semaphore(%14 : memref<!tpu.dma_semaphore, #tpu.memory_space<semaphore_mem>>) src(%arg4 : memref<64x192xbf16, #tpu.memory_space<any>>) dst(%arg8 : memref<64x192xbf16, #tpu.memory_space<vmem>>)
    %cst_7 = arith.constant 0.000000e+00 : f32
    %15 = vector.broadcast %cst_7 : f32 to vector<2x128xf32>
    %cst_8 = arith.constant 0.000000e+00 : f32
    %16 = vector.broadcast %cst_8 : f32 to vector<2x128xf32>
    %cst_9 = arith.constant 0.000000e+00 : f32
    %17 = vector.broadcast %cst_9 : f32 to vector<2x128xf32>
    %cst_10 = arith.constant 0.000000e+00 : f32
    %18 = vector.broadcast %cst_10 : f32 to vector<2x64xf32>
    %cst_11 = arith.constant 0.000000e+00 : f32
    %19 = vector.broadcast %cst_11 : f32 to vector<2x64xf32>
    %cst_12 = arith.constant 0.000000e+00 : f32
    %20 = vector.broadcast %cst_12 : f32 to vector<2x1xf32>
    %cst_13 = arith.constant 0.000000e+00 : f32
    %21 = vector.broadcast %cst_13 : f32 to vector<2x1xf32>
    %cst_14 = arith.constant 0.000000e+00 : f32
    %22 = vector.broadcast %cst_14 : f32 to vector<2x128xf32>
    %cst_15 = arith.constant 0.000000e+00 : f32
    %23 = vector.broadcast %cst_15 : f32 to vector<2x64xf32>
    %cst_16 = arith.constant 1.000000e+00 : f32
    %24 = vector.broadcast %cst_16 : f32 to vector<1x128xf32>
    %cst_17 = arith.constant 5.000000e-01 : f32
    %25 = vector.broadcast %cst_17 : f32 to vector<2x128xf32>
    %26 = arith.cmpf ogt, %15, %25 : vector<2x128xf32>
    %27 = arith.extui %26 : vector<2x128xi1> to vector<2x128xi32>
    %28 = arith.sitofp %27 : vector<2x128xi32> to vector<2x128xf32>
    %cst_18 = arith.constant 8.000000e-01 : f32
    %29 = vector.broadcast %cst_18 : f32 to vector<2x128xf32>
    %30 = arith.mulf %29, %15 : vector<2x128xf32>
    %31 = arith.addf %30, %10 : vector<2x128xf32>
    %cst_19 = arith.constant 5.000000e-01 : f32
    %32 = vector.broadcast %cst_19 : f32 to vector<2x128xf32>
    %33 = arith.mulf %28, %32 : vector<2x128xf32>
    %34 = arith.subf %31, %33 : vector<2x128xf32>
    %cst_20 = arith.constant 5.000000e-01 : f32
    %35 = vector.broadcast %cst_20 : f32 to vector<2x128xf32>
    %36 = arith.cmpf ogt, %34, %35 : vector<2x128xf32>
    %37 = arith.extui %36 : vector<2x128xi1> to vector<2x128xi32>
    %38 = arith.sitofp %37 : vector<2x128xi32> to vector<2x128xf32>
    %cst_21 = arith.constant 5.000000e-01 : f32
    %39 = vector.broadcast %cst_21 : f32 to vector<2x128xf32>
    %40 = arith.cmpf ogt, %34, %39 : vector<2x128xf32>
    %41 = arith.extui %40 : vector<2x128xi1> to vector<2x128xi32>
    %42 = arith.sitofp %41 : vector<2x128xi32> to vector<2x128xf32>
    %cst_22 = arith.constant 8.000000e-01 : f32
    %43 = vector.broadcast %cst_22 : f32 to vector<2x128xf32>
    %44 = arith.mulf %43, %34 : vector<2x128xf32>
    %45 = arith.addf %44, %10 : vector<2x128xf32>
    %cst_23 = arith.constant 5.000000e-01 : f32
    %46 = vector.broadcast %cst_23 : f32 to vector<2x128xf32>
    %47 = arith.mulf %42, %46 : vector<2x128xf32>
    %48 = arith.subf %45, %47 : vector<2x128xf32>
    %cst_24 = arith.constant 5.000000e-01 : f32
    %49 = vector.broadcast %cst_24 : f32 to vector<2x128xf32>
    %50 = arith.cmpf ogt, %48, %49 : vector<2x128xf32>
    %51 = arith.extui %50 : vector<2x128xi1> to vector<2x128xi32>
    %52 = arith.sitofp %51 : vector<2x128xi32> to vector<2x128xf32>
    %c0_25 = arith.constant 0 : index
    %c0_26 = arith.constant 0 : index
    %53 = vector.load %arg7[%c0_25, %c0_26] : memref<128x577xbf16, #tpu.memory_space<vmem>>, vector<128x128xbf16>
    %54 = arith.truncf %52 : vector<2x128xf32> to vector<2x128xbf16>
    %cst_27 = arith.constant dense<0.000000e+00> : vector<2x128xf32>
    %55 = tpu.matmul %54, %53, %cst_27 {dimension_numbers = #tpu.dot_dimension_numbers<[1], [0], [0], [1], [0, 0, 1, 1], [], []>} : vector<2x128xbf16>, vector<128x128xbf16>, vector<2x128xf32> -> vector<2x128xf32>
    %c0_28 = arith.constant 0 : index
    %c128 = arith.constant 128 : index
    %56 = vector.load %arg2[%c0_28, %c128] : memref<1x897xf32, #tpu.memory_space<vmem>>, vector<1x128xf32>
    %57 = vector.broadcast %56 : vector<1x128xf32> to vector<2x128xf32>
    %58 = arith.addf %55, %57 : vector<2x128xf32>
    %cst_29 = arith.constant 5.000000e-01 : f32
    %59 = vector.broadcast %cst_29 : f32 to vector<2x128xf32>
    %60 = arith.cmpf ogt, %16, %59 : vector<2x128xf32>
    %61 = arith.extui %60 : vector<2x128xi1> to vector<2x128xi32>
    %62 = arith.sitofp %61 : vector<2x128xi32> to vector<2x128xf32>
    %cst_30 = arith.constant 8.000000e-01 : f32
    %63 = vector.broadcast %cst_30 : f32 to vector<2x128xf32>
    %64 = arith.mulf %63, %16 : vector<2x128xf32>
    %65 = arith.addf %64, %58 : vector<2x128xf32>
    %cst_31 = arith.constant 5.000000e-01 : f32
    %66 = vector.broadcast %cst_31 : f32 to vector<2x128xf32>
    %67 = arith.mulf %62, %66 : vector<2x128xf32>
    %68 = arith.subf %65, %67 : vector<2x128xf32>
    %cst_32 = arith.constant 5.000000e-01 : f32
    %69 = vector.broadcast %cst_32 : f32 to vector<2x128xf32>
    %70 = arith.cmpf ogt, %68, %69 : vector<2x128xf32>
    %71 = arith.extui %70 : vector<2x128xi1> to vector<2x128xi32>
    %72 = arith.sitofp %71 : vector<2x128xi32> to vector<2x128xf32>
    %c0_33 = arith.constant 0 : index
    %c128_34 = arith.constant 128 : index
    %73 = vector.load %arg7[%c0_33, %c128_34] : memref<128x577xbf16, #tpu.memory_space<vmem>>, vector<128x128xbf16>
    %74 = arith.truncf %72 : vector<2x128xf32> to vector<2x128xbf16>
    %cst_35 = arith.constant dense<0.000000e+00> : vector<2x128xf32>
    %75 = tpu.matmul %74, %73, %cst_35 {dimension_numbers = #tpu.dot_dimension_numbers<[1], [0], [0], [1], [0, 0, 1, 1], [], []>} : vector<2x128xbf16>, vector<128x128xbf16>, vector<2x128xf32> -> vector<2x128xf32>
    %c0_36 = arith.constant 0 : index
    %c256 = arith.constant 256 : index
    %76 = vector.load %arg2[%c0_36, %c256] : memref<1x897xf32, #tpu.memory_space<vmem>>, vector<1x128xf32>
    %77 = vector.broadcast %76 : vector<1x128xf32> to vector<2x128xf32>
    %78 = arith.addf %75, %77 : vector<2x128xf32>
    %cst_37 = arith.constant 5.000000e-01 : f32
    %79 = vector.broadcast %cst_37 : f32 to vector<2x128xf32>
    %80 = arith.cmpf ogt, %17, %79 : vector<2x128xf32>
    %81 = arith.extui %80 : vector<2x128xi1> to vector<2x128xi32>
    %82 = arith.sitofp %81 : vector<2x128xi32> to vector<2x128xf32>
    %cst_38 = arith.constant 8.000000e-01 : f32
    %83 = vector.broadcast %cst_38 : f32 to vector<2x128xf32>
    %84 = arith.mulf %83, %17 : vector<2x128xf32>
    %85 = arith.addf %84, %78 : vector<2x128xf32>
    %cst_39 = arith.constant 5.000000e-01 : f32
    %86 = vector.broadcast %cst_39 : f32 to vector<2x128xf32>
    %87 = arith.mulf %82, %86 : vector<2x128xf32>
    %88 = arith.subf %85, %87 : vector<2x128xf32>
    %cst_40 = arith.constant 5.000000e-01 : f32
    %89 = vector.broadcast %cst_40 : f32 to vector<2x128xf32>
    %90 = arith.cmpf ogt, %88, %89 : vector<2x128xf32>
    %91 = arith.extui %90 : vector<2x128xi1> to vector<2x128xi32>
    %92 = arith.sitofp %91 : vector<2x128xi32> to vector<2x128xf32>
    %c0_41 = arith.constant 0 : index
    %c512 = arith.constant 512 : index
    %93 = vector.load %arg7[%c0_41, %c512] : memref<128x577xbf16, #tpu.memory_space<vmem>>, vector<128x64xbf16>
    %94 = arith.truncf %38 : vector<2x128xf32> to vector<2x128xbf16>
    %cst_42 = arith.constant dense<0.000000e+00> : vector<2x64xf32>
    %95 = tpu.matmul %94, %93, %cst_42 {dimension_numbers = #tpu.dot_dimension_numbers<[1], [0], [0], [1], [0, 0, 1, 1], [], []>} : vector<2x128xbf16>, vector<128x64xbf16>, vector<2x64xf32> -> vector<2x64xf32>
    %c0_43 = arith.constant 0 : index
    %c384 = arith.constant 384 : index
    %96 = vector.load %arg2[%c0_43, %c384] : memref<1x897xf32, #tpu.memory_space<vmem>>, vector<1x64xf32>
    %97 = vector.broadcast %96 : vector<1x64xf32> to vector<2x64xf32>
    %98 = arith.addf %95, %97 : vector<2x64xf32>
    %c0_44 = arith.constant 0 : index
    %c128_45 = arith.constant 128 : index
    %99 = vector.load %arg8[%c0_44, %c128_45] : memref<64x192xbf16, #tpu.memory_space<vmem>>, vector<64x64xbf16>
    %100 = arith.truncf %18 : vector<2x64xf32> to vector<2x64xbf16>
    %cst_46 = arith.constant dense<0.000000e+00> : vector<2x64xf32>
    %101 = tpu.matmul %100, %99, %cst_46 {dimension_numbers = #tpu.dot_dimension_numbers<[1], [0], [0], [1], [0, 0, 1, 1], [], []>} : vector<2x64xbf16>, vector<64x64xbf16>, vector<2x64xf32> -> vector<2x64xf32>
    %c0_47 = arith.constant 0 : index
    %c576 = arith.constant 576 : index
    %102 = vector.load %arg2[%c0_47, %c576] : memref<1x897xf32, #tpu.memory_space<vmem>>, vector<1x64xf32>
    %103 = vector.broadcast %102 : vector<1x64xf32> to vector<2x64xf32>
    %104 = arith.addf %101, %103 : vector<2x64xf32>
    %cst_48 = arith.constant 1.000000e+00 : f32
    %105 = vector.broadcast %cst_48 : f32 to vector<2x64xf32>
    %106 = arith.cmpf ogt, %19, %105 : vector<2x64xf32>
    %107 = arith.extui %106 : vector<2x64xi1> to vector<2x64xi32>
    %108 = arith.sitofp %107 : vector<2x64xi32> to vector<2x64xf32>
    %cst_49 = arith.constant 0.949999988 : f32
    %109 = vector.broadcast %cst_49 : f32 to vector<2x64xf32>
    %110 = arith.mulf %109, %19 : vector<2x64xf32>
    %111 = arith.addf %110, %98 : vector<2x64xf32>
    %112 = arith.addf %111, %104 : vector<2x64xf32>
    %cst_50 = arith.constant 1.000000e+00 : f32
    %113 = vector.broadcast %cst_50 : f32 to vector<2x64xf32>
    %114 = arith.mulf %108, %113 : vector<2x64xf32>
    %115 = arith.subf %112, %114 : vector<2x64xf32>
    %cst_51 = arith.constant 1.000000e+00 : f32
    %116 = vector.broadcast %cst_51 : f32 to vector<2x64xf32>
    %117 = arith.cmpf ogt, %115, %116 : vector<2x64xf32>
    %118 = arith.extui %117 : vector<2x64xi1> to vector<2x64xi32>
    %119 = arith.sitofp %118 : vector<2x64xi32> to vector<2x64xf32>
    %c0_52 = arith.constant 0 : index
    %c0_53 = arith.constant 0 : index
    %120 = vector.load %arg8[%c0_52, %c0_53] : memref<64x192xbf16, #tpu.memory_space<vmem>>, vector<64x128xbf16>
    %121 = arith.truncf %119 : vector<2x64xf32> to vector<2x64xbf16>
    %cst_54 = arith.constant dense<0.000000e+00> : vector<2x128xf32>
    %122 = tpu.matmul %121, %120, %cst_54 {dimension_numbers = #tpu.dot_dimension_numbers<[1], [0], [0], [1], [0, 0, 1, 1], [], []>} : vector<2x64xbf16>, vector<64x128xbf16>, vector<2x128xf32> -> vector<2x128xf32>
    %c0_55 = arith.constant 0 : index
    %c448 = arith.constant 448 : index
    %123 = vector.load %arg2[%c0_55, %c448] : memref<1x897xf32, #tpu.memory_space<vmem>>, vector<1x128xf32>
    %124 = vector.broadcast %123 : vector<1x128xf32> to vector<2x128xf32>
    %125 = arith.addf %122, %124 : vector<2x128xf32>
    %c0_56 = arith.constant 0 : index
    %c256_57 = arith.constant 256 : index
    %126 = vector.load %arg7[%c0_56, %c256_57] : memref<128x577xbf16, #tpu.memory_space<vmem>>, vector<128x256xbf16>
    %127 = arith.truncf %92 : vector<2x128xf32> to vector<2x128xbf16>
    %cst_58 = arith.constant dense<0.000000e+00> : vector<2x256xf32>
    %128 = tpu.matmul %127, %126, %cst_58 {dimension_numbers = #tpu.dot_dimension_numbers<[1], [0], [0], [1], [0, 0, 1, 1], [], []>} : vector<2x128xbf16>, vector<128x256xbf16>, vector<2x256xf32> -> vector<2x256xf32>
    %c0_59 = arith.constant 0 : index
    %c640 = arith.constant 640 : index
    %129 = vector.load %arg2[%c0_59, %c640] : memref<1x897xf32, #tpu.memory_space<vmem>>, vector<1x256xf32>
    %130 = vector.broadcast %129 : vector<1x256xf32> to vector<2x256xf32>
    %131 = arith.addf %128, %130 : vector<2x256xf32>
    %132 = vector.extract_strided_slice %131 {offsets = [0, 0], sizes = [2, 128], strides = [1, 1]} : vector<2x256xf32> to vector<2x128xf32>
    %133 = vector.extract_strided_slice %131 {offsets = [0, 128], sizes = [2, 128], strides = [1, 1]} : vector<2x256xf32> to vector<2x128xf32>
    %cst_60 = arith.constant dense<0xFF800000> : vector<2xf32>
    %134 = vector.multi_reduction <maximumf>, %132, %cst_60 [1] : vector<2x128xf32> to vector<2xf32>
    %135 = vector.shape_cast %134 : vector<2xf32> to vector<2x1xf32>
    %cst_61 = arith.constant dense<0x7F800000> : vector<2xf32>
    %136 = vector.multi_reduction <minimumf>, %132, %cst_61 [1] : vector<2x128xf32> to vector<2xf32>
    %137 = vector.shape_cast %136 : vector<2xf32> to vector<2x1xf32>
    %138 = vector.broadcast %135 : vector<2x1xf32> to vector<2x128xf32>
    %139 = arith.mulf %125, %138 : vector<2x128xf32>
    %140 = vector.broadcast %137 : vector<2x1xf32> to vector<2x128xf32>
    %141 = arith.mulf %125, %140 : vector<2x128xf32>
    %142 = arith.maximumf %139, %141 : vector<2x128xf32>
    %143 = vector.shape_cast %125 : vector<2x128xf32> to vector<2x1x128xf32>
    %144 = vector.shape_cast %132 : vector<2x128xf32> to vector<2x128x1xf32>
    %145 = vector.broadcast %143 : vector<2x1x128xf32> to vector<2x128x128xf32>
    %146 = vector.broadcast %144 : vector<2x128x1xf32> to vector<2x128x128xf32>
    %147 = arith.mulf %145, %146 : vector<2x128x128xf32>
    %148 = vector.shape_cast %142 : vector<2x128xf32> to vector<2x1x128xf32>
    %149 = vector.broadcast %148 : vector<2x1x128xf32> to vector<2x128x128xf32>
    %150 = arith.subf %147, %149 : vector<2x128x128xf32>
    %151 = math.exp %150 : vector<2x128x128xf32>
    %152 = vector.extract_strided_slice %133 {offsets = [0, 0], sizes = [1, 128], strides = [1, 1]} : vector<2x128xf32> to vector<1x128xf32>
    %153 = tpu.concatenate %152, %24 in 0 : vector<1x128xf32>, vector<1x128xf32> -> vector<2x128xf32>
    %154 = vector.extract_strided_slice %151 {offsets = [0, 0, 0], sizes = [1, 128, 128], strides = [1, 1, 1]} : vector<2x128x128xf32> to vector<1x128x128xf32>
    %155 = vector.shape_cast %154 : vector<1x128x128xf32> to vector<128x128xf32>
    %cst_62 = arith.constant dense<0.000000e+00> : vector<2x128xf32>
    %156 = tpu.matmul %153, %155, %cst_62 {dimension_numbers = #tpu.dot_dimension_numbers<[1], [0], [0], [1], [0, 0, 1, 1], [], []>} : vector<2x128xf32>, vector<128x128xf32>, vector<2x128xf32> -> vector<2x128xf32>
    %157 = vector.extract_strided_slice %156 {offsets = [0, 0], sizes = [1, 128], strides = [1, 1]} : vector<2x128xf32> to vector<1x128xf32>
    %158 = vector.extract_strided_slice %156 {offsets = [1, 0], sizes = [1, 128], strides = [1, 1]} : vector<2x128xf32> to vector<1x128xf32>
    %159 = vector.extract_strided_slice %133 {offsets = [1, 0], sizes = [1, 128], strides = [1, 1]} : vector<2x128xf32> to vector<1x128xf32>
    %160 = tpu.concatenate %159, %24 in 0 : vector<1x128xf32>, vector<1x128xf32> -> vector<2x128xf32>
    %161 = vector.extract_strided_slice %151 {offsets = [1, 0, 0], sizes = [1, 128, 128], strides = [1, 1, 1]} : vector<2x128x128xf32> to vector<1x128x128xf32>
    %162 = vector.shape_cast %161 : vector<1x128x128xf32> to vector<128x128xf32>
    %cst_63 = arith.constant dense<0.000000e+00> : vector<2x128xf32>
    %163 = tpu.matmul %160, %162, %cst_63 {dimension_numbers = #tpu.dot_dimension_numbers<[1], [0], [0], [1], [0, 0, 1, 1], [], []>} : vector<2x128xf32>, vector<128x128xf32>, vector<2x128xf32> -> vector<2x128xf32>
    %164 = vector.extract_strided_slice %163 {offsets = [0, 0], sizes = [1, 128], strides = [1, 1]} : vector<2x128xf32> to vector<1x128xf32>
    %165 = vector.extract_strided_slice %163 {offsets = [1, 0], sizes = [1, 128], strides = [1, 1]} : vector<2x128xf32> to vector<1x128xf32>
    %166 = tpu.concatenate %157, %164 in 0 : vector<1x128xf32>, vector<1x128xf32> -> vector<2x128xf32>
    %167 = tpu.concatenate %158, %165 in 0 : vector<1x128xf32>, vector<1x128xf32> -> vector<2x128xf32>
    %168 = tpu.reciprocal %167 {approx = true} : vector<2x128xf32> -> vector<2x128xf32>
    %169 = arith.mulf %166, %168 : vector<2x128xf32>
    %c0_64 = arith.constant 0 : index
    %c576_65 = arith.constant 576 : index
    %170 = vector.load %arg7[%c0_64, %c576_65] : memref<128x577xbf16, #tpu.memory_space<vmem>>, vector<128x1xbf16>
    %171 = arith.extf %170 : vector<128x1xbf16> to vector<128x1xf32>
    %cst_66 = arith.constant dense<0.000000e+00> : vector<2x1xf32>
    %172 = tpu.matmul %169, %171, %cst_66 {dimension_numbers = #tpu.dot_dimension_numbers<[1], [0], [0], [1], [0, 0, 1, 1], [], []>} : vector<2x128xf32>, vector<128x1xf32>, vector<2x1xf32> -> vector<2x1xf32>
    %c0_67 = arith.constant 0 : index
    %c896 = arith.constant 896 : index
    %173 = vector.load %arg2[%c0_67, %c896] : memref<1x897xf32, #tpu.memory_space<vmem>>, vector<1x1xf32>
    %174 = vector.broadcast %173 : vector<1x1xf32> to vector<2x1xf32>
    %175 = arith.addf %172, %174 : vector<2x1xf32>
    %cst_68 = arith.constant 5.000000e-01 : f32
    %176 = vector.broadcast %cst_68 : f32 to vector<2x1xf32>
    %177 = arith.cmpf ogt, %20, %176 : vector<2x1xf32>
    %178 = arith.extui %177 : vector<2x1xi1> to vector<2x1xi32>
    %179 = arith.sitofp %178 : vector<2x1xi32> to vector<2x1xf32>
    %cst_69 = arith.constant 8.000000e-01 : f32
    %180 = vector.broadcast %cst_69 : f32 to vector<2x1xf32>
    %181 = arith.mulf %180, %20 : vector<2x1xf32>
    %182 = arith.addf %181, %175 : vector<2x1xf32>
    %cst_70 = arith.constant 5.000000e-01 : f32
    %183 = vector.broadcast %cst_70 : f32 to vector<2x1xf32>
    %184 = arith.mulf %179, %183 : vector<2x1xf32>
    %185 = arith.subf %182, %184 : vector<2x1xf32>
    %cst_71 = arith.constant 5.000000e-01 : f32
    %186 = vector.broadcast %cst_71 : f32 to vector<2x1xf32>
    %187 = arith.cmpf ogt, %185, %186 : vector<2x1xf32>
    %188 = arith.extui %187 : vector<2x1xi1> to vector<2x1xi32>
    %189 = arith.sitofp %188 : vector<2x1xi32> to vector<2x1xf32>
    %190 = arith.addf %21, %189 : vector<2x1xf32>
    %191 = arith.addf %22, %38 : vector<2x128xf32>
    %192 = arith.addf %191, %92 : vector<2x128xf32>
    %193 = arith.addf %23, %119 : vector<2x64xf32>
    %cst_72 = arith.constant 5.000000e-01 : f32
    %194 = vector.broadcast %cst_72 : f32 to vector<2x128xf32>
    %195 = arith.cmpf ogt, %48, %194 : vector<2x128xf32>
    %196 = arith.extui %195 : vector<2x128xi1> to vector<2x128xi32>
    %197 = arith.sitofp %196 : vector<2x128xi32> to vector<2x128xf32>
    %cst_73 = arith.constant 8.000000e-01 : f32
    %198 = vector.broadcast %cst_73 : f32 to vector<2x128xf32>
    %199 = arith.mulf %198, %48 : vector<2x128xf32>
    %200 = arith.addf %199, %10 : vector<2x128xf32>
    %cst_74 = arith.constant 5.000000e-01 : f32
    %201 = vector.broadcast %cst_74 : f32 to vector<2x128xf32>
    %202 = arith.mulf %197, %201 : vector<2x128xf32>
    %203 = arith.subf %200, %202 : vector<2x128xf32>
    %cst_75 = arith.constant 5.000000e-01 : f32
    %204 = vector.broadcast %cst_75 : f32 to vector<2x128xf32>
    %205 = arith.cmpf ogt, %203, %204 : vector<2x128xf32>
    %206 = arith.extui %205 : vector<2x128xi1> to vector<2x128xi32>
    %207 = arith.sitofp %206 : vector<2x128xi32> to vector<2x128xf32>
    %cst_76 = arith.constant 5.000000e-01 : f32
    %208 = vector.broadcast %cst_76 : f32 to vector<2x128xf32>
    %209 = arith.cmpf ogt, %203, %208 : vector<2x128xf32>
    %210 = arith.extui %209 : vector<2x128xi1> to vector<2x128xi32>
    %211 = arith.sitofp %210 : vector<2x128xi32> to vector<2x128xf32>
    %cst_77 = arith.constant 8.000000e-01 : f32
    %212 = vector.broadcast %cst_77 : f32 to vector<2x128xf32>
    %213 = arith.mulf %212, %203 : vector<2x128xf32>
    %214 = arith.addf %213, %10 : vector<2x128xf32>
    %cst_78 = arith.constant 5.000000e-01 : f32
    %215 = vector.broadcast %cst_78 : f32 to vector<2x128xf32>
    %216 = arith.mulf %211, %215 : vector<2x128xf32>
    %217 = arith.subf %214, %216 : vector<2x128xf32>
    %cst_79 = arith.constant 5.000000e-01 : f32
    %218 = vector.broadcast %cst_79 : f32 to vector<2x128xf32>
    %219 = arith.cmpf ogt, %217, %218 : vector<2x128xf32>
    %220 = arith.extui %219 : vector<2x128xi1> to vector<2x128xi32>
    %221 = arith.sitofp %220 : vector<2x128xi32> to vector<2x128xf32>
    %c0_80 = arith.constant 0 : index
    %c0_81 = arith.constant 0 : index
    %222 = vector.load %arg7[%c0_80, %c0_81] : memref<128x577xbf16, #tpu.memory_space<vmem>>, vector<128x128xbf16>
    %223 = arith.truncf %221 : vector<2x128xf32> to vector<2x128xbf16>
    %cst_82 = arith.constant dense<0.000000e+00> : vector<2x128xf32>
    %224 = tpu.matmul %223, %222, %cst_82 {dimension_numbers = #tpu.dot_dimension_numbers<[1], [0], [0], [1], [0, 0, 1, 1], [], []>} : vector<2x128xbf16>, vector<128x128xbf16>, vector<2x128xf32> -> vector<2x128xf32>
    %c0_83 = arith.constant 0 : index
    %c128_84 = arith.constant 128 : index
    %225 = vector.load %arg2[%c0_83, %c128_84] : memref<1x897xf32, #tpu.memory_space<vmem>>, vector<1x128xf32>
    %226 = vector.broadcast %225 : vector<1x128xf32> to vector<2x128xf32>
    %227 = arith.addf %224, %226 : vector<2x128xf32>
    %cst_85 = arith.constant 5.000000e-01 : f32
    %228 = vector.broadcast %cst_85 : f32 to vector<2x128xf32>
    %229 = arith.cmpf ogt, %68, %228 : vector<2x128xf32>
    %230 = arith.extui %229 : vector<2x128xi1> to vector<2x128xi32>
    %231 = arith.sitofp %230 : vector<2x128xi32> to vector<2x128xf32>
    %cst_86 = arith.constant 8.000000e-01 : f32
    %232 = vector.broadcast %cst_86 : f32 to vector<2x128xf32>
    %233 = arith.mulf %232, %68 : vector<2x128xf32>
    %234 = arith.addf %233, %227 : vector<2x128xf32>
    %cst_87 = arith.constant 5.000000e-01 : f32
    %235 = vector.broadcast %cst_87 : f32 to vector<2x128xf32>
    %236 = arith.mulf %231, %235 : vector<2x128xf32>
    %237 = arith.subf %234, %236 : vector<2x128xf32>
    %cst_88 = arith.constant 5.000000e-01 : f32
    %238 = vector.broadcast %cst_88 : f32 to vector<2x128xf32>
    %239 = arith.cmpf ogt, %237, %238 : vector<2x128xf32>
    %240 = arith.extui %239 : vector<2x128xi1> to vector<2x128xi32>
    %241 = arith.sitofp %240 : vector<2x128xi32> to vector<2x128xf32>
    %c0_89 = arith.constant 0 : index
    %c128_90 = arith.constant 128 : index
    %242 = vector.load %arg7[%c0_89, %c128_90] : memref<128x577xbf16, #tpu.memory_space<vmem>>, vector<128x128xbf16>
    %243 = arith.truncf %241 : vector<2x128xf32> to vector<2x128xbf16>
    %cst_91 = arith.constant dense<0.000000e+00> : vector<2x128xf32>
    %244 = tpu.matmul %243, %242, %cst_91 {dimension_numbers = #tpu.dot_dimension_numbers<[1], [0], [0], [1], [0, 0, 1, 1], [], []>} : vector<2x128xbf16>, vector<128x128xbf16>, vector<2x128xf32> -> vector<2x128xf32>
    %c0_92 = arith.constant 0 : index
    %c256_93 = arith.constant 256 : index
    %245 = vector.load %arg2[%c0_92, %c256_93] : memref<1x897xf32, #tpu.memory_space<vmem>>, vector<1x128xf32>
    %246 = vector.broadcast %245 : vector<1x128xf32> to vector<2x128xf32>
    %247 = arith.addf %244, %246 : vector<2x128xf32>
    %cst_94 = arith.constant 5.000000e-01 : f32
    %248 = vector.broadcast %cst_94 : f32 to vector<2x128xf32>
    %249 = arith.cmpf ogt, %88, %248 : vector<2x128xf32>
    %250 = arith.extui %249 : vector<2x128xi1> to vector<2x128xi32>
    %251 = arith.sitofp %250 : vector<2x128xi32> to vector<2x128xf32>
    %cst_95 = arith.constant 8.000000e-01 : f32
    %252 = vector.broadcast %cst_95 : f32 to vector<2x128xf32>
    %253 = arith.mulf %252, %88 : vector<2x128xf32>
    %254 = arith.addf %253, %247 : vector<2x128xf32>
    %cst_96 = arith.constant 5.000000e-01 : f32
    %255 = vector.broadcast %cst_96 : f32 to vector<2x128xf32>
    %256 = arith.mulf %251, %255 : vector<2x128xf32>
    %257 = arith.subf %254, %256 : vector<2x128xf32>
    %cst_97 = arith.constant 5.000000e-01 : f32
    %258 = vector.broadcast %cst_97 : f32 to vector<2x128xf32>
    %259 = arith.cmpf ogt, %257, %258 : vector<2x128xf32>
    %260 = arith.extui %259 : vector<2x128xi1> to vector<2x128xi32>
    %261 = arith.sitofp %260 : vector<2x128xi32> to vector<2x128xf32>
    %c0_98 = arith.constant 0 : index
    %c512_99 = arith.constant 512 : index
    %262 = vector.load %arg7[%c0_98, %c512_99] : memref<128x577xbf16, #tpu.memory_space<vmem>>, vector<128x64xbf16>
    %263 = arith.truncf %207 : vector<2x128xf32> to vector<2x128xbf16>
    %cst_100 = arith.constant dense<0.000000e+00> : vector<2x64xf32>
    %264 = tpu.matmul %263, %262, %cst_100 {dimension_numbers = #tpu.dot_dimension_numbers<[1], [0], [0], [1], [0, 0, 1, 1], [], []>} : vector<2x128xbf16>, vector<128x64xbf16>, vector<2x64xf32> -> vector<2x64xf32>
    %c0_101 = arith.constant 0 : index
    %c384_102 = arith.constant 384 : index
    %265 = vector.load %arg2[%c0_101, %c384_102] : memref<1x897xf32, #tpu.memory_space<vmem>>, vector<1x64xf32>
    %266 = vector.broadcast %265 : vector<1x64xf32> to vector<2x64xf32>
    %267 = arith.addf %264, %266 : vector<2x64xf32>
    %c0_103 = arith.constant 0 : index
    %c128_104 = arith.constant 128 : index
    %268 = vector.load %arg8[%c0_103, %c128_104] : memref<64x192xbf16, #tpu.memory_space<vmem>>, vector<64x64xbf16>
    %269 = arith.truncf %119 : vector<2x64xf32> to vector<2x64xbf16>
    %cst_105 = arith.constant dense<0.000000e+00> : vector<2x64xf32>
    %270 = tpu.matmul %269, %268, %cst_105 {dimension_numbers = #tpu.dot_dimension_numbers<[1], [0], [0], [1], [0, 0, 1, 1], [], []>} : vector<2x64xbf16>, vector<64x64xbf16>, vector<2x64xf32> -> vector<2x64xf32>
    %c0_106 = arith.constant 0 : index
    %c576_107 = arith.constant 576 : index
    %271 = vector.load %arg2[%c0_106, %c576_107] : memref<1x897xf32, #tpu.memory_space<vmem>>, vector<1x64xf32>
    %272 = vector.broadcast %271 : vector<1x64xf32> to vector<2x64xf32>
    %273 = arith.addf %270, %272 : vector<2x64xf32>
    %cst_108 = arith.constant 1.000000e+00 : f32
    %274 = vector.broadcast %cst_108 : f32 to vector<2x64xf32>
    %275 = arith.cmpf ogt, %115, %274 : vector<2x64xf32>
    %276 = arith.extui %275 : vector<2x64xi1> to vector<2x64xi32>
    %277 = arith.sitofp %276 : vector<2x64xi32> to vector<2x64xf32>
    %cst_109 = arith.constant 0.949999988 : f32
    %278 = vector.broadcast %cst_109 : f32 to vector<2x64xf32>
    %279 = arith.mulf %278, %115 : vector<2x64xf32>
    %280 = arith.addf %279, %267 : vector<2x64xf32>
    %281 = arith.addf %280, %273 : vector<2x64xf32>
    %cst_110 = arith.constant 1.000000e+00 : f32
    %282 = vector.broadcast %cst_110 : f32 to vector<2x64xf32>
    %283 = arith.mulf %277, %282 : vector<2x64xf32>
    %284 = arith.subf %281, %283 : vector<2x64xf32>
    %cst_111 = arith.constant 1.000000e+00 : f32
    %285 = vector.broadcast %cst_111 : f32 to vector<2x64xf32>
    %286 = arith.cmpf ogt, %284, %285 : vector<2x64xf32>
    %287 = arith.extui %286 : vector<2x64xi1> to vector<2x64xi32>
    %288 = arith.sitofp %287 : vector<2x64xi32> to vector<2x64xf32>
    %c0_112 = arith.constant 0 : index
    %c0_113 = arith.constant 0 : index
    %289 = vector.load %arg8[%c0_112, %c0_113] : memref<64x192xbf16, #tpu.memory_space<vmem>>, vector<64x128xbf16>
    %290 = arith.truncf %288 : vector<2x64xf32> to vector<2x64xbf16>
    %cst_114 = arith.constant dense<0.000000e+00> : vector<2x128xf32>
    %291 = tpu.matmul %290, %289, %cst_114 {dimension_numbers = #tpu.dot_dimension_numbers<[1], [0], [0], [1], [0, 0, 1, 1], [], []>} : vector<2x64xbf16>, vector<64x128xbf16>, vector<2x128xf32> -> vector<2x128xf32>
    %c0_115 = arith.constant 0 : index
    %c448_116 = arith.constant 448 : index
    %292 = vector.load %arg2[%c0_115, %c448_116] : memref<1x897xf32, #tpu.memory_space<vmem>>, vector<1x128xf32>
    %293 = vector.broadcast %292 : vector<1x128xf32> to vector<2x128xf32>
    %294 = arith.addf %291, %293 : vector<2x128xf32>
    %c0_117 = arith.constant 0 : index
    %c256_118 = arith.constant 256 : index
    %295 = vector.load %arg7[%c0_117, %c256_118] : memref<128x577xbf16, #tpu.memory_space<vmem>>, vector<128x256xbf16>
    %296 = arith.truncf %261 : vector<2x128xf32> to vector<2x128xbf16>
    %cst_119 = arith.constant dense<0.000000e+00> : vector<2x256xf32>
    %297 = tpu.matmul %296, %295, %cst_119 {dimension_numbers = #tpu.dot_dimension_numbers<[1], [0], [0], [1], [0, 0, 1, 1], [], []>} : vector<2x128xbf16>, vector<128x256xbf16>, vector<2x256xf32> -> vector<2x256xf32>
    %c0_120 = arith.constant 0 : index
    %c640_121 = arith.constant 640 : index
    %298 = vector.load %arg2[%c0_120, %c640_121] : memref<1x897xf32, #tpu.memory_space<vmem>>, vector<1x256xf32>
    %299 = vector.broadcast %298 : vector<1x256xf32> to vector<2x256xf32>
    %300 = arith.addf %297, %299 : vector<2x256xf32>
    %301 = vector.extract_strided_slice %300 {offsets = [0, 0], sizes = [2, 128], strides = [1, 1]} : vector<2x256xf32> to vector<2x128xf32>
    %302 = vector.extract_strided_slice %300 {offsets = [0, 128], sizes = [2, 128], strides = [1, 1]} : vector<2x256xf32> to vector<2x128xf32>
    %cst_122 = arith.constant dense<0xFF800000> : vector<2xf32>
    %303 = vector.multi_reduction <maximumf>, %301, %cst_122 [1] : vector<2x128xf32> to vector<2xf32>
    %304 = vector.shape_cast %303 : vector<2xf32> to vector<2x1xf32>
    %cst_123 = arith.constant dense<0x7F800000> : vector<2xf32>
    %305 = vector.multi_reduction <minimumf>, %301, %cst_123 [1] : vector<2x128xf32> to vector<2xf32>
    %306 = vector.shape_cast %305 : vector<2xf32> to vector<2x1xf32>
    %307 = vector.broadcast %304 : vector<2x1xf32> to vector<2x128xf32>
    %308 = arith.mulf %294, %307 : vector<2x128xf32>
    %309 = vector.broadcast %306 : vector<2x1xf32> to vector<2x128xf32>
    %310 = arith.mulf %294, %309 : vector<2x128xf32>
    %311 = arith.maximumf %308, %310 : vector<2x128xf32>
    %312 = vector.shape_cast %294 : vector<2x128xf32> to vector<2x1x128xf32>
    %313 = vector.shape_cast %301 : vector<2x128xf32> to vector<2x128x1xf32>
    %314 = vector.broadcast %312 : vector<2x1x128xf32> to vector<2x128x128xf32>
    %315 = vector.broadcast %313 : vector<2x128x1xf32> to vector<2x128x128xf32>
    %316 = arith.mulf %314, %315 : vector<2x128x128xf32>
    %317 = vector.shape_cast %311 : vector<2x128xf32> to vector<2x1x128xf32>
    %318 = vector.broadcast %317 : vector<2x1x128xf32> to vector<2x128x128xf32>
    %319 = arith.subf %316, %318 : vector<2x128x128xf32>
    %320 = math.exp %319 : vector<2x128x128xf32>
    %321 = vector.extract_strided_slice %302 {offsets = [0, 0], sizes = [1, 128], strides = [1, 1]} : vector<2x128xf32> to vector<1x128xf32>
    %322 = tpu.concatenate %321, %24 in 0 : vector<1x128xf32>, vector<1x128xf32> -> vector<2x128xf32>
    %323 = vector.extract_strided_slice %320 {offsets = [0, 0, 0], sizes = [1, 128, 128], strides = [1, 1, 1]} : vector<2x128x128xf32> to vector<1x128x128xf32>
    %324 = vector.shape_cast %323 : vector<1x128x128xf32> to vector<128x128xf32>
    %cst_124 = arith.constant dense<0.000000e+00> : vector<2x128xf32>
    %325 = tpu.matmul %322, %324, %cst_124 {dimension_numbers = #tpu.dot_dimension_numbers<[1], [0], [0], [1], [0, 0, 1, 1], [], []>} : vector<2x128xf32>, vector<128x128xf32>, vector<2x128xf32> -> vector<2x128xf32>
    %326 = vector.extract_strided_slice %325 {offsets = [0, 0], sizes = [1, 128], strides = [1, 1]} : vector<2x128xf32> to vector<1x128xf32>
    %327 = vector.extract_strided_slice %325 {offsets = [1, 0], sizes = [1, 128], strides = [1, 1]} : vector<2x128xf32> to vector<1x128xf32>
    %328 = vector.extract_strided_slice %302 {offsets = [1, 0], sizes = [1, 128], strides = [1, 1]} : vector<2x128xf32> to vector<1x128xf32>
    %329 = tpu.concatenate %328, %24 in 0 : vector<1x128xf32>, vector<1x128xf32> -> vector<2x128xf32>
    %330 = vector.extract_strided_slice %320 {offsets = [1, 0, 0], sizes = [1, 128, 128], strides = [1, 1, 1]} : vector<2x128x128xf32> to vector<1x128x128xf32>
    %331 = vector.shape_cast %330 : vector<1x128x128xf32> to vector<128x128xf32>
    %cst_125 = arith.constant dense<0.000000e+00> : vector<2x128xf32>
    %332 = tpu.matmul %329, %331, %cst_125 {dimension_numbers = #tpu.dot_dimension_numbers<[1], [0], [0], [1], [0, 0, 1, 1], [], []>} : vector<2x128xf32>, vector<128x128xf32>, vector<2x128xf32> -> vector<2x128xf32>
    %333 = vector.extract_strided_slice %332 {offsets = [0, 0], sizes = [1, 128], strides = [1, 1]} : vector<2x128xf32> to vector<1x128xf32>
    %334 = vector.extract_strided_slice %332 {offsets = [1, 0], sizes = [1, 128], strides = [1, 1]} : vector<2x128xf32> to vector<1x128xf32>
    %335 = tpu.concatenate %326, %333 in 0 : vector<1x128xf32>, vector<1x128xf32> -> vector<2x128xf32>
    %336 = tpu.concatenate %327, %334 in 0 : vector<1x128xf32>, vector<1x128xf32> -> vector<2x128xf32>
    %337 = tpu.reciprocal %336 {approx = true} : vector<2x128xf32> -> vector<2x128xf32>
    %338 = arith.mulf %335, %337 : vector<2x128xf32>
    %c0_126 = arith.constant 0 : index
    %c576_127 = arith.constant 576 : index
    %339 = vector.load %arg7[%c0_126, %c576_127] : memref<128x577xbf16, #tpu.memory_space<vmem>>, vector<128x1xbf16>
    %340 = arith.extf %339 : vector<128x1xbf16> to vector<128x1xf32>
    %cst_128 = arith.constant dense<0.000000e+00> : vector<2x1xf32>
    %341 = tpu.matmul %338, %340, %cst_128 {dimension_numbers = #tpu.dot_dimension_numbers<[1], [0], [0], [1], [0, 0, 1, 1], [], []>} : vector<2x128xf32>, vector<128x1xf32>, vector<2x1xf32> -> vector<2x1xf32>
    %c0_129 = arith.constant 0 : index
    %c896_130 = arith.constant 896 : index
    %342 = vector.load %arg2[%c0_129, %c896_130] : memref<1x897xf32, #tpu.memory_space<vmem>>, vector<1x1xf32>
    %343 = vector.broadcast %342 : vector<1x1xf32> to vector<2x1xf32>
    %344 = arith.addf %341, %343 : vector<2x1xf32>
    %cst_131 = arith.constant 5.000000e-01 : f32
    %345 = vector.broadcast %cst_131 : f32 to vector<2x1xf32>
    %346 = arith.cmpf ogt, %185, %345 : vector<2x1xf32>
    %347 = arith.extui %346 : vector<2x1xi1> to vector<2x1xi32>
    %348 = arith.sitofp %347 : vector<2x1xi32> to vector<2x1xf32>
    %cst_132 = arith.constant 8.000000e-01 : f32
    %349 = vector.broadcast %cst_132 : f32 to vector<2x1xf32>
    %350 = arith.mulf %349, %185 : vector<2x1xf32>
    %351 = arith.addf %350, %344 : vector<2x1xf32>
    %cst_133 = arith.constant 5.000000e-01 : f32
    %352 = vector.broadcast %cst_133 : f32 to vector<2x1xf32>
    %353 = arith.mulf %348, %352 : vector<2x1xf32>
    %354 = arith.subf %351, %353 : vector<2x1xf32>
    %cst_134 = arith.constant 5.000000e-01 : f32
    %355 = vector.broadcast %cst_134 : f32 to vector<2x1xf32>
    %356 = arith.cmpf ogt, %354, %355 : vector<2x1xf32>
    %357 = arith.extui %356 : vector<2x1xi1> to vector<2x1xi32>
    %358 = arith.sitofp %357 : vector<2x1xi32> to vector<2x1xf32>
    %359 = arith.addf %190, %358 : vector<2x1xf32>
    %360 = arith.addf %192, %207 : vector<2x128xf32>
    %361 = arith.addf %360, %261 : vector<2x128xf32>
    %362 = arith.addf %193, %288 : vector<2x64xf32>
    %cst_135 = arith.constant 5.000000e-01 : f32
    %363 = vector.broadcast %cst_135 : f32 to vector<2x128xf32>
    %364 = arith.cmpf ogt, %217, %363 : vector<2x128xf32>
    %365 = arith.extui %364 : vector<2x128xi1> to vector<2x128xi32>
    %366 = arith.sitofp %365 : vector<2x128xi32> to vector<2x128xf32>
    %cst_136 = arith.constant 8.000000e-01 : f32
    %367 = vector.broadcast %cst_136 : f32 to vector<2x128xf32>
    %368 = arith.mulf %367, %217 : vector<2x128xf32>
    %369 = arith.addf %368, %10 : vector<2x128xf32>
    %cst_137 = arith.constant 5.000000e-01 : f32
    %370 = vector.broadcast %cst_137 : f32 to vector<2x128xf32>
    %371 = arith.mulf %366, %370 : vector<2x128xf32>
    %372 = arith.subf %369, %371 : vector<2x128xf32>
    %cst_138 = arith.constant 5.000000e-01 : f32
    %373 = vector.broadcast %cst_138 : f32 to vector<2x128xf32>
    %374 = arith.cmpf ogt, %372, %373 : vector<2x128xf32>
    %375 = arith.extui %374 : vector<2x128xi1> to vector<2x128xi32>
    %376 = arith.sitofp %375 : vector<2x128xi32> to vector<2x128xf32>
    %cst_139 = arith.constant 5.000000e-01 : f32
    %377 = vector.broadcast %cst_139 : f32 to vector<2x128xf32>
    %378 = arith.cmpf ogt, %372, %377 : vector<2x128xf32>
    %379 = arith.extui %378 : vector<2x128xi1> to vector<2x128xi32>
    %380 = arith.sitofp %379 : vector<2x128xi32> to vector<2x128xf32>
    %cst_140 = arith.constant 8.000000e-01 : f32
    %381 = vector.broadcast %cst_140 : f32 to vector<2x128xf32>
    %382 = arith.mulf %381, %372 : vector<2x128xf32>
    %383 = arith.addf %382, %10 : vector<2x128xf32>
    %cst_141 = arith.constant 5.000000e-01 : f32
    %384 = vector.broadcast %cst_141 : f32 to vector<2x128xf32>
    %385 = arith.mulf %380, %384 : vector<2x128xf32>
    %386 = arith.subf %383, %385 : vector<2x128xf32>
    %cst_142 = arith.constant 5.000000e-01 : f32
    %387 = vector.broadcast %cst_142 : f32 to vector<2x128xf32>
    %388 = arith.cmpf ogt, %386, %387 : vector<2x128xf32>
    %389 = arith.extui %388 : vector<2x128xi1> to vector<2x128xi32>
    %390 = arith.sitofp %389 : vector<2x128xi32> to vector<2x128xf32>
    %c0_143 = arith.constant 0 : index
    %c0_144 = arith.constant 0 : index
    %391 = vector.load %arg7[%c0_143, %c0_144] : memref<128x577xbf16, #tpu.memory_space<vmem>>, vector<128x128xbf16>
    %392 = arith.truncf %390 : vector<2x128xf32> to vector<2x128xbf16>
    %cst_145 = arith.constant dense<0.000000e+00> : vector<2x128xf32>
    %393 = tpu.matmul %392, %391, %cst_145 {dimension_numbers = #tpu.dot_dimension_numbers<[1], [0], [0], [1], [0, 0, 1, 1], [], []>} : vector<2x128xbf16>, vector<128x128xbf16>, vector<2x128xf32> -> vector<2x128xf32>
    %c0_146 = arith.constant 0 : index
    %c128_147 = arith.constant 128 : index
    %394 = vector.load %arg2[%c0_146, %c128_147] : memref<1x897xf32, #tpu.memory_space<vmem>>, vector<1x128xf32>
    %395 = vector.broadcast %394 : vector<1x128xf32> to vector<2x128xf32>
    %396 = arith.addf %393, %395 : vector<2x128xf32>
    %cst_148 = arith.constant 5.000000e-01 : f32
    %397 = vector.broadcast %cst_148 : f32 to vector<2x128xf32>
    %398 = arith.cmpf ogt, %237, %397 : vector<2x128xf32>
    %399 = arith.extui %398 : vector<2x128xi1> to vector<2x128xi32>
    %400 = arith.sitofp %399 : vector<2x128xi32> to vector<2x128xf32>
    %cst_149 = arith.constant 8.000000e-01 : f32
    %401 = vector.broadcast %cst_149 : f32 to vector<2x128xf32>
    %402 = arith.mulf %401, %237 : vector<2x128xf32>
    %403 = arith.addf %402, %396 : vector<2x128xf32>
    %cst_150 = arith.constant 5.000000e-01 : f32
    %404 = vector.broadcast %cst_150 : f32 to vector<2x128xf32>
    %405 = arith.mulf %400, %404 : vector<2x128xf32>
    %406 = arith.subf %403, %405 : vector<2x128xf32>
    %cst_151 = arith.constant 5.000000e-01 : f32
    %407 = vector.broadcast %cst_151 : f32 to vector<2x128xf32>
    %408 = arith.cmpf ogt, %406, %407 : vector<2x128xf32>
    %409 = arith.extui %408 : vector<2x128xi1> to vector<2x128xi32>
    %410 = arith.sitofp %409 : vector<2x128xi32> to vector<2x128xf32>
    %c0_152 = arith.constant 0 : index
    %c128_153 = arith.constant 128 : index
    %411 = vector.load %arg7[%c0_152, %c128_153] : memref<128x577xbf16, #tpu.memory_space<vmem>>, vector<128x128xbf16>
    %412 = arith.truncf %410 : vector<2x128xf32> to vector<2x128xbf16>
    %cst_154 = arith.constant dense<0.000000e+00> : vector<2x128xf32>
    %413 = tpu.matmul %412, %411, %cst_154 {dimension_numbers = #tpu.dot_dimension_numbers<[1], [0], [0], [1], [0, 0, 1, 1], [], []>} : vector<2x128xbf16>, vector<128x128xbf16>, vector<2x128xf32> -> vector<2x128xf32>
    %c0_155 = arith.constant 0 : index
    %c256_156 = arith.constant 256 : index
    %414 = vector.load %arg2[%c0_155, %c256_156] : memref<1x897xf32, #tpu.memory_space<vmem>>, vector<1x128xf32>
    %415 = vector.broadcast %414 : vector<1x128xf32> to vector<2x128xf32>
    %416 = arith.addf %413, %415 : vector<2x128xf32>
    %cst_157 = arith.constant 5.000000e-01 : f32
    %417 = vector.broadcast %cst_157 : f32 to vector<2x128xf32>
    %418 = arith.cmpf ogt, %257, %417 : vector<2x128xf32>
    %419 = arith.extui %418 : vector<2x128xi1> to vector<2x128xi32>
    %420 = arith.sitofp %419 : vector<2x128xi32> to vector<2x128xf32>
    %cst_158 = arith.constant 8.000000e-01 : f32
    %421 = vector.broadcast %cst_158 : f32 to vector<2x128xf32>
    %422 = arith.mulf %421, %257 : vector<2x128xf32>
    %423 = arith.addf %422, %416 : vector<2x128xf32>
    %cst_159 = arith.constant 5.000000e-01 : f32
    %424 = vector.broadcast %cst_159 : f32 to vector<2x128xf32>
    %425 = arith.mulf %420, %424 : vector<2x128xf32>
    %426 = arith.subf %423, %425 : vector<2x128xf32>
    %cst_160 = arith.constant 5.000000e-01 : f32
    %427 = vector.broadcast %cst_160 : f32 to vector<2x128xf32>
    %428 = arith.cmpf ogt, %426, %427 : vector<2x128xf32>
    %429 = arith.extui %428 : vector<2x128xi1> to vector<2x128xi32>
    %430 = arith.sitofp %429 : vector<2x128xi32> to vector<2x128xf32>
    %c0_161 = arith.constant 0 : index
    %c512_162 = arith.constant 512 : index
    %431 = vector.load %arg7[%c0_161, %c512_162] : memref<128x577xbf16, #tpu.memory_space<vmem>>, vector<128x64xbf16>
    %432 = arith.truncf %376 : vector<2x128xf32> to vector<2x128xbf16>
    %cst_163 = arith.constant dense<0.000000e+00> : vector<2x64xf32>
    %433 = tpu.matmul %432, %431, %cst_163 {dimension_numbers = #tpu.dot_dimension_numbers<[1], [0], [0], [1], [0, 0, 1, 1], [], []>} : vector<2x128xbf16>, vector<128x64xbf16>, vector<2x64xf32> -> vector<2x64xf32>
    %c0_164 = arith.constant 0 : index
    %c384_165 = arith.constant 384 : index
    %434 = vector.load %arg2[%c0_164, %c384_165] : memref<1x897xf32, #tpu.memory_space<vmem>>, vector<1x64xf32>
    %435 = vector.broadcast %434 : vector<1x64xf32> to vector<2x64xf32>
    %436 = arith.addf %433, %435 : vector<2x64xf32>
    %c0_166 = arith.constant 0 : index
    %c128_167 = arith.constant 128 : index
    %437 = vector.load %arg8[%c0_166, %c128_167] : memref<64x192xbf16, #tpu.memory_space<vmem>>, vector<64x64xbf16>
    %438 = arith.truncf %288 : vector<2x64xf32> to vector<2x64xbf16>
    %cst_168 = arith.constant dense<0.000000e+00> : vector<2x64xf32>
    %439 = tpu.matmul %438, %437, %cst_168 {dimension_numbers = #tpu.dot_dimension_numbers<[1], [0], [0], [1], [0, 0, 1, 1], [], []>} : vector<2x64xbf16>, vector<64x64xbf16>, vector<2x64xf32> -> vector<2x64xf32>
    %c0_169 = arith.constant 0 : index
    %c576_170 = arith.constant 576 : index
    %440 = vector.load %arg2[%c0_169, %c576_170] : memref<1x897xf32, #tpu.memory_space<vmem>>, vector<1x64xf32>
    %441 = vector.broadcast %440 : vector<1x64xf32> to vector<2x64xf32>
    %442 = arith.addf %439, %441 : vector<2x64xf32>
    %cst_171 = arith.constant 1.000000e+00 : f32
    %443 = vector.broadcast %cst_171 : f32 to vector<2x64xf32>
    %444 = arith.cmpf ogt, %284, %443 : vector<2x64xf32>
    %445 = arith.extui %444 : vector<2x64xi1> to vector<2x64xi32>
    %446 = arith.sitofp %445 : vector<2x64xi32> to vector<2x64xf32>
    %cst_172 = arith.constant 0.949999988 : f32
    %447 = vector.broadcast %cst_172 : f32 to vector<2x64xf32>
    %448 = arith.mulf %447, %284 : vector<2x64xf32>
    %449 = arith.addf %448, %436 : vector<2x64xf32>
    %450 = arith.addf %449, %442 : vector<2x64xf32>
    %cst_173 = arith.constant 1.000000e+00 : f32
    %451 = vector.broadcast %cst_173 : f32 to vector<2x64xf32>
    %452 = arith.mulf %446, %451 : vector<2x64xf32>
    %453 = arith.subf %450, %452 : vector<2x64xf32>
    %cst_174 = arith.constant 1.000000e+00 : f32
    %454 = vector.broadcast %cst_174 : f32 to vector<2x64xf32>
    %455 = arith.cmpf ogt, %453, %454 : vector<2x64xf32>
    %456 = arith.extui %455 : vector<2x64xi1> to vector<2x64xi32>
    %457 = arith.sitofp %456 : vector<2x64xi32> to vector<2x64xf32>
    %c0_175 = arith.constant 0 : index
    %c0_176 = arith.constant 0 : index
    %458 = vector.load %arg8[%c0_175, %c0_176] : memref<64x192xbf16, #tpu.memory_space<vmem>>, vector<64x128xbf16>
    %459 = arith.truncf %457 : vector<2x64xf32> to vector<2x64xbf16>
    %cst_177 = arith.constant dense<0.000000e+00> : vector<2x128xf32>
    %460 = tpu.matmul %459, %458, %cst_177 {dimension_numbers = #tpu.dot_dimension_numbers<[1], [0], [0], [1], [0, 0, 1, 1], [], []>} : vector<2x64xbf16>, vector<64x128xbf16>, vector<2x128xf32> -> vector<2x128xf32>
    %c0_178 = arith.constant 0 : index
    %c448_179 = arith.constant 448 : index
    %461 = vector.load %arg2[%c0_178, %c448_179] : memref<1x897xf32, #tpu.memory_space<vmem>>, vector<1x128xf32>
    %462 = vector.broadcast %461 : vector<1x128xf32> to vector<2x128xf32>
    %463 = arith.addf %460, %462 : vector<2x128xf32>
    %c0_180 = arith.constant 0 : index
    %c256_181 = arith.constant 256 : index
    %464 = vector.load %arg7[%c0_180, %c256_181] : memref<128x577xbf16, #tpu.memory_space<vmem>>, vector<128x256xbf16>
    %465 = arith.truncf %430 : vector<2x128xf32> to vector<2x128xbf16>
    %cst_182 = arith.constant dense<0.000000e+00> : vector<2x256xf32>
    %466 = tpu.matmul %465, %464, %cst_182 {dimension_numbers = #tpu.dot_dimension_numbers<[1], [0], [0], [1], [0, 0, 1, 1], [], []>} : vector<2x128xbf16>, vector<128x256xbf16>, vector<2x256xf32> -> vector<2x256xf32>
    %c0_183 = arith.constant 0 : index
    %c640_184 = arith.constant 640 : index
    %467 = vector.load %arg2[%c0_183, %c640_184] : memref<1x897xf32, #tpu.memory_space<vmem>>, vector<1x256xf32>
    %468 = vector.broadcast %467 : vector<1x256xf32> to vector<2x256xf32>
    %469 = arith.addf %466, %468 : vector<2x256xf32>
    %470 = vector.extract_strided_slice %469 {offsets = [0, 0], sizes = [2, 128], strides = [1, 1]} : vector<2x256xf32> to vector<2x128xf32>
    %471 = vector.extract_strided_slice %469 {offsets = [0, 128], sizes = [2, 128], strides = [1, 1]} : vector<2x256xf32> to vector<2x128xf32>
    %cst_185 = arith.constant dense<0xFF800000> : vector<2xf32>
    %472 = vector.multi_reduction <maximumf>, %470, %cst_185 [1] : vector<2x128xf32> to vector<2xf32>
    %473 = vector.shape_cast %472 : vector<2xf32> to vector<2x1xf32>
    %cst_186 = arith.constant dense<0x7F800000> : vector<2xf32>
    %474 = vector.multi_reduction <minimumf>, %470, %cst_186 [1] : vector<2x128xf32> to vector<2xf32>
    %475 = vector.shape_cast %474 : vector<2xf32> to vector<2x1xf32>
    %476 = vector.broadcast %473 : vector<2x1xf32> to vector<2x128xf32>
    %477 = arith.mulf %463, %476 : vector<2x128xf32>
    %478 = vector.broadcast %475 : vector<2x1xf32> to vector<2x128xf32>
    %479 = arith.mulf %463, %478 : vector<2x128xf32>
    %480 = arith.maximumf %477, %479 : vector<2x128xf32>
    %481 = vector.shape_cast %463 : vector<2x128xf32> to vector<2x1x128xf32>
    %482 = vector.shape_cast %470 : vector<2x128xf32> to vector<2x128x1xf32>
    %483 = vector.broadcast %481 : vector<2x1x128xf32> to vector<2x128x128xf32>
    %484 = vector.broadcast %482 : vector<2x128x1xf32> to vector<2x128x128xf32>
    %485 = arith.mulf %483, %484 : vector<2x128x128xf32>
    %486 = vector.shape_cast %480 : vector<2x128xf32> to vector<2x1x128xf32>
    %487 = vector.broadcast %486 : vector<2x1x128xf32> to vector<2x128x128xf32>
    %488 = arith.subf %485, %487 : vector<2x128x128xf32>
    %489 = math.exp %488 : vector<2x128x128xf32>
    %490 = vector.extract_strided_slice %471 {offsets = [0, 0], sizes = [1, 128], strides = [1, 1]} : vector<2x128xf32> to vector<1x128xf32>
    %491 = tpu.concatenate %490, %24 in 0 : vector<1x128xf32>, vector<1x128xf32> -> vector<2x128xf32>
    %492 = vector.extract_strided_slice %489 {offsets = [0, 0, 0], sizes = [1, 128, 128], strides = [1, 1, 1]} : vector<2x128x128xf32> to vector<1x128x128xf32>
    %493 = vector.shape_cast %492 : vector<1x128x128xf32> to vector<128x128xf32>
    %cst_187 = arith.constant dense<0.000000e+00> : vector<2x128xf32>
    %494 = tpu.matmul %491, %493, %cst_187 {dimension_numbers = #tpu.dot_dimension_numbers<[1], [0], [0], [1], [0, 0, 1, 1], [], []>} : vector<2x128xf32>, vector<128x128xf32>, vector<2x128xf32> -> vector<2x128xf32>
    %495 = vector.extract_strided_slice %494 {offsets = [0, 0], sizes = [1, 128], strides = [1, 1]} : vector<2x128xf32> to vector<1x128xf32>
    %496 = vector.extract_strided_slice %494 {offsets = [1, 0], sizes = [1, 128], strides = [1, 1]} : vector<2x128xf32> to vector<1x128xf32>
    %497 = vector.extract_strided_slice %471 {offsets = [1, 0], sizes = [1, 128], strides = [1, 1]} : vector<2x128xf32> to vector<1x128xf32>
    %498 = tpu.concatenate %497, %24 in 0 : vector<1x128xf32>, vector<1x128xf32> -> vector<2x128xf32>
    %499 = vector.extract_strided_slice %489 {offsets = [1, 0, 0], sizes = [1, 128, 128], strides = [1, 1, 1]} : vector<2x128x128xf32> to vector<1x128x128xf32>
    %500 = vector.shape_cast %499 : vector<1x128x128xf32> to vector<128x128xf32>
    %cst_188 = arith.constant dense<0.000000e+00> : vector<2x128xf32>
    %501 = tpu.matmul %498, %500, %cst_188 {dimension_numbers = #tpu.dot_dimension_numbers<[1], [0], [0], [1], [0, 0, 1, 1], [], []>} : vector<2x128xf32>, vector<128x128xf32>, vector<2x128xf32> -> vector<2x128xf32>
    %502 = vector.extract_strided_slice %501 {offsets = [0, 0], sizes = [1, 128], strides = [1, 1]} : vector<2x128xf32> to vector<1x128xf32>
    %503 = vector.extract_strided_slice %501 {offsets = [1, 0], sizes = [1, 128], strides = [1, 1]} : vector<2x128xf32> to vector<1x128xf32>
    %504 = tpu.concatenate %495, %502 in 0 : vector<1x128xf32>, vector<1x128xf32> -> vector<2x128xf32>
    %505 = tpu.concatenate %496, %503 in 0 : vector<1x128xf32>, vector<1x128xf32> -> vector<2x128xf32>
    %506 = tpu.reciprocal %505 {approx = true} : vector<2x128xf32> -> vector<2x128xf32>
    %507 = arith.mulf %504, %506 : vector<2x128xf32>
    %c0_189 = arith.constant 0 : index
    %c576_190 = arith.constant 576 : index
    %508 = vector.load %arg7[%c0_189, %c576_190] : memref<128x577xbf16, #tpu.memory_space<vmem>>, vector<128x1xbf16>
    %509 = arith.extf %508 : vector<128x1xbf16> to vector<128x1xf32>
    %cst_191 = arith.constant dense<0.000000e+00> : vector<2x1xf32>
    %510 = tpu.matmul %507, %509, %cst_191 {dimension_numbers = #tpu.dot_dimension_numbers<[1], [0], [0], [1], [0, 0, 1, 1], [], []>} : vector<2x128xf32>, vector<128x1xf32>, vector<2x1xf32> -> vector<2x1xf32>
    %c0_192 = arith.constant 0 : index
    %c896_193 = arith.constant 896 : index
    %511 = vector.load %arg2[%c0_192, %c896_193] : memref<1x897xf32, #tpu.memory_space<vmem>>, vector<1x1xf32>
    %512 = vector.broadcast %511 : vector<1x1xf32> to vector<2x1xf32>
    %513 = arith.addf %510, %512 : vector<2x1xf32>
    %cst_194 = arith.constant 5.000000e-01 : f32
    %514 = vector.broadcast %cst_194 : f32 to vector<2x1xf32>
    %515 = arith.cmpf ogt, %354, %514 : vector<2x1xf32>
    %516 = arith.extui %515 : vector<2x1xi1> to vector<2x1xi32>
    %517 = arith.sitofp %516 : vector<2x1xi32> to vector<2x1xf32>
    %cst_195 = arith.constant 8.000000e-01 : f32
    %518 = vector.broadcast %cst_195 : f32 to vector<2x1xf32>
    %519 = arith.mulf %518, %354 : vector<2x1xf32>
    %520 = arith.addf %519, %513 : vector<2x1xf32>
    %cst_196 = arith.constant 5.000000e-01 : f32
    %521 = vector.broadcast %cst_196 : f32 to vector<2x1xf32>
    %522 = arith.mulf %517, %521 : vector<2x1xf32>
    %523 = arith.subf %520, %522 : vector<2x1xf32>
    %cst_197 = arith.constant 5.000000e-01 : f32
    %524 = vector.broadcast %cst_197 : f32 to vector<2x1xf32>
    %525 = arith.cmpf ogt, %523, %524 : vector<2x1xf32>
    %526 = arith.extui %525 : vector<2x1xi1> to vector<2x1xi32>
    %527 = arith.sitofp %526 : vector<2x1xi32> to vector<2x1xf32>
    %528 = arith.addf %359, %527 : vector<2x1xf32>
    %529 = arith.addf %361, %376 : vector<2x128xf32>
    %530 = arith.addf %529, %430 : vector<2x128xf32>
    %531 = arith.addf %362, %457 : vector<2x64xf32>
    %c0_198 = arith.constant 0 : index
    %c0_199 = arith.constant 0 : index
    %532 = vector.load %arg5[%c0_198, %c0_199] : memref<2x1xf32, #tpu.memory_space<vmem>>, vector<2x1xf32>
    tpu.vector_store %arg5[%c0_198, %c0_199], %528 {strides = array<i32>} : memref<2x1xf32, #tpu.memory_space<vmem>>, vector<2x1xf32>,
    %533 = vector.shape_cast %530 : vector<2x128xf32> to vector<1x2x128xf32>
    %cst_200 = arith.constant dense<0.000000e+00> : vector<1xf32>
    %534 = vector.multi_reduction <add>, %533, %cst_200 [1, 2] : vector<1x2x128xf32> to vector<1xf32>
    %535 = vector.shape_cast %534 : vector<1xf32> to vector<1x1x1xf32>
    %536 = vector.extract %535[0, 0, 0] : f32 from vector<1x1x1xf32>
    %537 = vector.shape_cast %531 : vector<2x64xf32> to vector<1x2x64xf32>
    %cst_201 = arith.constant dense<0.000000e+00> : vector<1xf32>
    %538 = vector.multi_reduction <add>, %537, %cst_201 [1, 2] : vector<1x2x64xf32> to vector<1xf32>
    %539 = vector.shape_cast %538 : vector<1xf32> to vector<1x1x1xf32>
    %540 = vector.extract %539[0, 0, 0] : f32 from vector<1x1x1xf32>
    %541 = arith.addf %536, %540 : f32
    %542 = vector.shape_cast %528 : vector<2x1xf32> to vector<1x2x1xf32>
    %cst_202 = arith.constant dense<0.000000e+00> : vector<1xf32>
    %543 = vector.multi_reduction <add>, %542, %cst_202 [1, 2] : vector<1x2x1xf32> to vector<1xf32>
    %544 = vector.shape_cast %543 : vector<1xf32> to vector<1x1x1xf32>
    %545 = vector.extract %544[0, 0, 0] : f32 from vector<1x1x1xf32>
    %546 = arith.addf %541, %545 : f32
    %cst_203 = arith.constant 0.000000e+00 : f32
    %547 = vector.broadcast %cst_203 : f32 to vector<1x1xf32>
    %548 = vector.broadcast %546 : f32 to vector<1x1xf32>
    %549 = arith.addf %547, %548 : vector<1x1xf32>
    %c0_204 = arith.constant 0 : index
    %c0_205 = arith.constant 0 : index
    %550 = vector.load %arg6[%c0_204, %c0_205] : memref<1x1xf32, #tpu.memory_space<vmem>>, vector<1x1xf32>
    tpu.vector_store %arg6[%c0_204, %c0_205], %549 {strides = array<i32>} : memref<1x1xf32, #tpu.memory_space<vmem>>, vector<1x1xf32>,
    return
  }
}

</mosaic_0001>

<llo_original>
// kernel: rsnn_vit2_forward.1
$region0: #{rsnn_vit2_forward.1}
  #allocation0 [shape = 'u32[]', space=smem, size = 0x4, offset = 0x4, fixed_abs, tag = 'smem constant byte address 0x4 - core index']
  #allocation1 [shape = 'u32[144,128]{1,0:T(1,128)}', space=vmem, size = 0x12000, scoped, tag = 'internal scratch']
  #allocation2 [shape = 'bf16[128,577]{1,0:T(16,128)(2,1)}', space=vmem, size = 0x28000, scoped, tag = 'scratch operand']
  #allocation3 [shape = 'bf16[64,192]{1,0:T(16,128)(2,1)}', space=vmem, size = 0x8000, scoped, tag = 'scratch operand']
  #allocation4 [shape = 's32[2]{0}', space=sflag, size = 0x8, scoped, tag = 'scratch operand']
  #allocation7 [shape = 's32[]', space=sflag, size = 0x4, offset = 0, fixed_abs, tag = 'sflag constant byte address 0x0 - dummy sync flag']
  #allocation8 [shape = 's32[]', space=sflag, size = 0x4, offset = 0, fixed_abs, tag = 'sflag constant byte address 0x0 - dummy sync flag']
  %s0 = inlined_call_operand.vmem [shape: f32[2,784], index: 0, kind: input, shape index: {}]
  %s1 = inlined_call_operand.vmem [shape: bf16[784,128], index: 1, kind: input, shape index: {}]
  %s2 = inlined_call_operand.vmem [shape: f32[1,897], index: 2, kind: input, shape index: {}]
  %s3 = inlined_call_operand.vmem [shape: bf16[128,577], index: 3, kind: input, shape index: {}]
  %s4 = inlined_call_operand.vmem [shape: bf16[64,192], index: 4, kind: input, shape index: {}]
  %s5 = inlined_call_operand.vmem [shape: f32[2,1], index: 5, kind: output, shape index: {0}]
  %s6 = inlined_call_operand.hbm [shape: f32[1,1], index: 6, kind: output, shape index: {1}]
  %7 = xla_tuple %s5, %s6
  %s8 = sld [smem:[#allocation0]]
  $region104: #{rsnn_vit2_forward.1} parent=0
    _
  %s10 = ssub.s32 1, %s8
  %s11 = scalar_select 0, %s10, %s8
  $region1: #{rsnn_vit2_forward.1} parent=0
    #allocation5 [shape = 'u8[512]{0}', space=vmem, size = 0x400, scoped, tag = 'output window, operand 1, single buffered']
    #allocation6 [shape = 's32[1]{0}', space=sflag, size = 0x4, scoped, tag = 'scoped memory for rsnn_vit2_forward.1']
    %12 = vsyncpa [#allocation6], 0
    // Predicated region
    $region2: #{rsnn_vit2_forward.1} parent=1 // pred_check
      _
    $region3: #{rsnn_vit2_forward.1} parent=1 // pred_check_branch
      %14 = sbr.rel (0) target = $region5
    $region4: #{rsnn_vit2_forward.1} parent=1 // pred_region
      _
    $region5: #{rsnn_vit2_forward.1} parent=1 // pred_fallthru
      _
    // Predicated region
    $region6: #{rsnn_vit2_forward.1} parent=1 // pred_check
      _
    $region7: #{rsnn_vit2_forward.1} parent=1 // pred_check_branch
      %16 = sbr.rel (0) target = $region9
    $region8: #{rsnn_vit2_forward.1} parent=1 // pred_region
      _
    $region9: #{rsnn_vit2_forward.1} parent=1 // pred_fallthru
      _
    // Predicated region
    $region10: #{rsnn_vit2_forward.1} parent=1 // pred_check
      _
    $region11: #{rsnn_vit2_forward.1} parent=1 // pred_check_branch
      %18 = sbr.rel (0) target = $region13
    $region12: #{rsnn_vit2_forward.1} parent=1 // pred_region
      _
    $region13: #{rsnn_vit2_forward.1} parent=1 // pred_fallthru
      _
    %p21 = scmp.lt.u32.totalorder 4, 8
    %p22 = pneg %p21
    // Predicated region
    $region14: #{rsnn_vit2_forward.1} parent=1 // pred_check
      _
    $region15: #{rsnn_vit2_forward.1} parent=1 // pred_check_branch
      %24 = sbr.rel (%p21) target = $region17
    $region16: #{rsnn_vit2_forward.1} parent=1 // pred_region
      %s197 = sand.u32 4, 7
      %p198 = scmp.eq.s32.totalorder %s197, 0
      %p199 = pneg %p198
      // Predicated region
      $region29: #{rsnn_vit2_forward.1} parent=16 // pred_check
        _
      $region30: #{rsnn_vit2_forward.1} parent=16 // pred_check_branch
        %201 = sbr.rel (%p198) target = $region32
      $region31: #{rsnn_vit2_forward.1} parent=16 // pred_region
        %s202 = sand.u32 4, 7
        %s203 = ssub.s32 4, %s202
        %s204 = scalar_lea.vmem %s3, %s203
        %s205 = ssub.s32 4, %s202
        %s206 = scalar_lea.vmem [#allocation2], %s205
        loop: start=0, step=1, limit=1
        $region33: #{rsnn_vit2_forward.1} parent=31 // loop_pre_header
          _
        $region34: #{rsnn_vit2_forward.1} parent=31 // loop_header
          %s208 = sphi 0, %s212
          %p209 = scmp.ge.s32.totalorder %s208, 1
          %s213 = sphi %s3, %s3
          %s214 = sphi [#allocation2], [#allocation2]
        $region35: #{rsnn_vit2_forward.1} parent=31 // loop_header_branch
          %211 = sbr.rel (%p209) target = $region39
        $region36: #{rsnn_vit2_forward.1} parent=31 // loop_body
          _
        $region37: #{rsnn_vit2_forward.1} parent=31 // loop_footer
          %s212 = sadd.s32 1, %s208
        $region38: #{rsnn_vit2_forward.1} parent=31 // loop_footer_branch
          %207 = sbr.rel target = $region34
        $region39: #{rsnn_vit2_forward.1} parent=31 // loop_exit
          _
        %s215 = sshllo.u32 0, %s202
        loop: start=0, step=1, limit=1
        $region40: #{rsnn_vit2_forward.1} parent=31 // loop_pre_header
          _
        $region41: #{rsnn_vit2_forward.1} parent=31 // loop_header
          %s217 = sphi 0, %s221
          %p218 = scmp.ge.s32.totalorder %s217, 1
          %s222 = sphi %s204, %s204
          %s223 = sphi %s206, %s206
        $region42: #{rsnn_vit2_forward.1} parent=31 // loop_header_branch
          %220 = sbr.rel (%p218) target = $region46
        $region43: #{rsnn_vit2_forward.1} parent=31 // loop_body
          %v224 = vld [vmem:[%s222] sm:%s215]
          %225 = vst [vmem:[%s223] sm:%s215] %v224
          %v226 = vld [vmem:[%s222 + $0x14] sm:%s215]
          %227 = vst [vmem:[%s223 + $0x4] sm:%s215] %v226
          %v228 = vld [vmem:[%s222 + $0x4] sm:%s215]
          %229 = vst [vmem:[%s223 + $0x8] sm:%s215] %v228
          %v230 = vld [vmem:[%s222 + $0x18] sm:%s215]
          %231 = vst [vmem:[%s223 + $0xc] sm:%s215] %v230
          %v232 = vld [vmem:[%s222 + $0x8] sm:%s215]
          %233 = vst [vmem:[%s223 + $0x10] sm:%s215] %v232
          %v234 = vld [vmem:[%s222 + $0x1c] sm:%s215]
          %235 = vst [vmem:[%s223 + $0x14] sm:%s215] %v234
          %v236 = vld [vmem:[%s222 + $0xc] sm:%s215]
          %237 = vst [vmem:[%s223 + $0x18] sm:%s215] %v236
          %v238 = vld [vmem:[%s222 + $0x20] sm:%s215]
          %239 = vst [vmem:[%s223 + $0x1c] sm:%s215] %v238
          %v240 = vld [vmem:[%s222 + $0x10] sm:%s215]
          %241 = vst [vmem:[%s223 + $0x20] sm:%s215] %v240
          %v242 = vld [vmem:[%s222 + $0x24] sm:%s215]
          %243 = vst [vmem:[%s223 + $0x24] sm:%s215] %v242
          %v244 = vld [vmem:[%s222 + $0x28] sm:%s215]
          %245 = vst [vmem:[%s223 + $0x28] sm:%s215] %v244
          %v246 = vld [vmem:[%s222 + $0x3c] sm:%s215]
          %247 = vst [vmem:[%s223 + $0x2c] sm:%s215] %v246
          %v248 = vld [vmem:[%s222 + $0x2c] sm:%s215]
          %249 = vst [vmem:[%s223 + $0x30] sm:%s215] %v248
          %v250 = vld [vmem:[%s222 + $0x40] sm:%s215]
          %251 = vst [vmem:[%s223 + $0x34] sm:%s215] %v250
          %v252 = vld [vmem:[%s222 + $0x30] sm:%s215]
          %253 = vst [vmem:[%s223 + $0x38] sm:%s215] %v252
          %v254 = vld [vmem:[%s222 + $0x44] sm:%s215]
          %255 = vst [vmem:[%s223 + $0x3c] sm:%s215] %v254
          %v256 = vld [vmem:[%s222 + $0x34] sm:%s215]
          %257 = vst [vmem:[%s223 + $0x40] sm:%s215] %v256
          %v258 = vld [vmem:[%s222 + $0x48] sm:%s215]
          %259 = vst [vmem:[%s223 + $0x44] sm:%s215] %v258
          %v260 = vld [vmem:[%s222 + $0x38] sm:%s215]
          %261 = vst [vmem:[%s223 + $0x48] sm:%s215] %v260
          %v262 = vld [vmem:[%s222 + $0x4c] sm:%s215]
          %263 = vst [vmem:[%s223 + $0x4c] sm:%s215] %v262
          %v264 = vld [vmem:[%s222 + $0x50] sm:%s215]
          %265 = vst [vmem:[%s223 + $0x50] sm:%s215] %v264
          %v266 = vld [vmem:[%s222 + $0x64] sm:%s215]
          %267 = vst [vmem:[%s223 + $0x54] sm:%s215] %v266
          %v268 = vld [vmem:[%s222 + $0x54] sm:%s215]
          %269 = vst [vmem:[%s223 + $0x58] sm:%s215] %v268
          %v270 = vld [vmem:[%s222 + $0x68] sm:%s215]
          %271 = vst [vmem:[%s223 + $0x5c] sm:%s215] %v270
          %v272 = vld [vmem:[%s222 + $0x58] sm:%s215]
          %273 = vst [vmem:[%s223 + $0x60] sm:%s215] %v272
          %v274 = vld [vmem:[%s222 + $0x6c] sm:%s215]
          %275 = vst [vmem:[%s223 + $0x64] sm:%s215] %v274
          %v276 = vld [vmem:[%s222 + $0x5c] sm:%s215]
          %277 = vst [vmem:[%s223 + $0x68] sm:%s215] %v276
          %v278 = vld [vmem:[%s222 + $0x70] sm:%s215]
          %279 = vst [vmem:[%s223 + $0x6c] sm:%s215] %v278
          %v280 = vld [vmem:[%s222 + $0x60] sm:%s215]
          %281 = vst [vmem:[%s223 + $0x70] sm:%s215] %v280
          %v282 = vld [vmem:[%s222 + $0x74] sm:%s215]
          %283 = vst [vmem:[%s223 + $0x74] sm:%s215] %v282
          %v284 = vld [vmem:[%s222 + $0x78] sm:%s215]
          %285 = vst [vmem:[%s223 + $0x78] sm:%s215] %v284
          %v286 = vld [vmem:[%s222 + $0x8c] sm:%s215]
          %287 = vst [vmem:[%s223 + $0x7c] sm:%s215] %v286
          %v288 = vld [vmem:[%s222 + $0x7c] sm:%s215]
          %289 = vst [vmem:[%s223 + $0x80] sm:%s215] %v288
          %v290 = vld [vmem:[%s222 + $0x90] sm:%s215]
          %291 = vst [vmem:[%s223 + $0x84] sm:%s215] %v290
          %v292 = vld [vmem:[%s222 + $0x80] sm:%s215]
          %293 = vst [vmem:[%s223 + $0x88] sm:%s215] %v292
          %v294 = vld [vmem:[%s222 + $0x94] sm:%s215]
          %295 = vst [vmem:[%s223 + $0x8c] sm:%s215] %v294
          %v296 = vld [vmem:[%s222 + $0x84] sm:%s215]
          %297 = vst [vmem:[%s223 + $0x90] sm:%s215] %v296
          %v298 = vld [vmem:[%s222 + $0x98] sm:%s215]
          %299 = vst [vmem:[%s223 + $0x94] sm:%s215] %v298
          %v300 = vld [vmem:[%s222 + $0x88] sm:%s215]
          %301 = vst [vmem:[%s223 + $0x98] sm:%s215] %v300
          %v302 = vld [vmem:[%s222 + $0x9c] sm:%s215]
          %303 = vst [vmem:[%s223 + $0x9c] sm:%s215] %v302
          %v304 = vld [vmem:[%s222 + $0xa0] sm:%s215]
          %305 = vst [vmem:[%s223 + $0xa0] sm:%s215] %v304
          %v306 = vld [vmem:[%s222 + $0xb4] sm:%s215]
          %307 = vst [vmem:[%s223 + $0xa4] sm:%s215] %v306
          %v308 = vld [vmem:[%s222 + $0xa4] sm:%s215]
          %309 = vst [vmem:[%s223 + $0xa8] sm:%s215] %v308
          %v310 = vld [vmem:[%s222 + $0xb8] sm:%s215]
          %311 = vst [vmem:[%s223 + $0xac] sm:%s215] %v310
          %v312 = vld [vmem:[%s222 + $0xa8] sm:%s215]
          %313 = vst [vmem:[%s223 + $0xb0] sm:%s215] %v312
          %v314 = vld [vmem:[%s222 + $0xbc] sm:%s215]
          %315 = vst [vmem:[%s223 + $0xb4] sm:%s215] %v314
          %v316 = vld [vmem:[%s222 + $0xac] sm:%s215]
          %317 = vst [vmem:[%s223 + $0xb8] sm:%s215] %v316
          %v318 = vld [vmem:[%s222 + $0xc0] sm:%s215]
          %319 = vst [vmem:[%s223 + $0xbc] sm:%s215] %v318
          %v320 = vld [vmem:[%s222 + $0xb0] sm:%s215]
          %321 = vst [vmem:[%s223 + $0xc0] sm:%s215] %v320
          %v322 = vld [vmem:[%s222 + $0xc4] sm:%s215]
          %323 = vst [vmem:[%s223 + $0xc4] sm:%s215] %v322
          %v324 = vld [vmem:[%s222 + $0xc8] sm:%s215]
          %325 = vst [vmem:[%s223 + $0xc8] sm:%s215] %v324
          %v326 = vld [vmem:[%s222 + $0xdc] sm:%s215]
          %327 = vst [vmem:[%s223 + $0xcc] sm:%s215] %v326
          %v328 = vld [vmem:[%s222 + $0xcc] sm:%s215]
          %329 = vst [vmem:[%s223 + $0xd0] sm:%s215] %v328
          %v330 = vld [vmem:[%s222 + $0xe0] sm:%s215]
          %331 = vst [vmem:[%s223 + $0xd4] sm:%s215] %v330
          %v332 = vld [vmem:[%s222 + $0xd0] sm:%s215]
          %333 = vst [vmem:[%s223 + $0xd8] sm:%s215] %v332
          %v334 = vld [vmem:[%s222 + $0xe4] sm:%s215]
          %335 = vst [vmem:[%s223 + $0xdc] sm:%s215] %v334
          %v336 = vld [vmem:[%s222 + $0xd4] sm:%s215]
          %337 = vst [vmem:[%s223 + $0xe0] sm:%s215] %v336
          %v338 = vld [vmem:[%s222 + $0xe8] sm:%s215]
          %339 = vst [vmem:[%s223 + $0xe4] sm:%s215] %v338
          %v340 = vld [vmem:[%s222 + $0xd8] sm:%s215]
          %341 = vst [vmem:[%s223 + $0xe8] sm:%s215] %v340
          %v342 = vld [vmem:[%s222 + $0xec] sm:%s215]
          %343 = vst [vmem:[%s223 + $0xec] sm:%s215] %v342
          %v344 = vld [vmem:[%s222 + $0xf0] sm:%s215]
          %345 = vst [vmem:[%s223 + $0xf0] sm:%s215] %v344
          %v346 = vld [vmem:[%s222 + $0x104] sm:%s215]
          %347 = vst [vmem:[%s223 + $0xf4] sm:%s215] %v346
          %v348 = vld [vmem:[%s222 + $0xf4] sm:%s215]
          %349 = vst [vmem:[%s223 + $0xf8] sm:%s215] %v348
          %v350 = vld [vmem:[%s222 + $0x108] sm:%s215]
          %351 = vst [vmem:[%s223 + $0xfc] sm:%s215] %v350
          %v352 = vld [vmem:[%s222 + $0xf8] sm:%s215]
          %353 = vst [vmem:[%s223 + $0x100] sm:%s215] %v352
          %v354 = vld [vmem:[%s222 + $0x10c] sm:%s215]
          %355 = vst [vmem:[%s223 + $0x104] sm:%s215] %v354
          %v356 = vld [vmem:[%s222 + $0xfc] sm:%s215]
          %357 = vst [vmem:[%s223 + $0x108] sm:%s215] %v356
          %v358 = vld [vmem:[%s222 + $0x110] sm:%s215]
          %359 = vst [vmem:[%s223 + $0x10c] sm:%s215] %v358
          %v360 = vld [vmem:[%s222 + $0x100] sm:%s215]
          %361 = vst [vmem:[%s223 + $0x110] sm:%s215] %v360
          %v362 = vld [vmem:[%s222 + $0x114] sm:%s215]
          %363 = vst [vmem:[%s223 + $0x114] sm:%s215] %v362
          %v364 = vld [vmem:[%s222 + $0x118] sm:%s215]
          %365 = vst [vmem:[%s223 + $0x118] sm:%s215] %v364
          %v366 = vld [vmem:[%s222 + $0x12c] sm:%s215]
          %367 = vst [vmem:[%s223 + $0x11c] sm:%s215] %v366
          %v368 = vld [vmem:[%s222 + $0x11c] sm:%s215]
          %369 = vst [vmem:[%s223 + $0x120] sm:%s215] %v368
          %v370 = vld [vmem:[%s222 + $0x130] sm:%s215]
          %371 = vst [vmem:[%s223 + $0x124] sm:%s215] %v370
          %v372 = vld [vmem:[%s222 + $0x120] sm:%s215]
          %373 = vst [vmem:[%s223 + $0x128] sm:%s215] %v372
          %v374 = vld [vmem:[%s222 + $0x134] sm:%s215]
          %375 = vst [vmem:[%s223 + $0x12c] sm:%s215] %v374
          %v376 = vld [vmem:[%s222 + $0x124] sm:%s215]
          %377 = vst [vmem:[%s223 + $0x130] sm:%s215] %v376
          %v378 = vld [vmem:[%s222 + $0x138] sm:%s215]
          %379 = vst [vmem:[%s223 + $0x134] sm:%s215] %v378
          %v380 = vld [vmem:[%s222 + $0x128] sm:%s215]
          %381 = vst [vmem:[%s223 + $0x138] sm:%s215] %v380
          %v382 = vld [vmem:[%s222 + $0x13c] sm:%s215]
          %383 = vst [vmem:[%s223 + $0x13c] sm:%s215] %v382
        $region44: #{rsnn_vit2_forward.1} parent=31 // loop_footer
          %s221 = sadd.s32 1, %s217
        $region45: #{rsnn_vit2_forward.1} parent=31 // loop_footer_branch
          %216 = sbr.rel target = $region41
        $region46: #{rsnn_vit2_forward.1} parent=31 // loop_exit
          _
      $region32: #{rsnn_vit2_forward.1} parent=16 // pred_fallthru
        _
    $region17: #{rsnn_vit2_forward.1} parent=1 // pred_fallthru
      _
    // Predicated region
    $region18: #{rsnn_vit2_forward.1} parent=1 // pred_check
      %p25 = pneg %p21
    $region19: #{rsnn_vit2_forward.1} parent=1 // pred_check_branch
      %27 = sbr.rel (%p25) target = $region21
    $region20: #{rsnn_vit2_forward.1} parent=1 // pred_region
      %s28 = sshllo.u32 0, 4
      loop: start=0, step=1, limit=1
      $region22: #{rsnn_vit2_forward.1} parent=20 // loop_pre_header
        _
      $region23: #{rsnn_vit2_forward.1} parent=20 // loop_header
        %s30 = sphi 0, %s34
        %p31 = scmp.ge.s32.totalorder %s30, 1
        %s35 = sphi %s3, %s3
        %s36 = sphi [#allocation2], [#allocation2]
      $region24: #{rsnn_vit2_forward.1} parent=20 // loop_header_branch
        %33 = sbr.rel (%p31) target = $region28
      $region25: #{rsnn_vit2_forward.1} parent=20 // loop_body
        %v37 = vld [vmem:[%s35] sm:%s28]
        %38 = vst [vmem:[%s36] sm:%s28] %v37
        %v39 = vld [vmem:[%s35 + $0x14] sm:%s28]
        %40 = vst [vmem:[%s36 + $0x4] sm:%s28] %v39
        %v41 = vld [vmem:[%s35 + $0x4] sm:%s28]
        %42 = vst [vmem:[%s36 + $0x8] sm:%s28] %v41
        %v43 = vld [vmem:[%s35 + $0x18] sm:%s28]
        %44 = vst [vmem:[%s36 + $0xc] sm:%s28] %v43
        %v45 = vld [vmem:[%s35 + $0x8] sm:%s28]
        %46 = vst [vmem:[%s36 + $0x10] sm:%s28] %v45
        %v47 = vld [vmem:[%s35 + $0x1c] sm:%s28]
        %48 = vst [vmem:[%s36 + $0x14] sm:%s28] %v47
        %v49 = vld [vmem:[%s35 + $0xc] sm:%s28]
        %50 = vst [vmem:[%s36 + $0x18] sm:%s28] %v49
        %v51 = vld [vmem:[%s35 + $0x20] sm:%s28]
        %52 = vst [vmem:[%s36 + $0x1c] sm:%s28] %v51
        %v53 = vld [vmem:[%s35 + $0x10] sm:%s28]
        %54 = vst [vmem:[%s36 + $0x20] sm:%s28] %v53
        %v55 = vld [vmem:[%s35 + $0x24] sm:%s28]
        %56 = vst [vmem:[%s36 + $0x24] sm:%s28] %v55
        %v57 = vld [vmem:[%s35 + $0x28] sm:%s28]
        %58 = vst [vmem:[%s36 + $0x28] sm:%s28] %v57
        %v59 = vld [vmem:[%s35 + $0x3c] sm:%s28]
        %60 = vst [vmem:[%s36 + $0x2c] sm:%s28] %v59
        %v61 = vld [vmem:[%s35 + $0x2c] sm:%s28]
        %62 = vst [vmem:[%s36 + $0x30] sm:%s28] %v61
        %v63 = vld [vmem:[%s35 + $0x40] sm:%s28]
        %64 = vst [vmem:[%s36 + $0x34] sm:%s28] %v63
        %v65 = vld [vmem:[%s35 + $0x30] sm:%s28]
        %66 = vst [vmem:[%s36 + $0x38] sm:%s28] %v65
        %v67 = vld [vmem:[%s35 + $0x44] sm:%s28]
        %68 = vst [vmem:[%s36 + $0x3c] sm:%s28] %v67
        %v69 = vld [vmem:[%s35 + $0x34] sm:%s28]
        %70 = vst [vmem:[%s36 + $0x40] sm:%s28] %v69
        %v71 = vld [vmem:[%s35 + $0x48] sm:%s28]
        %72 = vst [vmem:[%s36 + $0x44] sm:%s28] %v71
        %v73 = vld [vmem:[%s35 + $0x38] sm:%s28]
        %74 = vst [vmem:[%s36 + $0x48] sm:%s28] %v73
        %v75 = vld [vmem:[%s35 + $0x4c] sm:%s28]
        %76 = vst [vmem:[%s36 + $0x4c] sm:%s28] %v75
        %v77 = vld [vmem:[%s35 + $0x50] sm:%s28]
        %78 = vst [vmem:[%s36 + $0x50] sm:%s28] %v77
        %v79 = vld [vmem:[%s35 + $0x64] sm:%s28]
        %80 = vst [vmem:[%s36 + $0x54] sm:%s28] %v79
        %v81 = vld [vmem:[%s35 + $0x54] sm:%s28]
        %82 = vst [vmem:[%s36 + $0x58] sm:%s28] %v81
        %v83 = vld [vmem:[%s35 + $0x68] sm:%s28]
        %84 = vst [vmem:[%s36 + $0x5c] sm:%s28] %v83
        %v85 = vld [vmem:[%s35 + $0x58] sm:%s28]
        %86 = vst [vmem:[%s36 + $0x60] sm:%s28] %v85
        %v87 = vld [vmem:[%s35 + $0x6c] sm:%s28]
        %88 = vst [vmem:[%s36 + $0x64] sm:%s28] %v87
        %v89 = vld [vmem:[%s35 + $0x5c] sm:%s28]
        %90 = vst [vmem:[%s36 + $0x68] sm:%s28] %v89
        %v91 = vld [vmem:[%s35 + $0x70] sm:%s28]
        %92 = vst [vmem:[%s36 + $0x6c] sm:%s28] %v91
        %v93 = vld [vmem:[%s35 + $0x60] sm:%s28]
        %94 = vst [vmem:[%s36 + $0x70] sm:%s28] %v93
        %v95 = vld [vmem:[%s35 + $0x74] sm:%s28]
        %96 = vst [vmem:[%s36 + $0x74] sm:%s28] %v95
        %v97 = vld [vmem:[%s35 + $0x78] sm:%s28]
        %98 = vst [vmem:[%s36 + $0x78] sm:%s28] %v97
        %v99 = vld [vmem:[%s35 + $0x8c] sm:%s28]
        %100 = vst [vmem:[%s36 + $0x7c] sm:%s28] %v99
        %v101 = vld [vmem:[%s35 + $0x7c] sm:%s28]
        %102 = vst [vmem:[%s36 + $0x80] sm:%s28] %v101
        %v103 = vld [vmem:[%s35 + $0x90] sm:%s28]
        %104 = vst [vmem:[%s36 + $0x84] sm:%s28] %v103
        %v105 = vld [vmem:[%s35 + $0x80] sm:%s28]
        %106 = vst [vmem:[%s36 + $0x88] sm:%s28] %v105
        %v107 = vld [vmem:[%s35 + $0x94] sm:%s28]
        %108 = vst [vmem:[%s36 + $0x8c] sm:%s28] %v107
        %v109 = vld [vmem:[%s35 + $0x84] sm:%s28]
        %110 = vst [vmem:[%s36 + $0x90] sm:%s28] %v109
        %v111 = vld [vmem:[%s35 + $0x98] sm:%s28]
        %112 = vst [vmem:[%s36 + $0x94] sm:%s28] %v111
        %v113 = vld [vmem:[%s35 + $0x88] sm:%s28]
        %114 = vst [vmem:[%s36 + $0x98] sm:%s28] %v113
        %v115 = vld [vmem:[%s35 + $0x9c] sm:%s28]
        %116 = vst [vmem:[%s36 + $0x9c] sm:%s28] %v115
        %v117 = vld [vmem:[%s35 + $0xa0] sm:%s28]
        %118 = vst [vmem:[%s36 + $0xa0] sm:%s28] %v117
        %v119 = vld [vmem:[%s35 + $0xb4] sm:%s28]
        %120 = vst [vmem:[%s36 + $0xa4] sm:%s28] %v119
        %v121 = vld [vmem:[%s35 + $0xa4] sm:%s28]
        %122 = vst [vmem:[%s36 + $0xa8] sm:%s28] %v121
        %v123 = vld [vmem:[%s35 + $0xb8] sm:%s28]
        %124 = vst [vmem:[%s36 + $0xac] sm:%s28] %v123
        %v125 = vld [vmem:[%s35 + $0xa8] sm:%s28]
        %126 = vst [vmem:[%s36 + $0xb0] sm:%s28] %v125
        %v127 = vld [vmem:[%s35 + $0xbc] sm:%s28]
        %128 = vst [vmem:[%s36 + $0xb4] sm:%s28] %v127
        %v129 = vld [vmem:[%s35 + $0xac] sm:%s28]
        %130 = vst [vmem:[%s36 + $0xb8] sm:%s28] %v129
        %v131 = vld [vmem:[%s35 + $0xc0] sm:%s28]
        %132 = vst [vmem:[%s36 + $0xbc] sm:%s28] %v131
        %v133 = vld [vmem:[%s35 + $0xb0] sm:%s28]
        %134 = vst [vmem:[%s36 + $0xc0] sm:%s28] %v133
        %v135 = vld [vmem:[%s35 + $0xc4] sm:%s28]
        %136 = vst [vmem:[%s36 + $0xc4] sm:%s28] %v135
        %v137 = vld [vmem:[%s35 + $0xc8] sm:%s28]
        %138 = vst [vmem:[%s36 + $0xc8] sm:%s28] %v137
        %v139 = vld [vmem:[%s35 + $0xdc] sm:%s28]
        %140 = vst [vmem:[%s36 + $0xcc] sm:%s28] %v139
        %v141 = vld [vmem:[%s35 + $0xcc] sm:%s28]
        %142 = vst [vmem:[%s36 + $0xd0] sm:%s28] %v141
        %v143 = vld [vmem:[%s35 + $0xe0] sm:%s28]
        %144 = vst [vmem:[%s36 + $0xd4] sm:%s28] %v143
        %v145 = vld [vmem:[%s35 + $0xd0] sm:%s28]
        %146 = vst [vmem:[%s36 + $0xd8] sm:%s28] %v145
        %v147 = vld [vmem:[%s35 + $0xe4] sm:%s28]
        %148 = vst [vmem:[%s36 + $0xdc] sm:%s28] %v147
        %v149 = vld [vmem:[%s35 + $0xd4] sm:%s28]
        %150 = vst [vmem:[%s36 + $0xe0] sm:%s28] %v149
        %v151 = vld [vmem:[%s35 + $0xe8] sm:%s28]
        %152 = vst [vmem:[%s36 + $0xe4] sm:%s28] %v151
        %v153 = vld [vmem:[%s35 + $0xd8] sm:%s28]
        %154 = vst [vmem:[%s36 + $0xe8] sm:%s28] %v153
        %v155 = vld [vmem:[%s35 + $0xec] sm:%s28]
        %156 = vst [vmem:[%s36 + $0xec] sm:%s28] %v155
        %v157 = vld [vmem:[%s35 + $0xf0] sm:%s28]
        %158 = vst [vmem:[%s36 + $0xf0] sm:%s28] %v157
        %v159 = vld [vmem:[%s35 + $0x104] sm:%s28]
        %160 = vst [vmem:[%s36 + $0xf4] sm:%s28] %v159
        %v161 = vld [vmem:[%s35 + $0xf4] sm:%s28]
        %162 = vst [vmem:[%s36 + $0xf8] sm:%s28] %v161
        %v163 = vld [vmem:[%s35 + $0x108] sm:%s28]
        %164 = vst [vmem:[%s36 + $0xfc] sm:%s28] %v163
        %v165 = vld [vmem:[%s35 + $0xf8] sm:%s28]
        %166 = vst [vmem:[%s36 + $0x100] sm:%s28] %v165
        %v167 = vld [vmem:[%s35 + $0x10c] sm:%s28]
        %168 = vst [vmem:[%s36 + $0x104] sm:%s28] %v167
        %v169 = vld [vmem:[%s35 + $0xfc] sm:%s28]
        %170 = vst [vmem:[%s36 + $0x108] sm:%s28] %v169
        %v171 = vld [vmem:[%s35 + $0x110] sm:%s28]
        %172 = vst [vmem:[%s36 + $0x10c] sm:%s28] %v171
        %v173 = vld [vmem:[%s35 + $0x100] sm:%s28]
        %174 = vst [vmem:[%s36 + $0x110] sm:%s28] %v173
        %v175 = vld [vmem:[%s35 + $0x114] sm:%s28]
        %176 = vst [vmem:[%s36 + $0x114] sm:%s28] %v175
        %v177 = vld [vmem:[%s35 + $0x118] sm:%s28]
        %178 = vst [vmem:[%s36 + $0x118] sm:%s28] %v177
        %v179 = vld [vmem:[%s35 + $0x12c] sm:%s28]
        %180 = vst [vmem:[%s36 + $0x11c] sm:%s28] %v179
        %v181 = vld [vmem:[%s35 + $0x11c] sm:%s28]
        %182 = vst [vmem:[%s36 + $0x120] sm:%s28] %v181
        %v183 = vld [vmem:[%s35 + $0x130] sm:%s28]
        %184 = vst [vmem:[%s36 + $0x124] sm:%s28] %v183
        %v185 = vld [vmem:[%s35 + $0x120] sm:%s28]
        %186 = vst [vmem:[%s36 + $0x128] sm:%s28] %v185
        %v187 = vld [vmem:[%s35 + $0x134] sm:%s28]
        %188 = vst [vmem:[%s36 + $0x12c] sm:%s28] %v187
        %v189 = vld [vmem:[%s35 + $0x124] sm:%s28]
        %190 = vst [vmem:[%s36 + $0x130] sm:%s28] %v189
        %v191 = vld [vmem:[%s35 + $0x138] sm:%s28]
        %192 = vst [vmem:[%s36 + $0x134] sm:%s28] %v191
        %v193 = vld [vmem:[%s35 + $0x128] sm:%s28]
        %194 = vst [vmem:[%s36 + $0x138] sm:%s28] %v193
        %v195 = vld [vmem:[%s35 + $0x13c] sm:%s28]
        %196 = vst [vmem:[%s36 + $0x13c] sm:%s28] %v195
      $region26: #{rsnn_vit2_forward.1} parent=20 // loop_footer
        %s34 = sadd.s32 1, %s30
      $region27: #{rsnn_vit2_forward.1} parent=20 // loop_footer_branch
        %29 = sbr.rel target = $region23
      $region28: #{rsnn_vit2_forward.1} parent=20 // loop_exit
        _
    $region21: #{rsnn_vit2_forward.1} parent=1 // pred_fallthru
      _
    // Predicated region
    $region47: #{rsnn_vit2_forward.1} parent=1 // pred_check
      _
    $region48: #{rsnn_vit2_forward.1} parent=1 // pred_check_branch
      %386 = sbr.rel (0) target = $region50
    $region49: #{rsnn_vit2_forward.1} parent=1 // pred_region
      %387 = vsyncadd [#allocation4], 5120
    $region50: #{rsnn_vit2_forward.1} parent=1 // pred_fallthru
      _
    %s388 = scalar_lea.sflag [#allocation4], 1
    %p390 = scmp.lt.u32.totalorder 4, 8
    %p391 = pneg %p390
    // Predicated region
    $region51: #{rsnn_vit2_forward.1} parent=1 // pred_check
      _
    $region52: #{rsnn_vit2_forward.1} parent=1 // pred_check_branch
      %393 = sbr.rel (%p390) target = $region54
    $region53: #{rsnn_vit2_forward.1} parent=1 // pred_region
      %s438 = sand.u32 4, 7
      %p439 = scmp.eq.s32.totalorder %s438, 0
      %p440 = pneg %p439
      // Predicated region
      $region66: #{rsnn_vit2_forward.1} parent=53 // pred_check
        _
      $region67: #{rsnn_vit2_forward.1} parent=53 // pred_check_branch
        %442 = sbr.rel (%p439) target = $region69
      $region68: #{rsnn_vit2_forward.1} parent=53 // pred_region
        %s443 = sand.u32 4, 7
        %s444 = ssub.s32 4, %s443
        %s445 = scalar_lea.vmem %s4, %s444
        %s446 = ssub.s32 4, %s443
        %s447 = scalar_lea.vmem [#allocation3], %s446
        loop: start=0, step=1, limit=1
        $region70: #{rsnn_vit2_forward.1} parent=68 // loop_pre_header
          _
        $region71: #{rsnn_vit2_forward.1} parent=68 // loop_header
          %s449 = sphi 0, %s453
          %p450 = scmp.ge.s32.totalorder %s449, 1
          %s454 = sphi %s4, %s4
          %s455 = sphi [#allocation3], [#allocation3]
        $region72: #{rsnn_vit2_forward.1} parent=68 // loop_header_branch
          %452 = sbr.rel (%p450) target = $region76
        $region73: #{rsnn_vit2_forward.1} parent=68 // loop_body
          _
        $region74: #{rsnn_vit2_forward.1} parent=68 // loop_footer
          %s453 = sadd.s32 1, %s449
        $region75: #{rsnn_vit2_forward.1} parent=68 // loop_footer_branch
          %448 = sbr.rel target = $region71
        $region76: #{rsnn_vit2_forward.1} parent=68 // loop_exit
          _
        %s456 = sshllo.u32 0, %s443
        loop: start=0, step=1, limit=1
        $region77: #{rsnn_vit2_forward.1} parent=68 // loop_pre_header
          _
        $region78: #{rsnn_vit2_forward.1} parent=68 // loop_header
          %s458 = sphi 0, %s462
          %p459 = scmp.ge.s32.totalorder %s458, 1
          %s463 = sphi %s445, %s445
          %s464 = sphi %s447, %s447
        $region79: #{rsnn_vit2_forward.1} parent=68 // loop_header_branch
          %461 = sbr.rel (%p459) target = $region83
        $region80: #{rsnn_vit2_forward.1} parent=68 // loop_body
          %v465 = vld [vmem:[%s463] sm:%s456]
          %466 = vst [vmem:[%s464] sm:%s456] %v465
          %v467 = vld [vmem:[%s463 + $0x8] sm:%s456]
          %468 = vst [vmem:[%s464 + $0x4] sm:%s456] %v467
          %v469 = vld [vmem:[%s463 + $0x4] sm:%s456]
          %470 = vst [vmem:[%s464 + $0x8] sm:%s456] %v469
          %v471 = vld [vmem:[%s463 + $0xc] sm:%s456]
          %472 = vst [vmem:[%s464 + $0xc] sm:%s456] %v471
          %v473 = vld [vmem:[%s463 + $0x10] sm:%s456]
          %474 = vst [vmem:[%s464 + $0x10] sm:%s456] %v473
          %v475 = vld [vmem:[%s463 + $0x18] sm:%s456]
          %476 = vst [vmem:[%s464 + $0x14] sm:%s456] %v475
          %v477 = vld [vmem:[%s463 + $0x14] sm:%s456]
          %478 = vst [vmem:[%s464 + $0x18] sm:%s456] %v477
          %v479 = vld [vmem:[%s463 + $0x1c] sm:%s456]
          %480 = vst [vmem:[%s464 + $0x1c] sm:%s456] %v479
          %v481 = vld [vmem:[%s463 + $0x20] sm:%s456]
          %482 = vst [vmem:[%s464 + $0x20] sm:%s456] %v481
          %v483 = vld [vmem:[%s463 + $0x28] sm:%s456]
          %484 = vst [vmem:[%s464 + $0x24] sm:%s456] %v483
          %v485 = vld [vmem:[%s463 + $0x24] sm:%s456]
          %486 = vst [vmem:[%s464 + $0x28] sm:%s456] %v485
          %v487 = vld [vmem:[%s463 + $0x2c] sm:%s456]
          %488 = vst [vmem:[%s464 + $0x2c] sm:%s456] %v487
          %v489 = vld [vmem:[%s463 + $0x30] sm:%s456]
          %490 = vst [vmem:[%s464 + $0x30] sm:%s456] %v489
          %v491 = vld [vmem:[%s463 + $0x38] sm:%s456]
          %492 = vst [vmem:[%s464 + $0x34] sm:%s456] %v491
          %v493 = vld [vmem:[%s463 + $0x34] sm:%s456]
          %494 = vst [vmem:[%s464 + $0x38] sm:%s456] %v493
          %v495 = vld [vmem:[%s463 + $0x3c] sm:%s456]
          %496 = vst [vmem:[%s464 + $0x3c] sm:%s456] %v495
        $region81: #{rsnn_vit2_forward.1} parent=68 // loop_footer
          %s462 = sadd.s32 1, %s458
        $region82: #{rsnn_vit2_forward.1} parent=68 // loop_footer_branch
          %457 = sbr.rel target = $region78
        $region83: #{rsnn_vit2_forward.1} parent=68 // loop_exit
          _
      $region69: #{rsnn_vit2_forward.1} parent=53 // pred_fallthru
        _
    $region54: #{rsnn_vit2_forward.1} parent=1 // pred_fallthru
      _
    // Predicated region
    $region55: #{rsnn_vit2_forward.1} parent=1 // pred_check
      %p394 = pneg %p390
    $region56: #{rsnn_vit2_forward.1} parent=1 // pred_check_branch
      %396 = sbr.rel (%p394) target = $region58
    $region57: #{rsnn_vit2_forward.1} parent=1 // pred_region
      %s397 = sshllo.u32 0, 4
      loop: start=0, step=1, limit=1
      $region59: #{rsnn_vit2_forward.1} parent=57 // loop_pre_header
        _
      $region60: #{rsnn_vit2_forward.1} parent=57 // loop_header
        %s399 = sphi 0, %s403
        %p400 = scmp.ge.s32.totalorder %s399, 1
        %s404 = sphi %s4, %s4
        %s405 = sphi [#allocation3], [#allocation3]
      $region61: #{rsnn_vit2_forward.1} parent=57 // loop_header_branch
        %402 = sbr.rel (%p400) target = $region65
      $region62: #{rsnn_vit2_forward.1} parent=57 // loop_body
        %v406 = vld [vmem:[%s404] sm:%s397]
        %407 = vst [vmem:[%s405] sm:%s397] %v406
        %v408 = vld [vmem:[%s404 + $0x8] sm:%s397]
        %409 = vst [vmem:[%s405 + $0x4] sm:%s397] %v408
        %v410 = vld [vmem:[%s404 + $0x4] sm:%s397]
        %411 = vst [vmem:[%s405 + $0x8] sm:%s397] %v410
        %v412 = vld [vmem:[%s404 + $0xc] sm:%s397]
        %413 = vst [vmem:[%s405 + $0xc] sm:%s397] %v412
        %v414 = vld [vmem:[%s404 + $0x10] sm:%s397]
        %415 = vst [vmem:[%s405 + $0x10] sm:%s397] %v414
        %v416 = vld [vmem:[%s404 + $0x18] sm:%s397]
        %417 = vst [vmem:[%s405 + $0x14] sm:%s397] %v416
        %v418 = vld [vmem:[%s404 + $0x14] sm:%s397]
        %419 = vst [vmem:[%s405 + $0x18] sm:%s397] %v418
        %v420 = vld [vmem:[%s404 + $0x1c] sm:%s397]
        %421 = vst [vmem:[%s405 + $0x1c] sm:%s397] %v420
        %v422 = vld [vmem:[%s404 + $0x20] sm:%s397]
        %423 = vst [vmem:[%s405 + $0x20] sm:%s397] %v422
        %v424 = vld [vmem:[%s404 + $0x28] sm:%s397]
        %425 = vst [vmem:[%s405 + $0x24] sm:%s397] %v424
        %v426 = vld [vmem:[%s404 + $0x24] sm:%s397]
        %427 = vst [vmem:[%s405 + $0x28] sm:%s397] %v426
        %v428 = vld [vmem:[%s404 + $0x2c] sm:%s397]
        %429 = vst [vmem:[%s405 + $0x2c] sm:%s397] %v428
        %v430 = vld [vmem:[%s404 + $0x30] sm:%s397]
        %431 = vst [vmem:[%s405 + $0x30] sm:%s397] %v430
        %v432 = vld [vmem:[%s404 + $0x38] sm:%s397]
        %433 = vst [vmem:[%s405 + $0x34] sm:%s397] %v432
        %v434 = vld [vmem:[%s404 + $0x34] sm:%s397]
        %435 = vst [vmem:[%s405 + $0x38] sm:%s397] %v434
        %v436 = vld [vmem:[%s404 + $0x3c] sm:%s397]
        %437 = vst [vmem:[%s405 + $0x3c] sm:%s397] %v436
      $region63: #{rsnn_vit2_forward.1} parent=57 // loop_footer
        %s403 = sadd.s32 1, %s399
      $region64: #{rsnn_vit2_forward.1} parent=57 // loop_footer_branch
        %398 = sbr.rel target = $region60
      $region65: #{rsnn_vit2_forward.1} parent=57 // loop_exit
        _
    $region58: #{rsnn_vit2_forward.1} parent=1 // pred_fallthru
      _
    // Predicated region
    $region84: #{rsnn_vit2_forward.1} parent=1 // pred_check
      _
    $region85: #{rsnn_vit2_forward.1} parent=1 // pred_check_branch
      %499 = sbr.rel (0) target = $region87
    $region86: #{rsnn_vit2_forward.1} parent=1 // pred_region
      %500 = vsyncadd %s388, 1024
    $region87: #{rsnn_vit2_forward.1} parent=1 // pred_fallthru
      _
    %v501 = vld [vmem:[%s0] sm:$0xff]
    %v502 = vld [vmem:[%s0 + $0x8] sm:$0x3f]
    %v503 = vld [vmem:[%s1] sm:$0xf]
    %v504 = vld [vmem:[%s1 + $0x4] sm:$0xf]
    %v505 = vld [vmem:[%s1 + $0x8] sm:$0xf]
    %v506 = vld [vmem:[%s1 + $0xc] sm:$0xf]
    %v507 = vld [vmem:[%s1 + $0x10] sm:$0xf]
    %v508 = vld [vmem:[%s1 + $0x14] sm:$0xf]
    %v509 = vld [vmem:[%s1 + $0x18] sm:$0xf]
    %v510 = vld [vmem:[%s1 + $0x1c] sm:$0xf]
    %v511 = vld [vmem:[%s1 + $0x20] sm:$0xf]
    %v512 = vld [vmem:[%s1 + $0x24] sm:$0xf]
    %v513 = vld [vmem:[%s1 + $0x28] sm:$0xf]
    %v514 = vld [vmem:[%s1 + $0x2c] sm:$0xf]
    %v515 = vld [vmem:[%s1 + $0x30] sm:$0xf]
    %v516 = vld [vmem:[%s1 + $0x34] sm:$0xf]
    %v517 = vld [vmem:[%s1 + $0x38] sm:$0xf]
    %v518 = vld [vmem:[%s1 + $0x3c] sm:$0xf]
    %v519 = vld [vmem:[%s1 + $0x40] sm:$0xf]
    %v520 = vld [vmem:[%s1 + $0x44] sm:$0xf]
    %v521 = vld [vmem:[%s1 + $0x48] sm:$0xf]
    %v522 = vld [vmem:[%s1 + $0x4c] sm:$0xf]
    %v523 = vld [vmem:[%s1 + $0x50] sm:$0xf]
    %v524 = vld [vmem:[%s1 + $0x54] sm:$0xf]
    %v525 = vld [vmem:[%s1 + $0x58] sm:$0xf]
    %v526 = vld [vmem:[%s1 + $0x5c] sm:$0xf]
    %v527 = vld [vmem:[%s1 + $0x60] sm:$0xf]
    %v528 = vld [vmem:[%s1 + $0x64] sm:$0xf]
    %v529 = vld [vmem:[%s1 + $0x68] sm:$0xf]
    %v530 = vld [vmem:[%s1 + $0x6c] sm:$0xf]
    %v531 = vld [vmem:[%s1 + $0x70] sm:$0xf]
    %v532 = vld [vmem:[%s1 + $0x74] sm:$0xf]
    %v533 = vld [vmem:[%s1 + $0x78] sm:$0xf]
    %v534 = vld [vmem:[%s1 + $0x7c] sm:$0xf]
    %v535 = vld [vmem:[%s1 + $0x80] sm:$0xf]
    %v536 = vld [vmem:[%s1 + $0x84] sm:$0xf]
    %v537 = vld [vmem:[%s1 + $0x88] sm:$0xf]
    %v538 = vld [vmem:[%s1 + $0x8c] sm:$0xf]
    %v539 = vld [vmem:[%s1 + $0x90] sm:$0xf]
    %v540 = vld [vmem:[%s1 + $0x94] sm:$0xf]
    %v541 = vld [vmem:[%s1 + $0x98] sm:$0xf]
    %v542 = vld [vmem:[%s1 + $0x9c] sm:$0xf]
    %v543 = vld [vmem:[%s1 + $0xa0] sm:$0xf]
    %v544 = vld [vmem:[%s1 + $0xa4] sm:$0xf]
    %v545 = vld [vmem:[%s1 + $0xa8] sm:$0xf]
    %v546 = vld [vmem:[%s1 + $0xac] sm:$0xf]
    %v547 = vld [vmem:[%s1 + $0xb0] sm:$0xf]
    %v548 = vld [vmem:[%s1 + $0xb4] sm:$0xf]
    %v549 = vld [vmem:[%s1 + $0xb8] sm:$0xf]
    %v550 = vld [vmem:[%s1 + $0xbc] sm:$0xf]
    %v551 = vld [vmem:[%s1 + $0xc0] sm:$0xf]
    %v552 = vld [vmem:[%s1 + $0xc4] sm:$0xf]
    %v553 = vld [vmem:[%s1 + $0xc8] sm:$0xf]
    %v554 = vld [vmem:[%s1 + $0xcc] sm:$0xf]
    %v555 = vld [vmem:[%s1 + $0xd0] sm:$0xf]
    %v556 = vld [vmem:[%s1 + $0xd4] sm:$0xf]
    %v557 = vld [vmem:[%s1 + $0xd8] sm:$0xf]
    %v558 = vld [vmem:[%s1 + $0xdc] sm:$0xf]
    %v559 = vld [vmem:[%s1 + $0xe0] sm:$0xf]
    %v560 = vld [vmem:[%s1 + $0xe4] sm:$0xf]
    %v561 = vld [vmem:[%s1 + $0xe8] sm:$0xf]
    %v562 = vld [vmem:[%s1 + $0xec] sm:$0xf]
    %v563 = vld [vmem:[%s1 + $0xf0] sm:$0xf]
    %v564 = vld [vmem:[%s1 + $0xf4] sm:$0xf]
    %v565 = vld [vmem:[%s1 + $0xf8] sm:$0xf]
    %v566 = vld [vmem:[%s1 + $0xfc] sm:$0xf]
    %v567 = vld [vmem:[%s1 + $0x100] sm:$0xf]
    %v568 = vld [vmem:[%s1 + $0x104] sm:$0xf]
    %v569 = vld [vmem:[%s1 + $0x108] sm:$0xf]
    %v570 = vld [vmem:[%s1 + $0x10c] sm:$0xf]
    %v571 = vld [vmem:[%s1 + $0x110] sm:$0xf]
    %v572 = vld [vmem:[%s1 + $0x114] sm:$0xf]
    %v573 = vld [vmem:[%s1 + $0x118] sm:$0xf]
    %v574 = vld [vmem:[%s1 + $0x11c] sm:$0xf]
    %v575 = vld [vmem:[%s1 + $0x120] sm:$0xf]
    %v576 = vld [vmem:[%s1 + $0x124] sm:$0xf]
    %v577 = vld [vmem:[%s1 + $0x128] sm:$0xf]
    %v578 = vld [vmem:[%s1 + $0x12c] sm:$0xf]
    %v579 = vld [vmem:[%s1 + $0x130] sm:$0xf]
    %v580 = vld [vmem:[%s1 + $0x134] sm:$0xf]
    %v581 = vld [vmem:[%s1 + $0x138] sm:$0xf]
    %v582 = vld [vmem:[%s1 + $0x13c] sm:$0xf]
    %v583 = vld [vmem:[%s1 + $0x140] sm:$0xf]
    %v584 = vld [vmem:[%s1 + $0x144] sm:$0xf]
    %v585 = vld [vmem:[%s1 + $0x148] sm:$0xf]
    %v586 = vld [vmem:[%s1 + $0x14c] sm:$0xf]
    %v587 = vld [vmem:[%s1 + $0x150] sm:$0xf]
    %v588 = vld [vmem:[%s1 + $0x154] sm:$0xf]
    %v589 = vld [vmem:[%s1 + $0x158] sm:$0xf]
    %v590 = vld [vmem:[%s1 + $0x15c] sm:$0xf]
    %v591 = vld [vmem:[%s1 + $0x160] sm:$0xf]
    %v592 = vld [vmem:[%s1 + $0x164] sm:$0xf]
    %v593 = vld [vmem:[%s1 + $0x168] sm:$0xf]
    %v594 = vld [vmem:[%s1 + $0x16c] sm:$0xf]
    %v595 = vld [vmem:[%s1 + $0x170] sm:$0xf]
    %v596 = vld [vmem:[%s1 + $0x174] sm:$0xf]
    %v597 = vld [vmem:[%s1 + $0x178] sm:$0xf]
    %v598 = vld [vmem:[%s1 + $0x17c] sm:$0xf]
    %v599 = vld [vmem:[%s1 + $0x180] sm:$0xf]
    %v600 = vld [vmem:[%s1 + $0x184] sm:$0xf]
    %v603 = vcombine.high %v501, %v501
    %v605 = vunpack.c.l.s4 1983009808
    %v606 = vunpack.c.0.s8 %v605
    %v607 = vlaneseq
    %v608 = vshrl.u32 %v607, 7
    %v609 = vsub.s32 %v606, %v608
    %v610 = vrot.slane %v501, %v609
    %v612 = vunpack.c.l.s4 1983009808
    %v613 = vunpack.c.0.s8 %v612
    %v614 = vlaneseq
    %v615 = vshrl.u32 %v614, 7
    %v616 = vsub.s32 %v613, %v615
    %v617 = vrot.slane %v603, %v616
    %v618 = vcombine.high %v610, %v610
    %v619 = vcombine.high %v617, %v617
    %v620 = vcombine.high %v502, %v502
    %v622 = vunpack.c.l.s4 1983009808
    %v623 = vunpack.c.0.s8 %v622
    %v624 = vlaneseq
    %v625 = vshrl.u32 %v624, 7
    %v626 = vsub.s32 %v623, %v625
    %v627 = vrot.slane %v502, %v626
    %v629 = vunpack.c.l.s4 1983009808
    %v630 = vunpack.c.0.s8 %v629
    %v631 = vlaneseq
    %v632 = vshrl.u32 %v631, 7
    %v633 = vsub.s32 %v630, %v632
    %v634 = vrot.slane %v620, %v633
    %v635 = vcombine.high %v627, %v627
    %v643 = vpack.c.bf16 %v610, %v610
    %v644 = vpack.c.bf16 %v618, %v618
    %v645 = vpack.c.bf16 %v617, %v617
    %v646 = vpack.c.bf16 %v619, %v619
    %v647 = vpack.c.bf16 %v627, %v627
    %v648 = vpack.c.bf16 %v635, %v635
    %v649 = vpack.c.bf16 %v634, %v634
    %v650 = vld [vmem:[%s2] sm:$0x1]
    %v652 = vlaneseq
    %v653 = vshrl.u32 %v652, 7
    %v654 = vsub.s32 0, %v653
    %v655 = vrot.slane %v650, %v654
    %v755 = vunpack.c.l.b16 %v503
    %v756 = vunpack.c.l.b16 %v504
    %v757 = vunpack.c.l.b16 %v505
    %v758 = vunpack.c.l.b16 %v506
    %v759 = vunpack.c.l.b16 %v507
    %v760 = vunpack.c.l.b16 %v508
    %v761 = vunpack.c.l.b16 %v509
    %v762 = vunpack.c.l.b16 %v510
    %v763 = vunpack.c.l.b16 %v511
    %v764 = vunpack.c.l.b16 %v512
    %v765 = vunpack.c.l.b16 %v513
    %v766 = vunpack.c.l.b16 %v514
    %v767 = vunpack.c.l.b16 %v515
    %v768 = vunpack.c.l.b16 %v516
    %v769 = vunpack.c.l.b16 %v517
    %v770 = vunpack.c.l.b16 %v518
    %v771 = vunpack.c.l.b16 %v519
    %v772 = vunpack.c.l.b16 %v520
    %v773 = vunpack.c.l.b16 %v521
    %v774 = vunpack.c.l.b16 %v522
    %v775 = vunpack.c.l.b16 %v523
    %v776 = vunpack.c.l.b16 %v524
    %v777 = vunpack.c.l.b16 %v525
    %v778 = vunpack.c.l.b16 %v526
    %v779 = vunpack.c.l.b16 %v527
    %v780 = vunpack.c.l.b16 %v528
    %v781 = vunpack.c.l.b16 %v529
    %v782 = vunpack.c.l.b16 %v530
    %v783 = vunpack.c.l.b16 %v531
    %v784 = vunpack.c.l.b16 %v532
    %v785 = vunpack.c.l.b16 %v533
    %v786 = vunpack.c.l.b16 %v534
    %v787 = vunpack.c.l.b16 %v535
    %v788 = vunpack.c.l.b16 %v536
    %v789 = vunpack.c.l.b16 %v537
    %v790 = vunpack.c.l.b16 %v538
    %v791 = vunpack.c.l.b16 %v539
    %v792 = vunpack.c.l.b16 %v540
    %v793 = vunpack.c.l.b16 %v541
    %v794 = vunpack.c.l.b16 %v542
    %v795 = vunpack.c.l.b16 %v543
    %v796 = vunpack.c.l.b16 %v544
    %v797 = vunpack.c.l.b16 %v545
    %v798 = vunpack.c.l.b16 %v546
    %v799 = vunpack.c.l.b16 %v547
    %v800 = vunpack.c.l.b16 %v548
    %v801 = vunpack.c.l.b16 %v549
    %v802 = vunpack.c.l.b16 %v550
    %v803 = vunpack.c.l.b16 %v551
    %v804 = vunpack.c.l.b16 %v552
    %v805 = vunpack.c.l.b16 %v553
    %v806 = vunpack.c.l.b16 %v554
    %v807 = vunpack.c.l.b16 %v555
    %v808 = vunpack.c.l.b16 %v556
    %v809 = vunpack.c.l.b16 %v557
    %v810 = vunpack.c.l.b16 %v558
    %v811 = vunpack.c.l.b16 %v559
    %v812 = vunpack.c.l.b16 %v560
    %v813 = vunpack.c.l.b16 %v561
    %v814 = vunpack.c.l.b16 %v562
    %v815 = vunpack.c.l.b16 %v563
    %v816 = vunpack.c.l.b16 %v564
    %v817 = vunpack.c.l.b16 %v565
    %v818 = vunpack.c.l.b16 %v566
    %v819 = vunpack.c.l.b16 %v567
    %v820 = vunpack.c.l.b16 %v568
    %v821 = vunpack.c.l.b16 %v569
    %v822 = vunpack.c.l.b16 %v570
    %v823 = vunpack.c.l.b16 %v571
    %v824 = vunpack.c.l.b16 %v572
    %v825 = vunpack.c.l.b16 %v573
    %v826 = vunpack.c.l.b16 %v574
    %v827 = vunpack.c.l.b16 %v575
    %v828 = vunpack.c.l.b16 %v576
    %v829 = vunpack.c.l.b16 %v577
    %v830 = vunpack.c.l.b16 %v578
    %v831 = vunpack.c.l.b16 %v579
    %v832 = vunpack.c.l.b16 %v580
    %v833 = vunpack.c.l.b16 %v581
    %v834 = vunpack.c.l.b16 %v582
    %v835 = vunpack.c.l.b16 %v583
    %v836 = vunpack.c.l.b16 %v584
    %v837 = vunpack.c.l.b16 %v585
    %v838 = vunpack.c.l.b16 %v586
    %v839 = vunpack.c.l.b16 %v587
    %v840 = vunpack.c.l.b16 %v588
    %v841 = vunpack.c.l.b16 %v589
    %v842 = vunpack.c.l.b16 %v590
    %v843 = vunpack.c.l.b16 %v591
    %v844 = vunpack.c.l.b16 %v592
    %v845 = vunpack.c.l.b16 %v593
    %v846 = vunpack.c.l.b16 %v594
    %v847 = vunpack.c.l.b16 %v595
    %v848 = vunpack.c.l.b16 %v596
    %v849 = vunpack.c.l.b16 %v597
    %v850 = vunpack.c.l.b16 %v598
    %v851 = vunpack.c.l.b16 %v599
    %v852 = vunpack.c.l.b16 %v600
    %v853 = vpack.c.b16 %v756, %v755
    %v854 = vpack.c.b16 %v758, %v757
    %v855 = vpack.c.b16 %v760, %v759
    %v856 = vpack.c.b16 %v762, %v761
    %v857 = vpack.c.b16 %v764, %v763
    %v858 = vpack.c.b16 %v766, %v765
    %v859 = vpack.c.b16 %v768, %v767
    %v860 = vpack.c.b16 %v770, %v769
    %v861 = vpack.c.b16 %v772, %v771
    %v862 = vpack.c.b16 %v774, %v773
    %v863 = vpack.c.b16 %v776, %v775
    %v864 = vpack.c.b16 %v778, %v777
    %v865 = vpack.c.b16 %v780, %v779
    %v866 = vpack.c.b16 %v782, %v781
    %v867 = vpack.c.b16 %v784, %v783
    %v868 = vpack.c.b16 %v786, %v785
    %v869 = vpack.c.b16 %v788, %v787
    %v870 = vpack.c.b16 %v790, %v789
    %v871 = vpack.c.b16 %v792, %v791
    %v872 = vpack.c.b16 %v794, %v793
    %v873 = vpack.c.b16 %v796, %v795
    %v874 = vpack.c.b16 %v798, %v797
    %v875 = vpack.c.b16 %v800, %v799
    %v876 = vpack.c.b16 %v802, %v801
    %v877 = vpack.c.b16 %v804, %v803
    %v878 = vpack.c.b16 %v806, %v805
    %v879 = vpack.c.b16 %v808, %v807
    %v880 = vpack.c.b16 %v810, %v809
    %v881 = vpack.c.b16 %v812, %v811
    %v882 = vpack.c.b16 %v814, %v813
    %v883 = vpack.c.b16 %v816, %v815
    %v884 = vpack.c.b16 %v818, %v817
    %v885 = vpack.c.b16 %v820, %v819
    %v886 = vpack.c.b16 %v822, %v821
    %v887 = vpack.c.b16 %v824, %v823
    %v888 = vpack.c.b16 %v826, %v825
    %v889 = vpack.c.b16 %v828, %v827
    %v890 = vpack.c.b16 %v830, %v829
    %v891 = vpack.c.b16 %v832, %v831
    %v892 = vpack.c.b16 %v834, %v833
    %v893 = vpack.c.b16 %v836, %v835
    %v894 = vpack.c.b16 %v838, %v837
    %v895 = vpack.c.b16 %v840, %v839
    %v896 = vpack.c.b16 %v842, %v841
    %v897 = vpack.c.b16 %v844, %v843
    %v898 = vpack.c.b16 %v846, %v845
    %v899 = vpack.c.b16 %v848, %v847
    %v900 = vpack.c.b16 %v850, %v849
    %v901 = vpack.c.b16 %v852, %v851
    %vm951 = vcmask 130048
    %v953 = vsel %vm951, %v649, 0
    %955 = vmatprep.subr.bf16.mxu0 0
    %956 = vmatpush1.bf16.msra.mxu0 %v853
    %957 = vmatprep.subr.bf16.mxu0 0
    %958 = vmatpush1.bf16.msra.mxu0 %v854
    %959 = vmatprep.subr.bf16.mxu0 0
    %960 = vmatpush1.bf16.msra.mxu0 %v855
    %961 = vmatprep.subr.bf16.mxu0 0
    %962 = vmatpush1.bf16.msra.mxu0 %v856
    %963 = vmatprep.subr.bf16.mxu0 0
    %964 = vmatpush1.bf16.msra.mxu0 %v857
    %965 = vmatprep.subr.bf16.mxu0 0
    %966 = vmatpush1.bf16.msra.mxu0 %v858
    %967 = vmatprep.subr.bf16.mxu0 0
    %968 = vmatpush1.bf16.msra.mxu0 %v859
    %969 = vmatprep.subr.bf16.mxu0 0
    %970 = vmatpush1.bf16.msra.mxu0 %v860
    %971 = vmatprep.subr.bf16.mxu0 0
    %972 = vmatpush1.bf16.msra.mxu0 %v861
    %973 = vmatprep.subr.bf16.mxu0 0
    %974 = vmatpush1.bf16.msra.mxu0 %v862
    %975 = vmatprep.subr.bf16.mxu0 0
    %976 = vmatpush1.bf16.msra.mxu0 %v863
    %977 = vmatprep.subr.bf16.mxu0 0
    %978 = vmatpush1.bf16.msra.mxu0 %v864
    %979 = vmatprep.subr.bf16.mxu0 0
    %980 = vmatpush1.bf16.msra.mxu0 %v865
    %981 = vmatprep.subr.bf16.mxu0 0
    %982 = vmatpush1.bf16.msra.mxu0 %v866
    %983 = vmatprep.subr.bf16.mxu0 0
    %984 = vmatpush1.bf16.msra.mxu0 %v867
    %985 = vmatprep.subr.bf16.mxu0 0
    %986 = vmatpush1.bf16.msra.mxu0 %v868
    %987 = vmatprep.mubr.bf16.mxu0 %v644
    %988 = vmatmul.mubr.bf16.gmra.mrb[0].mxu0 %v643
    %v989 = vpop.f32.mrb[0].mxu0
    %v990 = vadd.f32 %v655, %v989
    %v991 = vpop.f32.mrb[0].mxu0
    %v992 = vpop.f32.mrb[0].mxu0
    %v993 = vpop.f32.mrb[0].mxu0
    %994 = vdwg.mxu0
    %995 = vmatprep.subr.bf16.mxu0 0
    %996 = vmatpush1.bf16.msra.mxu0 %v869
    %997 = vmatprep.subr.bf16.mxu0 0
    %998 = vmatpush1.bf16.msra.mxu0 %v870
    %999 = vmatprep.subr.bf16.mxu0 0
    %1000 = vmatpush1.bf16.msra.mxu0 %v871
    %1001 = vmatprep.subr.bf16.mxu0 0
    %1002 = vmatpush1.bf16.msra.mxu0 %v872
    %1003 = vmatprep.subr.bf16.mxu0 0
    %1004 = vmatpush1.bf16.msra.mxu0 %v873
    %1005 = vmatprep.subr.bf16.mxu0 0
    %1006 = vmatpush1.bf16.msra.mxu0 %v874
    %1007 = vmatprep.subr.bf16.mxu0 0
    %1008 = vmatpush1.bf16.msra.mxu0 %v875
    %1009 = vmatprep.subr.bf16.mxu0 0
    %1010 = vmatpush1.bf16.msra.mxu0 %v876
    %1011 = vmatprep.subr.bf16.mxu0 0
    %1012 = vmatpush1.bf16.msra.mxu0 %v877
    %1013 = vmatprep.subr.bf16.mxu0 0
    %1014 = vmatpush1.bf16.msra.mxu0 %v878
    %1015 = vmatprep.subr.bf16.mxu0 0
    %1016 = vmatpush1.bf16.msra.mxu0 %v879
    %1017 = vmatprep.subr.bf16.mxu0 0
    %1018 = vmatpush1.bf16.msra.mxu0 %v880
    %1019 = vmatprep.subr.bf16.mxu0 0
    %1020 = vmatpush1.bf16.msra.mxu0 %v881
    %1021 = vmatprep.subr.bf16.mxu0 0
    %1022 = vmatpush1.bf16.msra.mxu0 %v882
    %1023 = vmatprep.subr.bf16.mxu0 0
    %1024 = vmatpush1.bf16.msra.mxu0 %v883
    %1025 = vmatprep.subr.bf16.mxu0 0
    %1026 = vmatpush1.bf16.msra.mxu0 %v884
    %1027 = vmatprep.mubr.bf16.mxu0 %v646
    %1028 = vmatmul.mubr.bf16.gmra.mrb[0].mxu0 %v645
    %v1029 = vpop.f32.mrb[0].mxu0
    %v1030 = vadd.f32 %v990, %v1029
    %v1031 = vpop.f32.mrb[0].mxu0
    %v1032 = vpop.f32.mrb[0].mxu0
    %v1033 = vpop.f32.mrb[0].mxu0
    %1034 = vdwg.mxu0
    %1035 = vmatprep.subr.bf16.mxu0 0
    %1036 = vmatpush1.bf16.msra.mxu0 %v885
    %1037 = vmatprep.subr.bf16.mxu0 0
    %1038 = vmatpush1.bf16.msra.mxu0 %v886
    %1039 = vmatprep.subr.bf16.mxu0 0
    %1040 = vmatpush1.bf16.msra.mxu0 %v887
    %1041 = vmatprep.subr.bf16.mxu0 0
    %1042 = vmatpush1.bf16.msra.mxu0 %v888
    %1043 = vmatprep.subr.bf16.mxu0 0
    %1044 = vmatpush1.bf16.msra.mxu0 %v889
    %1045 = vmatprep.subr.bf16.mxu0 0
    %1046 = vmatpush1.bf16.msra.mxu0 %v890
    %1047 = vmatprep.subr.bf16.mxu0 0
    %1048 = vmatpush1.bf16.msra.mxu0 %v891
    %1049 = vmatprep.subr.bf16.mxu0 0
    %1050 = vmatpush1.bf16.msra.mxu0 %v892
    %1051 = vmatprep.subr.bf16.mxu0 0
    %1052 = vmatpush1.bf16.msra.mxu0 %v893
    %1053 = vmatprep.subr.bf16.mxu0 0
    %1054 = vmatpush1.bf16.msra.mxu0 %v894
    %1055 = vmatprep.subr.bf16.mxu0 0
    %1056 = vmatpush1.bf16.msra.mxu0 %v895
    %1057 = vmatprep.subr.bf16.mxu0 0
    %1058 = vmatpush1.bf16.msra.mxu0 %v896
    %1059 = vmatprep.subr.bf16.mxu0 0
    %1060 = vmatpush1.bf16.msra.mxu0 %v897
    %1061 = vmatprep.subr.bf16.mxu0 0
    %1062 = vmatpush1.bf16.msra.mxu0 %v898
    %1063 = vmatprep.subr.bf16.mxu0 0
    %1064 = vmatpush1.bf16.msra.mxu0 %v899
    %1065 = vmatprep.subr.bf16.mxu0 0
    %1066 = vmatpush1.bf16.msra.mxu0 %v900
    %1067 = vmatprep.mubr.bf16.mxu0 %v648
    %1068 = vmatmul.mubr.bf16.gmra.mrb[0].mxu0 %v647
    %v1069 = vpop.f32.mrb[0].mxu0
    %v1070 = vadd.f32 %v1030, %v1069
    %v1071 = vpop.f32.mrb[0].mxu0
    %v1072 = vpop.f32.mrb[0].mxu0
    %v1073 = vpop.f32.mrb[0].mxu0
    %1074 = vdwg.mxu0
    %1075 = vmatprep.subr.bf16.mxu0 0
    %1076 = vmatpush1.bf16.msra.mxu0 %v901
    %1077 = vmatprep.subr.bf16.mxu0 0
    %1078 = vmatpush1.bf16.msra.mxu0 0
    %1079 = vmatprep.subr.bf16.mxu0 0
    %1080 = vmatpush1.bf16.msra.mxu0 0
    %1081 = vmatprep.subr.bf16.mxu0 0
    %1082 = vmatpush1.bf16.msra.mxu0 0
    %1083 = vmatprep.subr.bf16.mxu0 0
    %1084 = vmatpush1.bf16.msra.mxu0 0
    %1085 = vmatprep.subr.bf16.mxu0 0
    %1086 = vmatpush1.bf16.msra.mxu0 0
    %1087 = vmatprep.subr.bf16.mxu0 0
    %1088 = vmatpush1.bf16.msra.mxu0 0
    %1089 = vmatprep.subr.bf16.mxu0 0
    %1090 = vmatpush1.bf16.msra.mxu0 0
    %1091 = vmatprep.subr.bf16.mxu0 0
    %1092 = vmatpush1.bf16.msra.mxu0 0
    %1093 = vmatprep.subr.bf16.mxu0 0
    %1094 = vmatpush1.bf16.msra.mxu0 0
    %1095 = vmatprep.subr.bf16.mxu0 0
    %1096 = vmatpush1.bf16.msra.mxu0 0
    %1097 = vmatprep.subr.bf16.mxu0 0
    %1098 = vmatpush1.bf16.msra.mxu0 0
    %1099 = vmatprep.subr.bf16.mxu0 0
    %1100 = vmatpush1.bf16.msra.mxu0 0
    %1101 = vmatprep.subr.bf16.mxu0 0
    %1102 = vmatpush1.bf16.msra.mxu0 0
    %1103 = vmatprep.subr.bf16.mxu0 0
    %1104 = vmatpush1.bf16.msra.mxu0 0
    %1105 = vmatprep.subr.bf16.mxu0 0
    %1106 = vmatpush1.bf16.msra.mxu0 0
    %1107 = vmatprep.mubr.bf16.mxu0 0
    %1108 = vmatmul.mubr.bf16.gmra.mrb[0].mxu0 %v953
    %v1109 = vpop.f32.mrb[0].mxu0
    %v1110 = vadd.f32 %v1070, %v1109
    %v1111 = vpop.f32.mrb[0].mxu0
    %v1112 = vpop.f32.mrb[0].mxu0
    %v1113 = vpop.f32.mrb[0].mxu0
    %1114 = vdwg.mxu0
    %s1115 = smul.u32 4, 16
    %s1116 = smul.u32 %s1115, 5
    %s1117 = sshll.u32 %s1116, 4
    %1118 = dma.done [#allocation4], %s1117
    %s1119 = smul.u32 4, 8
    %s1120 = smul.u32 %s1119, 2
    %s1121 = sshll.u32 %s1120, 4
    %1122 = dma.done %s388, %s1121
    %vm1123 = vcmp.gt.f32.partialorder 0.0, 0.5
    %v1124 = vsel %vm1123, 1, 0
    %v1125 = vcvt.s32.f32 %v1124
    %v1126 = vadd.f32 %v1110, 0.0
    %v1127 = vmul.f32 %v1125, 0.5
    %v1128 = vsub.f32 %v1126, %v1127
    %vm1129 = vcmp.gt.f32.partialorder %v1128, 0.5
    %v1130 = vsel %vm1129, 1, 0
    %v1131 = vcvt.s32.f32 %v1130
    %v1132 = vmul.f32 %v1128, 0.8
    %v1133 = vadd.f32 %v1132, %v1110
    %v1134 = vmul.f32 %v1131, 0.5
    %v1135 = vsub.f32 %v1133, %v1134
    %vm1136 = vcmp.gt.f32.partialorder %v1135, 0.5
    %v1137 = vld [vmem:[#allocation2] sm:$0xff]
    %v1138 = vld [vmem:[#allocation2 + $0x28] sm:$0xff]
    %v1139 = vld [vmem:[#allocation2 + $0x50] sm:$0xff]
    %v1140 = vld [vmem:[#allocation2 + $0x78] sm:$0xff]
    %v1141 = vld [vmem:[#allocation2 + $0xa0] sm:$0xff]
    %v1142 = vld [vmem:[#allocation2 + $0xc8] sm:$0xff]
    %v1143 = vld [vmem:[#allocation2 + $0xf0] sm:$0xff]
    %v1144 = vld [vmem:[#allocation2 + $0x118] sm:$0xff]
    %v1145 = vsel %vm1136, 1, 0
    %v1146 = vcvt.s32.f32 %v1145
    %v1147 = vpack.c.bf16 %v1146, %v1146
    %v1148 = vld [vmem:[%s2 + $0x1] sm:$0x1]
    %v1150 = vlaneseq
    %v1151 = vshrl.u32 %v1150, 7
    %v1152 = vsub.s32 0, %v1151
    %v1153 = vrot.slane %v1148, %v1152
    %1155 = vmatprep.subr.bf16.mxu0 0
    %1156 = vmatpush1.bf16.msra.mxu0 %v1137
    %1157 = vmatprep.subr.bf16.mxu0 0
    %1158 = vmatpush1.bf16.msra.mxu0 %v1138
    %1159 = vmatprep.subr.bf16.mxu0 0
    %1160 = vmatpush1.bf16.msra.mxu0 %v1139
    %1161 = vmatprep.subr.bf16.mxu0 0
    %1162 = vmatpush1.bf16.msra.mxu0 %v1140
    %1163 = vmatprep.subr.bf16.mxu0 0
    %1164 = vmatpush1.bf16.msra.mxu0 %v1141
    %1165 = vmatprep.subr.bf16.mxu0 0
    %1166 = vmatpush1.bf16.msra.mxu0 %v1142
    %1167 = vmatprep.subr.bf16.mxu0 0
    %1168 = vmatpush1.bf16.msra.mxu0 %v1143
    %1169 = vmatprep.subr.bf16.mxu0 0
    %1170 = vmatpush1.bf16.msra.mxu0 %v1144
    %1171 = vmatprep.subr.bf16.mxu0 0
    %1172 = vmatpush1.bf16.msra.mxu0 0
    %1173 = vmatprep.subr.bf16.mxu0 0
    %1174 = vmatpush1.bf16.msra.mxu0 0
    %1175 = vmatprep.subr.bf16.mxu0 0
    %1176 = vmatpush1.bf16.msra.mxu0 0
    %1177 = vmatprep.subr.bf16.mxu0 0
    %1178 = vmatpush1.bf16.msra.mxu0 0
    %1179 = vmatprep.subr.bf16.mxu0 0
    %1180 = vmatpush1.bf16.msra.mxu0 0
    %1181 = vmatprep.subr.bf16.mxu0 0
    %1182 = vmatpush1.bf16.msra.mxu0 0
    %1183 = vmatprep.subr.bf16.mxu0 0
    %1184 = vmatpush1.bf16.msra.mxu0 0
    %1185 = vmatprep.subr.bf16.mxu0 0
    %1186 = vmatpush1.bf16.msra.mxu0 0
    %1187 = vmatprep.mubr.bf16.mxu0 0
    %1188 = vmatmul.mubr.bf16.gmra.mrb[0].mxu0 %v1147
    %v1189 = vpop.f32.mrb[0].mxu0
    %v1190 = vadd.f32 %v1153, %v1189
    %v1191 = vpop.f32.mrb[0].mxu0
    %v1192 = vpop.f32.mrb[0].mxu0
    %v1193 = vpop.f32.mrb[0].mxu0
    %1194 = vdwg.mxu0
    %v1195 = vadd.f32 %v1190, 0.0
    %v1196 = vsub.f32 %v1195, %v1127
    %vm1197 = vcmp.gt.f32.partialorder %v1196, 0.5
    %v1198 = vld [vmem:[#allocation2 + $0x8] sm:$0xff]
    %v1199 = vld [vmem:[#allocation2 + $0x30] sm:$0xff]
    %v1200 = vld [vmem:[#allocation2 + $0x58] sm:$0xff]
    %v1201 = vld [vmem:[#allocation2 + $0x80] sm:$0xff]
    %v1202 = vld [vmem:[#allocation2 + $0xa8] sm:$0xff]
    %v1203 = vld [vmem:[#allocation2 + $0xd0] sm:$0xff]
    %v1204 = vld [vmem:[#allocation2 + $0xf8] sm:$0xff]
    %v1205 = vld [vmem:[#allocation2 + $0x120] sm:$0xff]
    %v1206 = vsel %vm1197, 1, 0
    %v1207 = vcvt.s32.f32 %v1206
    %v1208 = vpack.c.bf16 %v1207, %v1207
    %v1209 = vld [vmem:[%s2 + $0x2] sm:$0x1]
    %v1211 = vlaneseq
    %v1212 = vshrl.u32 %v1211, 7
    %v1213 = vsub.s32 0, %v1212
    %v1214 = vrot.slane %v1209, %v1213
    %1216 = vmatprep.subr.bf16.mxu0 0
    %1217 = vmatpush1.bf16.msra.mxu0 %v1198
    %1218 = vmatprep.subr.bf16.mxu0 0
    %1219 = vmatpush1.bf16.msra.mxu0 %v1199
    %1220 = vmatprep.subr.bf16.mxu0 0
    %1221 = vmatpush1.bf16.msra.mxu0 %v1200
    %1222 = vmatprep.subr.bf16.mxu0 0
    %1223 = vmatpush1.bf16.msra.mxu0 %v1201
    %1224 = vmatprep.subr.bf16.mxu0 0
    %1225 = vmatpush1.bf16.msra.mxu0 %v1202
    %1226 = vmatprep.subr.bf16.mxu0 0
    %1227 = vmatpush1.bf16.msra.mxu0 %v1203
    %1228 = vmatprep.subr.bf16.mxu0 0
    %1229 = vmatpush1.bf16.msra.mxu0 %v1204
    %1230 = vmatprep.subr.bf16.mxu0 0
    %1231 = vmatpush1.bf16.msra.mxu0 %v1205
    %1232 = vmatprep.subr.bf16.mxu0 0
    %1233 = vmatpush1.bf16.msra.mxu0 0
    %1234 = vmatprep.subr.bf16.mxu0 0
    %1235 = vmatpush1.bf16.msra.mxu0 0
    %1236 = vmatprep.subr.bf16.mxu0 0
    %1237 = vmatpush1.bf16.msra.mxu0 0
    %1238 = vmatprep.subr.bf16.mxu0 0
    %1239 = vmatpush1.bf16.msra.mxu0 0
    %1240 = vmatprep.subr.bf16.mxu0 0
    %1241 = vmatpush1.bf16.msra.mxu0 0
    %1242 = vmatprep.subr.bf16.mxu0 0
    %1243 = vmatpush1.bf16.msra.mxu0 0
    %1244 = vmatprep.subr.bf16.mxu0 0
    %1245 = vmatpush1.bf16.msra.mxu0 0
    %1246 = vmatprep.subr.bf16.mxu0 0
    %1247 = vmatpush1.bf16.msra.mxu0 0
    %1248 = vmatprep.mubr.bf16.mxu0 0
    %1249 = vmatmul.mubr.bf16.gmra.mrb[0].mxu0 %v1208
    %v1250 = vpop.f32.mrb[0].mxu0
    %v1251 = vadd.f32 %v1214, %v1250
    %v1252 = vpop.f32.mrb[0].mxu0
    %v1253 = vpop.f32.mrb[0].mxu0
    %v1254 = vpop.f32.mrb[0].mxu0
    %1255 = vdwg.mxu0
    %v1256 = vadd.f32 %v1251, 0.0
    %v1257 = vsub.f32 %v1256, %v1127
    %vm1258 = vcmp.gt.f32.partialorder %v1257, 0.5
    %v1259 = vsel %vm1258, 1, 0
    %v1260 = vcvt.s32.f32 %v1259
    %v1261 = vld [vmem:[#allocation2 + $0x20] sm:$0xff]
    %v1262 = vld [vmem:[#allocation2 + $0x48] sm:$0xff]
    %v1263 = vld [vmem:[#allocation2 + $0x70] sm:$0xff]
    %v1264 = vld [vmem:[#allocation2 + $0x98] sm:$0xff]
    %v1265 = vld [vmem:[#allocation2 + $0xc0] sm:$0xff]
    %v1266 = vld [vmem:[#allocation2 + $0xe8] sm:$0xff]
    %v1267 = vld [vmem:[#allocation2 + $0x110] sm:$0xff]
    %v1268 = vld [vmem:[#allocation2 + $0x138] sm:$0xff]
    %v1269 = vpack.c.bf16 %v1131, %v1131
    %v1270 = vld [vmem:[%s2 + $0x3] sm:$0x1]
    %v1272 = vlaneseq
    %v1273 = vshrl.u32 %v1272, 7
    %v1274 = vsub.s32 0, %v1273
    %v1275 = vrot.slane %v1270, %v1274
    %1277 = vmatprep.subr.bf16.mxu0 0
    %1278 = vmatpush1.bf16.msra.mxu0 %v1261
    %1279 = vmatprep.subr.bf16.mxu0 0
    %1280 = vmatpush1.bf16.msra.mxu0 %v1262
    %1281 = vmatprep.subr.bf16.mxu0 0
    %1282 = vmatpush1.bf16.msra.mxu0 %v1263
    %1283 = vmatprep.subr.bf16.mxu0 0
    %1284 = vmatpush1.bf16.msra.mxu0 %v1264
    %1285 = vmatprep.subr.bf16.mxu0 0
    %1286 = vmatpush1.bf16.msra.mxu0 %v1265
    %1287 = vmatprep.subr.bf16.mxu0 0
    %1288 = vmatpush1.bf16.msra.mxu0 %v1266
    %1289 = vmatprep.subr.bf16.mxu0 0
    %1290 = vmatpush1.bf16.msra.mxu0 %v1267
    %1291 = vmatprep.subr.bf16.mxu0 0
    %1292 = vmatpush1.bf16.msra.mxu0 %v1268
    %1293 = vmatprep.subr.bf16.mxu0 0
    %1294 = vmatpush1.bf16.msra.mxu0 0
    %1295 = vmatprep.subr.bf16.mxu0 0
    %1296 = vmatpush1.bf16.msra.mxu0 0
    %1297 = vmatprep.subr.bf16.mxu0 0
    %1298 = vmatpush1.bf16.msra.mxu0 0
    %1299 = vmatprep.subr.bf16.mxu0 0
    %1300 = vmatpush1.bf16.msra.mxu0 0
    %1301 = vmatprep.subr.bf16.mxu0 0
    %1302 = vmatpush1.bf16.msra.mxu0 0
    %1303 = vmatprep.subr.bf16.mxu0 0
    %1304 = vmatpush1.bf16.msra.mxu0 0
    %1305 = vmatprep.subr.bf16.mxu0 0
    %1306 = vmatpush1.bf16.msra.mxu0 0
    %1307 = vmatprep.subr.bf16.mxu0 0
    %1308 = vmatpush1.bf16.msra.mxu0 0
    %1309 = vmatprep.mubr.bf16.mxu0 0
    %1310 = vmatmul.mubr.bf16.gmra.mrb[0].mxu0 %v1269
    %v1311 = vpop.f32.mrb[0].mxu0
    %v1312 = vadd.f32 %v1275, %v1311
    %v1313 = vpop.f32.mrb[0].mxu0
    %v1314 = vpop.f32.mrb[0].mxu0
    %v1315 = vpop.f32.mrb[0].mxu0
    %1316 = vdwg.mxu0
    %v1317 = vld [vmem:[#allocation3 + $0x8] sm:$0xff]
    %v1318 = vld [vmem:[#allocation3 + $0x18] sm:$0xff]
    %v1319 = vld [vmem:[#allocation3 + $0x28] sm:$0xff]
    %v1320 = vld [vmem:[#allocation3 + $0x38] sm:$0xff]
    %v1321 = vld [vmem:[%s2 + $0x4] sm:$0x1]
    %v1323 = vlaneseq
    %v1324 = vshrl.u32 %v1323, 7
    %v1325 = vsub.s32 0, %v1324
    %v1326 = vrot.slane %v1321, %v1325
    %1327 = vrot.lane.b32.xlu0 %v1326, 64
    %v1328 = vpop.permute.xlu0 %1327
    %vm1330 = vcmask 523264
    %v1332 = vsel %vm1330, 0, 0
    %1334 = vmatprep.subr.bf16.mxu0 0
    %1335 = vmatpush1.bf16.msra.mxu0 %v1317
    %1336 = vmatprep.subr.bf16.mxu0 0
    %1337 = vmatpush1.bf16.msra.mxu0 %v1318
    %1338 = vmatprep.subr.bf16.mxu0 0
    %1339 = vmatpush1.bf16.msra.mxu0 %v1319
    %1340 = vmatprep.subr.bf16.mxu0 0
    %1341 = vmatpush1.bf16.msra.mxu0 %v1320
    %1342 = vmatprep.subr.bf16.mxu0 0
    %1343 = vmatpush1.bf16.msra.mxu0 0
    %1344 = vmatprep.subr.bf16.mxu0 0
    %1345 = vmatpush1.bf16.msra.mxu0 0
    %1346 = vmatprep.subr.bf16.mxu0 0
    %1347 = vmatpush1.bf16.msra.mxu0 0
    %1348 = vmatprep.subr.bf16.mxu0 0
    %1349 = vmatpush1.bf16.msra.mxu0 0
    %1350 = vmatprep.subr.bf16.mxu0 0
    %1351 = vmatpush1.bf16.msra.mxu0 0
    %1352 = vmatprep.subr.bf16.mxu0 0
    %1353 = vmatpush1.bf16.msra.mxu0 0
    %1354 = vmatprep.subr.bf16.mxu0 0
    %1355 = vmatpush1.bf16.msra.mxu0 0
    %1356 = vmatprep.subr.bf16.mxu0 0
    %1357 = vmatpush1.bf16.msra.mxu0 0
    %1358 = vmatprep.subr.bf16.mxu0 0
    %1359 = vmatpush1.bf16.msra.mxu0 0
    %1360 = vmatprep.subr.bf16.mxu0 0
    %1361 = vmatpush1.bf16.msra.mxu0 0
    %1362 = vmatprep.subr.bf16.mxu0 0
    %1363 = vmatpush1.bf16.msra.mxu0 0
    %1364 = vmatprep.subr.bf16.mxu0 0
    %1365 = vmatpush1.bf16.msra.mxu0 0
    %1366 = vmatprep.mubr.bf16.mxu0 0
    %1367 = vmatmul.mubr.bf16.gmra.mrb[0].mxu0 %v1332
    %v1368 = vpop.f32.mrb[0].mxu0
    %v1369 = vadd.f32 %v1328, %v1368
    %v1370 = vpop.f32.mrb[0].mxu0
    %v1371 = vpop.f32.mrb[0].mxu0
    %v1372 = vpop.f32.mrb[0].mxu0
    %1373 = vdwg.mxu0
    %vm1374 = vcmp.gt.f32.partialorder 0.0, 1.0
    %v1375 = vsel %vm1374, 1, 0
    %v1376 = vcvt.s32.f32 %v1375
    %v1377 = vadd.f32 %v1312, 0.0
    %v1378 = vadd.f32 %v1377, %v1369
    %v1379 = vsub.f32 %v1378, %v1376
    %vm1380 = vcmp.gt.f32.partialorder %v1379, 1.0
    %v1381 = vsel %vm1380, 1, 0
    %v1382 = vcvt.s32.f32 %v1381
    %v1383 = vld [vmem:[#allocation3] sm:$0xff]
    %v1384 = vld [vmem:[#allocation3 + $0x10] sm:$0xff]
    %v1385 = vld [vmem:[#allocation3 + $0x20] sm:$0xff]
    %v1386 = vld [vmem:[#allocation3 + $0x30] sm:$0xff]
    %v1387 = vpack.c.bf16 %v1382, %v1382
    %v1388 = vld [vmem:[%s2 + $0x3] sm:$0x3]
    %v1390 = vlaneseq
    %v1391 = vshrl.u32 %v1390, 7
    %v1392 = vsub.s32 0, %v1391
    %v1393 = vrot.slane %v1388, %v1392
    %v1394 = vlaneseq
    %v1395 = vshrl.u32 %v1394, 7
    %v1396 = vsub.s32 1, %v1395
    %v1397 = vrot.slane %v1388, %v1396
    %1398 = vrot.lane.b32.xlu0 %v1393, 64
    %v1399 = vpop.permute.xlu0 %1398
    %1400 = vrot.lane.b32.xlu0 %v1397, 64
    %v1401 = vpop.permute.xlu0 %1400
    %v1402 = vsel %vm1330, %v1399, %v1401
    %v1405 = vsel %vm1330, %v1387, 0
    %1407 = vmatprep.subr.bf16.mxu0 0
    %1408 = vmatpush1.bf16.msra.mxu0 %v1383
    %1409 = vmatprep.subr.bf16.mxu0 0
    %1410 = vmatpush1.bf16.msra.mxu0 %v1384
    %1411 = vmatprep.subr.bf16.mxu0 0
    %1412 = vmatpush1.bf16.msra.mxu0 %v1385
    %1413 = vmatprep.subr.bf16.mxu0 0
    %1414 = vmatpush1.bf16.msra.mxu0 %v1386
    %1415 = vmatprep.subr.bf16.mxu0 0
    %1416 = vmatpush1.bf16.msra.mxu0 0
    %1417 = vmatprep.subr.bf16.mxu0 0
    %1418 = vmatpush1.bf16.msra.mxu0 0
    %1419 = vmatprep.subr.bf16.mxu0 0
    %1420 = vmatpush1.bf16.msra.mxu0 0
    %1421 = vmatprep.subr.bf16.mxu0 0
    %1422 = vmatpush1.bf16.msra.mxu0 0
    %1423 = vmatprep.subr.bf16.mxu0 0
    %1424 = vmatpush1.bf16.msra.mxu0 0
    %1425 = vmatprep.subr.bf16.mxu0 0
    %1426 = vmatpush1.bf16.msra.mxu0 0
    %1427 = vmatprep.subr.bf16.mxu0 0
    %1428 = vmatpush1.bf16.msra.mxu0 0
    %1429 = vmatprep.subr.bf16.mxu0 0
    %1430 = vmatpush1.bf16.msra.mxu0 0
    %1431 = vmatprep.subr.bf16.mxu0 0
    %1432 = vmatpush1.bf16.msra.mxu0 0
    %1433 = vmatprep.subr.bf16.mxu0 0
    %1434 = vmatpush1.bf16.msra.mxu0 0
    %1435 = vmatprep.subr.bf16.mxu0 0
    %1436 = vmatpush1.bf16.msra.mxu0 0
    %1437 = vmatprep.subr.bf16.mxu0 0
    %1438 = vmatpush1.bf16.msra.mxu0 0
    %1439 = vmatprep.mubr.bf16.mxu0 0
    %1440 = vmatmul.mubr.bf16.gmra.mrb[0].mxu0 %v1405
    %v1441 = vpop.f32.mrb[0].mxu0
    %v1442 = vadd.f32 %v1402, %v1441
    %v1443 = vpop.f32.mrb[0].mxu0
    %v1444 = vpop.f32.mrb[0].mxu0
    %v1445 = vpop.f32.mrb[0].mxu0
    %1446 = vdwg.mxu0
    %v1447 = vld [vmem:[#allocation2 + $0x10] sm:$0xff]
    %v1448 = vld [vmem:[#allocation2 + $0x18] sm:$0xff]
    %v1449 = vld [vmem:[#allocation2 + $0x38] sm:$0xff]
    %v1450 = vld [vmem:[#allocation2 + $0x40] sm:$0xff]
    %v1451 = vld [vmem:[#allocation2 + $0x60] sm:$0xff]
    %v1452 = vld [vmem:[#allocation2 + $0x68] sm:$0xff]
    %v1453 = vld [vmem:[#allocation2 + $0x88] sm:$0xff]
    %v1454 = vld [vmem:[#allocation2 + $0x90] sm:$0xff]
    %v1455 = vld [vmem:[#allocation2 + $0xb0] sm:$0xff]
    %v1456 = vld [vmem:[#allocation2 + $0xb8] sm:$0xff]
    %v1457 = vld [vmem:[#allocation2 + $0xd8] sm:$0xff]
    %v1458 = vld [vmem:[#allocation2 + $0xe0] sm:$0xff]
    %v1459 = vld [vmem:[#allocation2 + $0x100] sm:$0xff]
    %v1460 = vld [vmem:[#allocation2 + $0x108] sm:$0xff]
    %v1461 = vld [vmem:[#allocation2 + $0x128] sm:$0xff]
    %v1462 = vld [vmem:[#allocation2 + $0x130] sm:$0xff]
    %v1463 = vpack.c.bf16 %v1260, %v1260
    %v1464 = vld [vmem:[%s2 + $0x5] sm:$0x3]
    %v1466 = vlaneseq
    %v1467 = vshrl.u32 %v1466, 7
    %v1468 = vsub.s32 0, %v1467
    %v1469 = vrot.slane %v1464, %v1468
    %v1470 = vlaneseq
    %v1471 = vshrl.u32 %v1470, 7
    %v1472 = vsub.s32 1, %v1471
    %v1473 = vrot.slane %v1464, %v1472
    %1476 = vmatprep.subr.bf16.mxu0 %v1448
    %1477 = vmatpush1.bf16.msra.mxu0 %v1447
    %1478 = vmatprep.subr.bf16.mxu0 %v1450
    %1479 = vmatpush1.bf16.msra.mxu0 %v1449
    %1480 = vmatprep.subr.bf16.mxu0 %v1452
    %1481 = vmatpush1.bf16.msra.mxu0 %v1451
    %1482 = vmatprep.subr.bf16.mxu0 %v1454
    %1483 = vmatpush1.bf16.msra.mxu0 %v1453
    %1484 = vmatprep.subr.bf16.mxu0 %v1456
    %1485 = vmatpush1.bf16.msra.mxu0 %v1455
    %1486 = vmatprep.subr.bf16.mxu0 %v1458
    %1487 = vmatpush1.bf16.msra.mxu0 %v1457
    %1488 = vmatprep.subr.bf16.mxu0 %v1460
    %1489 = vmatpush1.bf16.msra.mxu0 %v1459
    %1490 = vmatprep.subr.bf16.mxu0 %v1462
    %1491 = vmatpush1.bf16.msra.mxu0 %v1461
    %1492 = vmatprep.subr.bf16.mxu0 0
    %1493 = vmatpush1.bf16.msra.mxu0 0
    %1494 = vmatprep.subr.bf16.mxu0 0
    %1495 = vmatpush1.bf16.msra.mxu0 0
    %1496 = vmatprep.subr.bf16.mxu0 0
    %1497 = vmatpush1.bf16.msra.mxu0 0
    %1498 = vmatprep.subr.bf16.mxu0 0
    %1499 = vmatpush1.bf16.msra.mxu0 0
    %1500 = vmatprep.subr.bf16.mxu0 0
    %1501 = vmatpush1.bf16.msra.mxu0 0
    %1502 = vmatprep.subr.bf16.mxu0 0
    %1503 = vmatpush1.bf16.msra.mxu0 0
    %1504 = vmatprep.subr.bf16.mxu0 0
    %1505 = vmatpush1.bf16.msra.mxu0 0
    %1506 = vmatprep.subr.bf16.mxu0 0
    %1507 = vmatpush1.bf16.msra.mxu0 0
    %1508 = vmatprep.mubr.bf16.mxu0 0
    %1509 = vmatmul.mubr.bf16.gmra.mrb[0].mxu0 %v1463
    %v1510 = vpop.f32.mrb[0].mxu0
    %v1511 = vadd.f32 %v1469, %v1510
    %v1512 = vpop.f32.mrb[0].mxu0
    %v1513 = vadd.f32 %v1473, %v1512
    %v1514 = vpop.f32.mrb[0].mxu0
    %v1515 = vpop.f32.mrb[0].mxu0
    %1516 = vdwg.mxu0
    %vm1517 = vcmask 1041408
    %v1518 = vsel %vm1517, %v1511, -inf
    %1519 = vmax.xlane.f32.xlu0 %v1518
    %v1520 = vpop.xlane.xlu0 %1519
    %v1521 = vsel %vm1517, %v1511, inf
    %1522 = vmin.xlane.f32.xlu0 %v1521
    %v1523 = vpop.xlane.xlu0 %1522
    %v1524 = vmul.f32 %v1442, %v1520
    %v1525 = vmul.f32 %v1442, %v1523
    %v1526 = vmax.f32 %v1524, %v1525
    %v1529 = vunpack.c.l.s4 1966171168
    %v1530 = vunpack.c.0.s8 %v1529
    %v1531 = vlaneseq
    %v1532 = vshrl.u32 %v1531, 7
    %v1533 = vsub.s32 %v1530, %v1532
    %v1534 = vrot.slane %v1442, %v1533
    %v1535 = vcombine.high %v1534, %v1534
    %v1537 = vunpack.c.l.s4 1966171168
    %v1538 = vunpack.c.0.s8 %v1537
    %v1539 = vlaneseq
    %v1540 = vshrl.u32 %v1539, 7
    %v1541 = vsub.s32 %v1538, %v1540
    %v1542 = vrot.slane %v1534, %v1541
    %v1544 = vunpack.c.l.s4 1966171168
    %v1545 = vunpack.c.0.s8 %v1544
    %v1546 = vlaneseq
    %v1547 = vshrl.u32 %v1546, 7
    %v1548 = vsub.s32 %v1545, %v1547
    %v1549 = vrot.slane %v1535, %v1548
    %v1550 = vlaneseq
    %v1551 = vshrl.u32 %v1550, 7
    %v1552 = vsub.s32 0, %v1551
    %v1553 = vrot.slane %v1511, %v1552
    %1555 = vbcast.lane.b32.xlu0 %v1553, 256
    %v1556 = vpop.permute.xlu0 %1555
    %s1558 = sor.u32 256, 8
    %1559 = vbcast.lane.b32.xlu0 %v1553, %s1558
    %v1560 = vpop.permute.xlu0 %1559
    %s1562 = sor.u32 256, 16
    %1563 = vbcast.lane.b32.xlu0 %v1553, %s1562
    %v1564 = vpop.permute.xlu0 %1563
    %s1566 = sor.u32 256, 24
    %1567 = vbcast.lane.b32.xlu0 %v1553, %s1566
    %v1568 = vpop.permute.xlu0 %1567
    %s1570 = sor.u32 256, 32
    %1571 = vbcast.lane.b32.xlu0 %v1553, %s1570
    %v1572 = vpop.permute.xlu0 %1571
    %s1574 = sor.u32 256, 40
    %1575 = vbcast.lane.b32.xlu0 %v1553, %s1574
    %v1576 = vpop.permute.xlu0 %1575
    %s1578 = sor.u32 256, 48
    %1579 = vbcast.lane.b32.xlu0 %v1553, %s1578
    %v1580 = vpop.permute.xlu0 %1579
    %s1582 = sor.u32 256, 56
    %1583 = vbcast.lane.b32.xlu0 %v1553, %s1582
    %v1584 = vpop.permute.xlu0 %1583
    %s1586 = sor.u32 256, 64
    %1587 = vbcast.lane.b32.xlu0 %v1553, %s1586
    %v1588 = vpop.permute.xlu0 %1587
    %s1590 = sor.u32 256, 72
    %1591 = vbcast.lane.b32.xlu0 %v1553, %s1590
    %v1592 = vpop.permute.xlu0 %1591
    %s1594 = sor.u32 256, 80
    %1595 = vbcast.lane.b32.xlu0 %v1553, %s1594
    %v1596 = vpop.permute.xlu0 %1595
    %s1598 = sor.u32 256, 88
    %1599 = vbcast.lane.b32.xlu0 %v1553, %s1598
    %v1600 = vpop.permute.xlu0 %1599
    %s1602 = sor.u32 256, 96
    %1603 = vbcast.lane.b32.xlu0 %v1553, %s1602
    %v1604 = vpop.permute.xlu0 %1603
    %s1606 = sor.u32 256, 104
    %1607 = vbcast.lane.b32.xlu0 %v1553, %s1606
    %v1608 = vpop.permute.xlu0 %1607
    %s1610 = sor.u32 256, 112
    %1611 = vbcast.lane.b32.xlu0 %v1553, %s1610
    %v1612 = vpop.permute.xlu0 %1611
    %s1614 = sor.u32 256, 120
    %1615 = vbcast.lane.b32.xlu0 %v1553, %s1614
    %v1616 = vpop.permute.xlu0 %1615
    %v1617 = vlaneseq
    %v1618 = vshrl.u32 %v1617, 7
    %v1619 = vsub.s32 1, %v1618
    %v1620 = vrot.slane %v1511, %v1619
    %1622 = vbcast.lane.b32.xlu0 %v1620, 256
    %v1623 = vpop.permute.xlu0 %1622
    %s1625 = sor.u32 256, 8
    %1626 = vbcast.lane.b32.xlu0 %v1620, %s1625
    %v1627 = vpop.permute.xlu0 %1626
    %s1629 = sor.u32 256, 16
    %1630 = vbcast.lane.b32.xlu0 %v1620, %s1629
    %v1631 = vpop.permute.xlu0 %1630
    %s1633 = sor.u32 256, 24
    %1634 = vbcast.lane.b32.xlu0 %v1620, %s1633
    %v1635 = vpop.permute.xlu0 %1634
    %s1637 = sor.u32 256, 32
    %1638 = vbcast.lane.b32.xlu0 %v1620, %s1637
    %v1639 = vpop.permute.xlu0 %1638
    %s1641 = sor.u32 256, 40
    %1642 = vbcast.lane.b32.xlu0 %v1620, %s1641
    %v1643 = vpop.permute.xlu0 %1642
    %s1645 = sor.u32 256, 48
    %1646 = vbcast.lane.b32.xlu0 %v1620, %s1645
    %v1647 = vpop.permute.xlu0 %1646
    %s1649 = sor.u32 256, 56
    %1650 = vbcast.lane.b32.xlu0 %v1620, %s1649
    %v1651 = vpop.permute.xlu0 %1650
    %s1653 = sor.u32 256, 64
    %1654 = vbcast.lane.b32.xlu0 %v1620, %s1653
    %v1655 = vpop.permute.xlu0 %1654
    %s1657 = sor.u32 256, 72
    %1658 = vbcast.lane.b32.xlu0 %v1620, %s1657
    %v1659 = vpop.permute.xlu0 %1658
    %s1661 = sor.u32 256, 80
    %1662 = vbcast.lane.b32.xlu0 %v1620, %s1661
    %v1663 = vpop.permute.xlu0 %1662
    %s1665 = sor.u32 256, 88
    %1666 = vbcast.lane.b32.xlu0 %v1620, %s1665
    %v1667 = vpop.permute.xlu0 %1666
    %s1669 = sor.u32 256, 96
    %1670 = vbcast.lane.b32.xlu0 %v1620, %s1669
    %v1671 = vpop.permute.xlu0 %1670
    %s1673 = sor.u32 256, 104
    %1674 = vbcast.lane.b32.xlu0 %v1620, %s1673
    %v1675 = vpop.permute.xlu0 %1674
    %s1677 = sor.u32 256, 112
    %1678 = vbcast.lane.b32.xlu0 %v1620, %s1677
    %v1679 = vpop.permute.xlu0 %1678
    %s1681 = sor.u32 256, 120
    %1682 = vbcast.lane.b32.xlu0 %v1620, %s1681
    %v1683 = vpop.permute.xlu0 %1682
    %v1684 = vlaneseq
    %v1685 = vshrl.u32 %v1684, 7
    %v1686 = vsub.s32 0, %v1685
    %v1687 = vrot.slane %v1542, %v1686
    %v1688 = vlaneseq
    %v1689 = vshrl.u32 %v1688, 7
    %v1690 = vsub.s32 0, %v1689
    %v1691 = vrot.slane %v1549, %v1690
    %v1694 = vmul.f32 %v1687, %v1556
    %v1695 = vmul.f32 %v1687, %v1560
    %v1696 = vmul.f32 %v1687, %v1564
    %v1697 = vmul.f32 %v1687, %v1568
    %v1698 = vmul.f32 %v1687, %v1572
    %v1699 = vmul.f32 %v1687, %v1576
    %v1700 = vmul.f32 %v1687, %v1580
    %v1701 = vmul.f32 %v1687, %v1584
    %v1702 = vmul.f32 %v1687, %v1588
    %v1703 = vmul.f32 %v1687, %v1592
    %v1704 = vmul.f32 %v1687, %v1596
    %v1705 = vmul.f32 %v1687, %v1600
    %v1706 = vmul.f32 %v1687, %v1604
    %v1707 = vmul.f32 %v1687, %v1608
    %v1708 = vmul.f32 %v1687, %v1612
    %v1709 = vmul.f32 %v1687, %v1616
    %v1710 = vmul.f32 %v1691, %v1623
    %v1711 = vmul.f32 %v1691, %v1627
    %v1712 = vmul.f32 %v1691, %v1631
    %v1713 = vmul.f32 %v1691, %v1635
    %v1714 = vmul.f32 %v1691, %v1639
    %v1715 = vmul.f32 %v1691, %v1643
    %v1716 = vmul.f32 %v1691, %v1647
    %v1717 = vmul.f32 %v1691, %v1651
    %v1718 = vmul.f32 %v1691, %v1655
    %v1719 = vmul.f32 %v1691, %v1659
    %v1720 = vmul.f32 %v1691, %v1663
    %v1721 = vmul.f32 %v1691, %v1667
    %v1722 = vmul.f32 %v1691, %v1671
    %v1723 = vmul.f32 %v1691, %v1675
    %v1724 = vmul.f32 %v1691, %v1679
    %v1725 = vmul.f32 %v1691, %v1683
    %v1728 = vunpack.c.l.s4 1966171168
    %v1729 = vunpack.c.0.s8 %v1728
    %v1730 = vlaneseq
    %v1731 = vshrl.u32 %v1730, 7
    %v1732 = vsub.s32 %v1729, %v1731
    %v1733 = vrot.slane %v1526, %v1732
    %v1734 = vcombine.high %v1733, %v1733
    %v1736 = vunpack.c.l.s4 1966171168
    %v1737 = vunpack.c.0.s8 %v1736
    %v1738 = vlaneseq
    %v1739 = vshrl.u32 %v1738, 7
    %v1740 = vsub.s32 %v1737, %v1739
    %v1741 = vrot.slane %v1733, %v1740
    %v1743 = vunpack.c.l.s4 1966171168
    %v1744 = vunpack.c.0.s8 %v1743
    %v1745 = vlaneseq
    %v1746 = vshrl.u32 %v1745, 7
    %v1747 = vsub.s32 %v1744, %v1746
    %v1748 = vrot.slane %v1734, %v1747
    %v1749 = vlaneseq
    %v1750 = vshrl.u32 %v1749, 7
    %v1751 = vsub.s32 0, %v1750
    %v1752 = vrot.slane %v1741, %v1751
    %v1753 = vlaneseq
    %v1754 = vshrl.u32 %v1753, 7
    %v1755 = vsub.s32 0, %v1754
    %v1756 = vrot.slane %v1748, %v1755
    %v1759 = vsub.f32 %v1694, %v1752
    %v1760 = vsub.f32 %v1695, %v1752
    %v1761 = vsub.f32 %v1696, %v1752
    %v1762 = vsub.f32 %v1697, %v1752
    %v1763 = vsub.f32 %v1698, %v1752
    %v1764 = vsub.f32 %v1699, %v1752
    %v1765 = vsub.f32 %v1700, %v1752
    %v1766 = vsub.f32 %v1701, %v1752
    %v1767 = vsub.f32 %v1702, %v1752
    %v1768 = vsub.f32 %v1703, %v1752
    %v1769 = vsub.f32 %v1704, %v1752
    %v1770 = vsub.f32 %v1705, %v1752
    %v1771 = vsub.f32 %v1706, %v1752
    %v1772 = vsub.f32 %v1707, %v1752
    %v1773 = vsub.f32 %v1708, %v1752
    %v1774 = vsub.f32 %v1709, %v1752
    %v1775 = vsub.f32 %v1710, %v1756
    %v1776 = vsub.f32 %v1711, %v1756
    %v1777 = vsub.f32 %v1712, %v1756
    %v1778 = vsub.f32 %v1713, %v1756
    %v1779 = vsub.f32 %v1714, %v1756
    %v1780 = vsub.f32 %v1715, %v1756
    %v1781 = vsub.f32 %v1716, %v1756
    %v1782 = vsub.f32 %v1717, %v1756
    %v1783 = vsub.f32 %v1718, %v1756
    %v1784 = vsub.f32 %v1719, %v1756
    %v1785 = vsub.f32 %v1720, %v1756
    %v1786 = vsub.f32 %v1721, %v1756
    %v1787 = vsub.f32 %v1722, %v1756
    %v1788 = vsub.f32 %v1723, %v1756
    %v1789 = vsub.f32 %v1724, %v1756
    %v1790 = vsub.f32 %v1725, %v1756
    %v1791 = vmul.f32 %v1759, 1.442695
    %v1792 = vpow.pop %v1791
    %v1793 = vmul.f32 %v1760, 1.442695
    %v1794 = vpow.pop %v1793
    %v1795 = vmul.f32 %v1761, 1.442695
    %v1796 = vpow.pop %v1795
    %v1797 = vmul.f32 %v1762, 1.442695
    %v1798 = vpow.pop %v1797
    %v1799 = vmul.f32 %v1763, 1.442695
    %v1800 = vpow.pop %v1799
    %v1801 = vmul.f32 %v1764, 1.442695
    %v1802 = vpow.pop %v1801
    %v1803 = vmul.f32 %v1765, 1.442695
    %v1804 = vpow.pop %v1803
    %v1805 = vmul.f32 %v1766, 1.442695
    %v1806 = vpow.pop %v1805
    %v1807 = vmul.f32 %v1767, 1.442695
    %v1808 = vpow.pop %v1807
    %v1809 = vmul.f32 %v1768, 1.442695
    %v1810 = vpow.pop %v1809
    %v1811 = vmul.f32 %v1769, 1.442695
    %v1812 = vpow.pop %v1811
    %v1813 = vmul.f32 %v1770, 1.442695
    %v1814 = vpow.pop %v1813
    %v1815 = vmul.f32 %v1771, 1.442695
    %v1816 = vpow.pop %v1815
    %v1817 = vmul.f32 %v1772, 1.442695
    %v1818 = vpow.pop %v1817
    %v1819 = vmul.f32 %v1773, 1.442695
    %v1820 = vpow.pop %v1819
    %v1821 = vmul.f32 %v1774, 1.442695
    %v1822 = vpow.pop %v1821
    %v1823 = vmul.f32 %v1775, 1.442695
    %v1824 = vpow.pop %v1823
    %v1825 = vmul.f32 %v1776, 1.442695
    %v1826 = vpow.pop %v1825
    %v1827 = vmul.f32 %v1777, 1.442695
    %v1828 = vpow.pop %v1827
    %v1829 = vmul.f32 %v1778, 1.442695
    %v1830 = vpow.pop %v1829
    %v1831 = vmul.f32 %v1779, 1.442695
    %v1832 = vpow.pop %v1831
    %v1833 = vmul.f32 %v1780, 1.442695
    %v1834 = vpow.pop %v1833
    %v1835 = vmul.f32 %v1781, 1.442695
    %v1836 = vpow.pop %v1835
    %v1837 = vmul.f32 %v1782, 1.442695
    %v1838 = vpow.pop %v1837
    %v1839 = vmul.f32 %v1783, 1.442695
    %v1840 = vpow.pop %v1839
    %v1841 = vmul.f32 %v1784, 1.442695
    %v1842 = vpow.pop %v1841
    %v1843 = vmul.f32 %v1785, 1.442695
    %v1844 = vpow.pop %v1843
    %v1845 = vmul.f32 %v1786, 1.442695
    %v1846 = vpow.pop %v1845
    %v1847 = vmul.f32 %v1787, 1.442695
    %v1848 = vpow.pop %v1847
    %v1849 = vmul.f32 %v1788, 1.442695
    %v1850 = vpow.pop %v1849
    %v1851 = vmul.f32 %v1789, 1.442695
    %v1852 = vpow.pop %v1851
    %v1853 = vmul.f32 %v1790, 1.442695
    %v1854 = vpow.pop %v1853
    %vm1855 = vcmask 1040384
    %v1856 = vsel %vm1855, %v1513, 1.0
    %1857 = vmatprep.subr.mxu0 0.0
    %1858 = vmatpush1.msra.mxu0 %v1792
    %1859 = vmatprep.subr.mxu0 0.0
    %1860 = vmatpush1.msra.mxu0 %v1794
    %1861 = vmatprep.subr.mxu0 0.0
    %1862 = vmatpush1.msra.mxu0 %v1796
    %1863 = vmatprep.subr.mxu0 0.0
    %1864 = vmatpush1.msra.mxu0 %v1798
    %1865 = vmatprep.subr.mxu0 0.0
    %1866 = vmatpush1.msra.mxu0 %v1800
    %1867 = vmatprep.subr.mxu0 0.0
    %1868 = vmatpush1.msra.mxu0 %v1802
    %1869 = vmatprep.subr.mxu0 0.0
    %1870 = vmatpush1.msra.mxu0 %v1804
    %1871 = vmatprep.subr.mxu0 0.0
    %1872 = vmatpush1.msra.mxu0 %v1806
    %1873 = vmatprep.subr.mxu0 0.0
    %1874 = vmatpush1.msra.mxu0 %v1808
    %1875 = vmatprep.subr.mxu0 0.0
    %1876 = vmatpush1.msra.mxu0 %v1810
    %1877 = vmatprep.subr.mxu0 0.0
    %1878 = vmatpush1.msra.mxu0 %v1812
    %1879 = vmatprep.subr.mxu0 0.0
    %1880 = vmatpush1.msra.mxu0 %v1814
    %1881 = vmatprep.subr.mxu0 0.0
    %1882 = vmatpush1.msra.mxu0 %v1816
    %1883 = vmatprep.subr.mxu0 0.0
    %1884 = vmatpush1.msra.mxu0 %v1818
    %1885 = vmatprep.subr.mxu0 0.0
    %1886 = vmatpush1.msra.mxu0 %v1820
    %1887 = vmatprep.subr.mxu0 0.0
    %1888 = vmatpush1.msra.mxu0 %v1822
    %1889 = vmatprep.subr.mxu0 0.0
    %1890 = vmatpush1.msra.mxu0 0.0
    %1891 = vmatprep.subr.mxu0 0.0
    %1892 = vmatpush1.msra.mxu0 0.0
    %1893 = vmatprep.subr.mxu0 0.0
    %1894 = vmatpush1.msra.mxu0 0.0
    %1895 = vmatprep.subr.mxu0 0.0
    %1896 = vmatpush1.msra.mxu0 0.0
    %1897 = vmatprep.subr.mxu0 0.0
    %1898 = vmatpush1.msra.mxu0 0.0
    %1899 = vmatprep.subr.mxu0 0.0
    %1900 = vmatpush1.msra.mxu0 0.0
    %1901 = vmatprep.subr.mxu0 0.0
    %1902 = vmatpush1.msra.mxu0 0.0
    %1903 = vmatprep.subr.mxu0 0.0
    %1904 = vmatpush1.msra.mxu0 0.0
    %1905 = vmatprep.subr.mxu0 0.0
    %1906 = vmatpush1.msra.mxu0 0.0
    %1907 = vmatprep.subr.mxu0 0.0
    %1908 = vmatpush1.msra.mxu0 0.0
    %1909 = vmatprep.subr.mxu0 0.0
    %1910 = vmatpush1.msra.mxu0 0.0
    %1911 = vmatprep.subr.mxu0 0.0
    %1912 = vmatpush1.msra.mxu0 0.0
    %1913 = vmatprep.subr.mxu0 0.0
    %1914 = vmatpush1.msra.mxu0 0.0
    %1915 = vmatprep.subr.mxu0 0.0
    %1916 = vmatpush1.msra.mxu0 0.0
    %1917 = vmatprep.subr.mxu0 0.0
    %1918 = vmatpush1.msra.mxu0 0.0
    %1919 = vmatprep.subr.mxu0 0.0
    %1920 = vmatpush1.msra.mxu0 0.0
    %1921 = vmatprep.mubr.f32.mxu0 0.0
    %1922 = vmatmul.mubr.f32.gmra.mrb[0].mxu0 %v1856
    %v1923 = vpop.f32.mrb[0].mxu0
    %v1924 = vadd.f32 0.0, %v1923
    %v1925 = vpop.f32.mrb[0].mxu0
    %1926 = vdwg.mxu0
    %v1928 = vrot.slane %v1513, 1
    %v1930 = vsel %vm1855, %v1928, 1.0
    %1931 = vmatprep.subr.mxu0 0.0
    %1932 = vmatpush1.msra.mxu0 %v1824
    %1933 = vmatprep.subr.mxu0 0.0
    %1934 = vmatpush1.msra.mxu0 %v1826
    %1935 = vmatprep.subr.mxu0 0.0
    %1936 = vmatpush1.msra.mxu0 %v1828
    %1937 = vmatprep.subr.mxu0 0.0
    %1938 = vmatpush1.msra.mxu0 %v1830
    %1939 = vmatprep.subr.mxu0 0.0
    %1940 = vmatpush1.msra.mxu0 %v1832
    %1941 = vmatprep.subr.mxu0 0.0
    %1942 = vmatpush1.msra.mxu0 %v1834
    %1943 = vmatprep.subr.mxu0 0.0
    %1944 = vmatpush1.msra.mxu0 %v1836
    %1945 = vmatprep.subr.mxu0 0.0
    %1946 = vmatpush1.msra.mxu0 %v1838
    %1947 = vmatprep.subr.mxu0 0.0
    %1948 = vmatpush1.msra.mxu0 %v1840
    %1949 = vmatprep.subr.mxu0 0.0
    %1950 = vmatpush1.msra.mxu0 %v1842
    %1951 = vmatprep.subr.mxu0 0.0
    %1952 = vmatpush1.msra.mxu0 %v1844
    %1953 = vmatprep.subr.mxu0 0.0
    %1954 = vmatpush1.msra.mxu0 %v1846
    %1955 = vmatprep.subr.mxu0 0.0
    %1956 = vmatpush1.msra.mxu0 %v1848
    %1957 = vmatprep.subr.mxu0 0.0
    %1958 = vmatpush1.msra.mxu0 %v1850
    %1959 = vmatprep.subr.mxu0 0.0
    %1960 = vmatpush1.msra.mxu0 %v1852
    %1961 = vmatprep.subr.mxu0 0.0
    %1962 = vmatpush1.msra.mxu0 %v1854
    %1963 = vmatprep.subr.mxu0 0.0
    %1964 = vmatpush1.msra.mxu0 0.0
    %1965 = vmatprep.subr.mxu0 0.0
    %1966 = vmatpush1.msra.mxu0 0.0
    %1967 = vmatprep.subr.mxu0 0.0
    %1968 = vmatpush1.msra.mxu0 0.0
    %1969 = vmatprep.subr.mxu0 0.0
    %1970 = vmatpush1.msra.mxu0 0.0
    %1971 = vmatprep.subr.mxu0 0.0
    %1972 = vmatpush1.msra.mxu0 0.0
    %1973 = vmatprep.subr.mxu0 0.0
    %1974 = vmatpush1.msra.mxu0 0.0
    %1975 = vmatprep.subr.mxu0 0.0
    %1976 = vmatpush1.msra.mxu0 0.0
    %1977 = vmatprep.subr.mxu0 0.0
    %1978 = vmatpush1.msra.mxu0 0.0
    %1979 = vmatprep.subr.mxu0 0.0
    %1980 = vmatpush1.msra.mxu0 0.0
    %1981 = vmatprep.subr.mxu0 0.0
    %1982 = vmatpush1.msra.mxu0 0.0
    %1983 = vmatprep.subr.mxu0 0.0
    %1984 = vmatpush1.msra.mxu0 0.0
    %1985 = vmatprep.subr.mxu0 0.0
    %1986 = vmatpush1.msra.mxu0 0.0
    %1987 = vmatprep.subr.mxu0 0.0
    %1988 = vmatpush1.msra.mxu0 0.0
    %1989 = vmatprep.subr.mxu0 0.0
    %1990 = vmatpush1.msra.mxu0 0.0
    %1991 = vmatprep.subr.mxu0 0.0
    %1992 = vmatpush1.msra.mxu0 0.0
    %1993 = vmatprep.subr.mxu0 0.0
    %1994 = vmatpush1.msra.mxu0 0.0
    %1995 = vmatprep.mubr.f32.mxu0 0.0
    %1996 = vmatmul.mubr.f32.gmra.mrb[0].mxu0 %v1930
    %v1997 = vpop.f32.mrb[0].mxu0
    %v1998 = vadd.f32 0.0, %v1997
    %v1999 = vpop.f32.mrb[0].mxu0
    %2000 = vdwg.mxu0
    %v2002 = vrot.slane %v1998, 7
    %v2004 = vsel %vm1855, %v1924, %v2002
    %v2006 = vrot.slane %v1924, 1
    %v2008 = vsel %vm1855, %v2006, %v1998
    %v2009 = vrcp.pop %v2008
    %v2010 = vmul.f32 %v2004, %v2009
    %v2011 = vld [vmem:[#allocation2 + $0x20] sm:$0xff]
    %v2012 = vld [vmem:[#allocation2 + $0x48] sm:$0xff]
    %v2013 = vld [vmem:[#allocation2 + $0x70] sm:$0xff]
    %v2014 = vld [vmem:[#allocation2 + $0x98] sm:$0xff]
    %v2015 = vld [vmem:[#allocation2 + $0xc0] sm:$0xff]
    %v2016 = vld [vmem:[#allocation2 + $0xe8] sm:$0xff]
    %v2017 = vld [vmem:[#allocation2 + $0x110] sm:$0xff]
    %v2018 = vld [vmem:[#allocation2 + $0x138] sm:$0xff]
    %v2019 = vunpack.c.l.bf16 %v2011
    %v2020 = vunpack.c.h.bf16 %v2011
    %v2021 = vunpack.c.l.bf16 %v2012
    %v2022 = vunpack.c.h.bf16 %v2012
    %v2023 = vunpack.c.l.bf16 %v2013
    %v2024 = vunpack.c.h.bf16 %v2013
    %v2025 = vunpack.c.l.bf16 %v2014
    %v2026 = vunpack.c.h.bf16 %v2014
    %v2027 = vunpack.c.l.bf16 %v2015
    %v2028 = vunpack.c.h.bf16 %v2015
    %v2029 = vunpack.c.l.bf16 %v2016
    %v2030 = vunpack.c.h.bf16 %v2016
    %v2031 = vunpack.c.l.bf16 %v2017
    %v2032 = vunpack.c.h.bf16 %v2017
    %v2033 = vunpack.c.l.bf16 %v2018
    %v2034 = vunpack.c.h.bf16 %v2018
    %v2035 = vld [vmem:[%s2 + $0x7] sm:$0x1]
    %v2037 = vlaneseq
    %v2038 = vshrl.u32 %v2037, 7
    %v2039 = vsub.s32 0, %v2038
    %v2040 = vrot.slane %v2035, %v2039
    %2058 = vrot.lane.b32.xlu0 %v2019, 64
    %v2059 = vpop.permute.xlu0 %2058
    %2060 = vrot.lane.b32.xlu0 %v2020, 64
    %v2061 = vpop.permute.xlu0 %2060
    %2062 = vrot.lane.b32.xlu0 %v2021, 64
    %v2063 = vpop.permute.xlu0 %2062
    %2064 = vrot.lane.b32.xlu0 %v2022, 64
    %v2065 = vpop.permute.xlu0 %2064
    %2066 = vrot.lane.b32.xlu0 %v2023, 64
    %v2067 = vpop.permute.xlu0 %2066
    %2068 = vrot.lane.b32.xlu0 %v2024, 64
    %v2069 = vpop.permute.xlu0 %2068
    %2070 = vrot.lane.b32.xlu0 %v2025, 64
    %v2071 = vpop.permute.xlu0 %2070
    %2072 = vrot.lane.b32.xlu0 %v2026, 64
    %v2073 = vpop.permute.xlu0 %2072
    %2074 = vrot.lane.b32.xlu0 %v2027, 64
    %v2075 = vpop.permute.xlu0 %2074
    %2076 = vrot.lane.b32.xlu0 %v2028, 64
    %v2077 = vpop.permute.xlu0 %2076
    %2078 = vrot.lane.b32.xlu0 %v2029, 64
    %v2079 = vpop.permute.xlu0 %2078
    %2080 = vrot.lane.b32.xlu0 %v2030, 64
    %v2081 = vpop.permute.xlu0 %2080
    %2082 = vrot.lane.b32.xlu0 %v2031, 64
    %v2083 = vpop.permute.xlu0 %2082
    %2084 = vrot.lane.b32.xlu0 %v2032, 64
    %v2085 = vpop.permute.xlu0 %2084
    %2086 = vrot.lane.b32.xlu0 %v2033, 64
    %v2087 = vpop.permute.xlu0 %2086
    %2088 = vrot.lane.b32.xlu0 %v2034, 64
    %v2089 = vpop.permute.xlu0 %2088
    %2106 = vmatprep.subr.mxu0 0.0
    %2107 = vmatpush1.msra.mxu0 %v2059
    %2108 = vmatprep.subr.mxu0 0.0
    %2109 = vmatpush1.msra.mxu0 %v2061
    %2110 = vmatprep.subr.mxu0 0.0
    %2111 = vmatpush1.msra.mxu0 %v2063
    %2112 = vmatprep.subr.mxu0 0.0
    %2113 = vmatpush1.msra.mxu0 %v2065
    %2114 = vmatprep.subr.mxu0 0.0
    %2115 = vmatpush1.msra.mxu0 %v2067
    %2116 = vmatprep.subr.mxu0 0.0
    %2117 = vmatpush1.msra.mxu0 %v2069
    %2118 = vmatprep.subr.mxu0 0.0
    %2119 = vmatpush1.msra.mxu0 %v2071
    %2120 = vmatprep.subr.mxu0 0.0
    %2121 = vmatpush1.msra.mxu0 %v2073
    %2122 = vmatprep.subr.mxu0 0.0
    %2123 = vmatpush1.msra.mxu0 %v2075
    %2124 = vmatprep.subr.mxu0 0.0
    %2125 = vmatpush1.msra.mxu0 %v2077
    %2126 = vmatprep.subr.mxu0 0.0
    %2127 = vmatpush1.msra.mxu0 %v2079
    %2128 = vmatprep.subr.mxu0 0.0
    %2129 = vmatpush1.msra.mxu0 %v2081
    %2130 = vmatprep.subr.mxu0 0.0
    %2131 = vmatpush1.msra.mxu0 %v2083
    %2132 = vmatprep.subr.mxu0 0.0
    %2133 = vmatpush1.msra.mxu0 %v2085
    %2134 = vmatprep.subr.mxu0 0.0
    %2135 = vmatpush1.msra.mxu0 %v2087
    %2136 = vmatprep.subr.mxu0 0.0
    %2137 = vmatpush1.msra.mxu0 %v2089
    %2138 = vmatprep.subr.mxu0 0.0
    %2139 = vmatpush1.msra.mxu0 0.0
    %2140 = vmatprep.subr.mxu0 0.0
    %2141 = vmatpush1.msra.mxu0 0.0
    %2142 = vmatprep.subr.mxu0 0.0
    %2143 = vmatpush1.msra.mxu0 0.0
    %2144 = vmatprep.subr.mxu0 0.0
    %2145 = vmatpush1.msra.mxu0 0.0
    %2146 = vmatprep.subr.mxu0 0.0
    %2147 = vmatpush1.msra.mxu0 0.0
    %2148 = vmatprep.subr.mxu0 0.0
    %2149 = vmatpush1.msra.mxu0 0.0
    %2150 = vmatprep.subr.mxu0 0.0
    %2151 = vmatpush1.msra.mxu0 0.0
    %2152 = vmatprep.subr.mxu0 0.0
    %2153 = vmatpush1.msra.mxu0 0.0
    %2154 = vmatprep.subr.mxu0 0.0
    %2155 = vmatpush1.msra.mxu0 0.0
    %2156 = vmatprep.subr.mxu0 0.0
    %2157 = vmatpush1.msra.mxu0 0.0
    %2158 = vmatprep.subr.mxu0 0.0
    %2159 = vmatpush1.msra.mxu0 0.0
    %2160 = vmatprep.subr.mxu0 0.0
    %2161 = vmatpush1.msra.mxu0 0.0
    %2162 = vmatprep.subr.mxu0 0.0
    %2163 = vmatpush1.msra.mxu0 0.0
    %2164 = vmatprep.subr.mxu0 0.0
    %2165 = vmatpush1.msra.mxu0 0.0
    %2166 = vmatprep.subr.mxu0 0.0
    %2167 = vmatpush1.msra.mxu0 0.0
    %2168 = vmatprep.subr.mxu0 0.0
    %2169 = vmatpush1.msra.mxu0 0.0
    %2170 = vmatprep.mubr.f32.mxu0 0.0
    %2171 = vmatmul.mubr.f32.gmra.mrb[0].mxu0 %v2010
    %v2172 = vpop.f32.mrb[0].mxu0
    %v2173 = vadd.f32 %v2040, %v2172
    %v2174 = vpop.f32.mrb[0].mxu0
    %2175 = vdwg.mxu0
    %v2176 = vadd.f32 %v2173, 0.0
    %v2177 = vsub.f32 %v2176, %v1127
    %vm2178 = vcmp.gt.f32.partialorder %v2177, 0.5
    %v2179 = vsel %vm2178, 1, 0
    %v2180 = vcvt.s32.f32 %v2179
    %v2181 = vadd.f32 %v2180, 0.0
    %v2182 = vadd.f32 %v1131, 0.0
    %v2183 = vadd.f32 %v2182, %v1260
    %v2184 = vadd.f32 %v1382, 0.0
    %v2185 = vmul.f32 %v1135, 0.8
    %v2186 = vadd.f32 %v2185, %v1110
    %v2187 = vmul.f32 %v1146, 0.5
    %v2188 = vsub.f32 %v2186, %v2187
    %vm2189 = vcmp.gt.f32.partialorder %v2188, 0.5
    %v2190 = vsel %vm2189, 1, 0
    %v2191 = vcvt.s32.f32 %v2190
    %v2192 = vmul.f32 %v2188, 0.8
    %v2193 = vadd.f32 %v2192, %v1110
    %v2194 = vmul.f32 %v2191, 0.5
    %v2195 = vsub.f32 %v2193, %v2194
    %vm2196 = vcmp.gt.f32.partialorder %v2195, 0.5
    %v2197 = vsel %vm2196, 1, 0
    %v2198 = vcvt.s32.f32 %v2197
    %v2199 = vpack.c.bf16 %v2198, %v2198
    %2200 = vmatprep.subr.bf16.mxu0 0
    %2201 = vmatpush1.bf16.msra.mxu0 %v1137
    %2202 = vmatprep.subr.bf16.mxu0 0
    %2203 = vmatpush1.bf16.msra.mxu0 %v1138
    %2204 = vmatprep.subr.bf16.mxu0 0
    %2205 = vmatpush1.bf16.msra.mxu0 %v1139
    %2206 = vmatprep.subr.bf16.mxu0 0
    %2207 = vmatpush1.bf16.msra.mxu0 %v1140
    %2208 = vmatprep.subr.bf16.mxu0 0
    %2209 = vmatpush1.bf16.msra.mxu0 %v1141
    %2210 = vmatprep.subr.bf16.mxu0 0
    %2211 = vmatpush1.bf16.msra.mxu0 %v1142
    %2212 = vmatprep.subr.bf16.mxu0 0
    %2213 = vmatpush1.bf16.msra.mxu0 %v1143
    %2214 = vmatprep.subr.bf16.mxu0 0
    %2215 = vmatpush1.bf16.msra.mxu0 %v1144
    %2216 = vmatprep.subr.bf16.mxu0 0
    %2217 = vmatpush1.bf16.msra.mxu0 0
    %2218 = vmatprep.subr.bf16.mxu0 0
    %2219 = vmatpush1.bf16.msra.mxu0 0
    %2220 = vmatprep.subr.bf16.mxu0 0
    %2221 = vmatpush1.bf16.msra.mxu0 0
    %2222 = vmatprep.subr.bf16.mxu0 0
    %2223 = vmatpush1.bf16.msra.mxu0 0
    %2224 = vmatprep.subr.bf16.mxu0 0
    %2225 = vmatpush1.bf16.msra.mxu0 0
    %2226 = vmatprep.subr.bf16.mxu0 0
    %2227 = vmatpush1.bf16.msra.mxu0 0
    %2228 = vmatprep.subr.bf16.mxu0 0
    %2229 = vmatpush1.bf16.msra.mxu0 0
    %2230 = vmatprep.subr.bf16.mxu0 0
    %2231 = vmatpush1.bf16.msra.mxu0 0
    %2232 = vmatprep.mubr.bf16.mxu0 0
    %2233 = vmatmul.mubr.bf16.gmra.mrb[0].mxu0 %v2199
    %v2234 = vpop.f32.mrb[0].mxu0
    %v2235 = vadd.f32 %v1153, %v2234
    %v2236 = vpop.f32.mrb[0].mxu0
    %v2237 = vpop.f32.mrb[0].mxu0
    %v2238 = vpop.f32.mrb[0].mxu0
    %2239 = vdwg.mxu0
    %v2240 = vmul.f32 %v1196, 0.8
    %v2241 = vadd.f32 %v2240, %v2235
    %v2242 = vmul.f32 %v1207, 0.5
    %v2243 = vsub.f32 %v2241, %v2242
    %vm2244 = vcmp.gt.f32.partialorder %v2243, 0.5
    %v2245 = vsel %vm2244, 1, 0
    %v2246 = vcvt.s32.f32 %v2245
    %v2247 = vpack.c.bf16 %v2246, %v2246
    %2248 = vmatprep.subr.bf16.mxu0 0
    %2249 = vmatpush1.bf16.msra.mxu0 %v1198
    %2250 = vmatprep.subr.bf16.mxu0 0
    %2251 = vmatpush1.bf16.msra.mxu0 %v1199
    %2252 = vmatprep.subr.bf16.mxu0 0
    %2253 = vmatpush1.bf16.msra.mxu0 %v1200
    %2254 = vmatprep.subr.bf16.mxu0 0
    %2255 = vmatpush1.bf16.msra.mxu0 %v1201
    %2256 = vmatprep.subr.bf16.mxu0 0
    %2257 = vmatpush1.bf16.msra.mxu0 %v1202
    %2258 = vmatprep.subr.bf16.mxu0 0
    %2259 = vmatpush1.bf16.msra.mxu0 %v1203
    %2260 = vmatprep.subr.bf16.mxu0 0
    %2261 = vmatpush1.bf16.msra.mxu0 %v1204
    %2262 = vmatprep.subr.bf16.mxu0 0
    %2263 = vmatpush1.bf16.msra.mxu0 %v1205
    %2264 = vmatprep.subr.bf16.mxu0 0
    %2265 = vmatpush1.bf16.msra.mxu0 0
    %2266 = vmatprep.subr.bf16.mxu0 0
    %2267 = vmatpush1.bf16.msra.mxu0 0
    %2268 = vmatprep.subr.bf16.mxu0 0
    %2269 = vmatpush1.bf16.msra.mxu0 0
    %2270 = vmatprep.subr.bf16.mxu0 0
    %2271 = vmatpush1.bf16.msra.mxu0 0
    %2272 = vmatprep.subr.bf16.mxu0 0
    %2273 = vmatpush1.bf16.msra.mxu0 0
    %2274 = vmatprep.subr.bf16.mxu0 0
    %2275 = vmatpush1.bf16.msra.mxu0 0
    %2276 = vmatprep.subr.bf16.mxu0 0
    %2277 = vmatpush1.bf16.msra.mxu0 0
    %2278 = vmatprep.subr.bf16.mxu0 0
    %2279 = vmatpush1.bf16.msra.mxu0 0
    %2280 = vmatprep.mubr.bf16.mxu0 0
    %2281 = vmatmul.mubr.bf16.gmra.mrb[0].mxu0 %v2247
    %v2282 = vpop.f32.mrb[0].mxu0
    %v2283 = vadd.f32 %v1214, %v2282
    %v2284 = vpop.f32.mrb[0].mxu0
    %v2285 = vpop.f32.mrb[0].mxu0
    %v2286 = vpop.f32.mrb[0].mxu0
    %2287 = vdwg.mxu0
    %v2288 = vmul.f32 %v1257, 0.8
    %v2289 = vadd.f32 %v2288, %v2283
    %v2290 = vmul.f32 %v1260, 0.5
    %v2291 = vsub.f32 %v2289, %v2290
    %vm2292 = vcmp.gt.f32.partialorder %v2291, 0.5
    %v2293 = vsel %vm2292, 1, 0
    %v2294 = vcvt.s32.f32 %v2293
    %v2295 = vpack.c.bf16 %v2191, %v2191
    %2296 = vmatprep.subr.bf16.mxu0 0
    %2297 = vmatpush1.bf16.msra.mxu0 %v1261
    %2298 = vmatprep.subr.bf16.mxu0 0
    %2299 = vmatpush1.bf16.msra.mxu0 %v1262
    %2300 = vmatprep.subr.bf16.mxu0 0
    %2301 = vmatpush1.bf16.msra.mxu0 %v1263
    %2302 = vmatprep.subr.bf16.mxu0 0
    %2303 = vmatpush1.bf16.msra.mxu0 %v1264
    %2304 = vmatprep.subr.bf16.mxu0 0
    %2305 = vmatpush1.bf16.msra.mxu0 %v1265
    %2306 = vmatprep.subr.bf16.mxu0 0
    %2307 = vmatpush1.bf16.msra.mxu0 %v1266
    %2308 = vmatprep.subr.bf16.mxu0 0
    %2309 = vmatpush1.bf16.msra.mxu0 %v1267
    %2310 = vmatprep.subr.bf16.mxu0 0
    %2311 = vmatpush1.bf16.msra.mxu0 %v1268
    %2312 = vmatprep.subr.bf16.mxu0 0
    %2313 = vmatpush1.bf16.msra.mxu0 0
    %2314 = vmatprep.subr.bf16.mxu0 0
    %2315 = vmatpush1.bf16.msra.mxu0 0
    %2316 = vmatprep.subr.bf16.mxu0 0
    %2317 = vmatpush1.bf16.msra.mxu0 0
    %2318 = vmatprep.subr.bf16.mxu0 0
    %2319 = vmatpush1.bf16.msra.mxu0 0
    %2320 = vmatprep.subr.bf16.mxu0 0
    %2321 = vmatpush1.bf16.msra.mxu0 0
    %2322 = vmatprep.subr.bf16.mxu0 0
    %2323 = vmatpush1.bf16.msra.mxu0 0
    %2324 = vmatprep.subr.bf16.mxu0 0
    %2325 = vmatpush1.bf16.msra.mxu0 0
    %2326 = vmatprep.subr.bf16.mxu0 0
    %2327 = vmatpush1.bf16.msra.mxu0 0
    %2328 = vmatprep.mubr.bf16.mxu0 0
    %2329 = vmatmul.mubr.bf16.gmra.mrb[0].mxu0 %v2295
    %v2330 = vpop.f32.mrb[0].mxu0
    %v2331 = vadd.f32 %v1275, %v2330
    %v2332 = vpop.f32.mrb[0].mxu0
    %v2333 = vpop.f32.mrb[0].mxu0
    %v2334 = vpop.f32.mrb[0].mxu0
    %2335 = vdwg.mxu0
    %2336 = vmatprep.subr.bf16.mxu0 0
    %2337 = vmatpush1.bf16.msra.mxu0 %v1317
    %2338 = vmatprep.subr.bf16.mxu0 0
    %2339 = vmatpush1.bf16.msra.mxu0 %v1318
    %2340 = vmatprep.subr.bf16.mxu0 0
    %2341 = vmatpush1.bf16.msra.mxu0 %v1319
    %2342 = vmatprep.subr.bf16.mxu0 0
    %2343 = vmatpush1.bf16.msra.mxu0 %v1320
    %2344 = vmatprep.subr.bf16.mxu0 0
    %2345 = vmatpush1.bf16.msra.mxu0 0
    %2346 = vmatprep.subr.bf16.mxu0 0
    %2347 = vmatpush1.bf16.msra.mxu0 0
    %2348 = vmatprep.subr.bf16.mxu0 0
    %2349 = vmatpush1.bf16.msra.mxu0 0
    %2350 = vmatprep.subr.bf16.mxu0 0
    %2351 = vmatpush1.bf16.msra.mxu0 0
    %2352 = vmatprep.subr.bf16.mxu0 0
    %2353 = vmatpush1.bf16.msra.mxu0 0
    %2354 = vmatprep.subr.bf16.mxu0 0
    %2355 = vmatpush1.bf16.msra.mxu0 0
    %2356 = vmatprep.subr.bf16.mxu0 0
    %2357 = vmatpush1.bf16.msra.mxu0 0
    %2358 = vmatprep.subr.bf16.mxu0 0
    %2359 = vmatpush1.bf16.msra.mxu0 0
    %2360 = vmatprep.subr.bf16.mxu0 0
    %2361 = vmatpush1.bf16.msra.mxu0 0
    %2362 = vmatprep.subr.bf16.mxu0 0
    %2363 = vmatpush1.bf16.msra.mxu0 0
    %2364 = vmatprep.subr.bf16.mxu0 0
    %2365 = vmatpush1.bf16.msra.mxu0 0
    %2366 = vmatprep.subr.bf16.mxu0 0
    %2367 = vmatpush1.bf16.msra.mxu0 0
    %2368 = vmatprep.mubr.bf16.mxu0 0
    %2369 = vmatmul.mubr.bf16.gmra.mrb[0].mxu0 %v1405
    %v2370 = vpop.f32.mrb[0].mxu0
    %v2371 = vadd.f32 %v1328, %v2370
    %v2372 = vpop.f32.mrb[0].mxu0
    %v2373 = vpop.f32.mrb[0].mxu0
    %v2374 = vpop.f32.mrb[0].mxu0
    %2375 = vdwg.mxu0
    %v2376 = vmul.f32 %v1379, 0.95
    %v2377 = vadd.f32 %v2376, %v2331
    %v2378 = vadd.f32 %v2377, %v2371
    %v2379 = vsub.f32 %v2378, %v1382
    %vm2380 = vcmp.gt.f32.partialorder %v2379, 1.0
    %v2381 = vsel %vm2380, 1, 0
    %v2382 = vcvt.s32.f32 %v2381
    %v2383 = vpack.c.bf16 %v2382, %v2382
    %v2385 = vsel %vm1330, %v2383, 0
    %2387 = vmatprep.subr.bf16.mxu0 0
    %2388 = vmatpush1.bf16.msra.mxu0 %v1383
    %2389 = vmatprep.subr.bf16.mxu0 0
    %2390 = vmatpush1.bf16.msra.mxu0 %v1384
    %2391 = vmatprep.subr.bf16.mxu0 0
    %2392 = vmatpush1.bf16.msra.mxu0 %v1385
    %2393 = vmatprep.subr.bf16.mxu0 0
    %2394 = vmatpush1.bf16.msra.mxu0 %v1386
    %2395 = vmatprep.subr.bf16.mxu0 0
    %2396 = vmatpush1.bf16.msra.mxu0 0
    %2397 = vmatprep.subr.bf16.mxu0 0
    %2398 = vmatpush1.bf16.msra.mxu0 0
    %2399 = vmatprep.subr.bf16.mxu0 0
    %2400 = vmatpush1.bf16.msra.mxu0 0
    %2401 = vmatprep.subr.bf16.mxu0 0
    %2402 = vmatpush1.bf16.msra.mxu0 0
    %2403 = vmatprep.subr.bf16.mxu0 0
    %2404 = vmatpush1.bf16.msra.mxu0 0
    %2405 = vmatprep.subr.bf16.mxu0 0
    %2406 = vmatpush1.bf16.msra.mxu0 0
    %2407 = vmatprep.subr.bf16.mxu0 0
    %2408 = vmatpush1.bf16.msra.mxu0 0
    %2409 = vmatprep.subr.bf16.mxu0 0
    %2410 = vmatpush1.bf16.msra.mxu0 0
    %2411 = vmatprep.subr.bf16.mxu0 0
    %2412 = vmatpush1.bf16.msra.mxu0 0
    %2413 = vmatprep.subr.bf16.mxu0 0
    %2414 = vmatpush1.bf16.msra.mxu0 0
    %2415 = vmatprep.subr.bf16.mxu0 0
    %2416 = vmatpush1.bf16.msra.mxu0 0
    %2417 = vmatprep.subr.bf16.mxu0 0
    %2418 = vmatpush1.bf16.msra.mxu0 0
    %2419 = vmatprep.mubr.bf16.mxu0 0
    %2420 = vmatmul.mubr.bf16.gmra.mrb[0].mxu0 %v2385
    %v2421 = vpop.f32.mrb[0].mxu0
    %v2422 = vadd.f32 %v1402, %v2421
    %v2423 = vpop.f32.mrb[0].mxu0
    %v2424 = vpop.f32.mrb[0].mxu0
    %v2425 = vpop.f32.mrb[0].mxu0
    %2426 = vdwg.mxu0
    %v2427 = vpack.c.bf16 %v2294, %v2294
    %2428 = vmatprep.subr.bf16.mxu0 %v1448
    %2429 = vmatpush1.bf16.msra.mxu0 %v1447
    %2430 = vmatprep.subr.bf16.mxu0 %v1450
    %2431 = vmatpush1.bf16.msra.mxu0 %v1449
    %2432 = vmatprep.subr.bf16.mxu0 %v1452
    %2433 = vmatpush1.bf16.msra.mxu0 %v1451
    %2434 = vmatprep.subr.bf16.mxu0 %v1454
    %2435 = vmatpush1.bf16.msra.mxu0 %v1453
    %2436 = vmatprep.subr.bf16.mxu0 %v1456
    %2437 = vmatpush1.bf16.msra.mxu0 %v1455
    %2438 = vmatprep.subr.bf16.mxu0 %v1458
    %2439 = vmatpush1.bf16.msra.mxu0 %v1457
    %2440 = vmatprep.subr.bf16.mxu0 %v1460
    %2441 = vmatpush1.bf16.msra.mxu0 %v1459
    %2442 = vmatprep.subr.bf16.mxu0 %v1462
    %2443 = vmatpush1.bf16.msra.mxu0 %v1461
    %2444 = vmatprep.subr.bf16.mxu0 0
    %2445 = vmatpush1.bf16.msra.mxu0 0
    %2446 = vmatprep.subr.bf16.mxu0 0
    %2447 = vmatpush1.bf16.msra.mxu0 0
    %2448 = vmatprep.subr.bf16.mxu0 0
    %2449 = vmatpush1.bf16.msra.mxu0 0
    %2450 = vmatprep.subr.bf16.mxu0 0
    %2451 = vmatpush1.bf16.msra.mxu0 0
    %2452 = vmatprep.subr.bf16.mxu0 0
    %2453 = vmatpush1.bf16.msra.mxu0 0
    %2454 = vmatprep.subr.bf16.mxu0 0
    %2455 = vmatpush1.bf16.msra.mxu0 0
    %2456 = vmatprep.subr.bf16.mxu0 0
    %2457 = vmatpush1.bf16.msra.mxu0 0
    %2458 = vmatprep.subr.bf16.mxu0 0
    %2459 = vmatpush1.bf16.msra.mxu0 0
    %2460 = vmatprep.mubr.bf16.mxu0 0
    %2461 = vmatmul.mubr.bf16.gmra.mrb[0].mxu0 %v2427
    %v2462 = vpop.f32.mrb[0].mxu0
    %v2463 = vadd.f32 %v1469, %v2462
    %v2464 = vpop.f32.mrb[0].mxu0
    %v2465 = vadd.f32 %v1473, %v2464
    %v2466 = vpop.f32.mrb[0].mxu0
    %v2467 = vpop.f32.mrb[0].mxu0
    %2468 = vdwg.mxu0
    %v2469 = vsel %vm1517, %v2463, -inf
    %2470 = vmax.xlane.f32.xlu0 %v2469
    %v2471 = vpop.xlane.xlu0 %2470
    %v2472 = vsel %vm1517, %v2463, inf
    %2473 = vmin.xlane.f32.xlu0 %v2472
    %v2474 = vpop.xlane.xlu0 %2473
    %v2475 = vmul.f32 %v2422, %v2471
    %v2476 = vmul.f32 %v2422, %v2474
    %v2477 = vmax.f32 %v2475, %v2476
    %v2480 = vunpack.c.l.s4 1966171168
    %v2481 = vunpack.c.0.s8 %v2480
    %v2482 = vlaneseq
    %v2483 = vshrl.u32 %v2482, 7
    %v2484 = vsub.s32 %v2481, %v2483
    %v2485 = vrot.slane %v2422, %v2484
    %v2486 = vcombine.high %v2485, %v2485
    %v2488 = vunpack.c.l.s4 1966171168
    %v2489 = vunpack.c.0.s8 %v2488
    %v2490 = vlaneseq
    %v2491 = vshrl.u32 %v2490, 7
    %v2492 = vsub.s32 %v2489, %v2491
    %v2493 = vrot.slane %v2485, %v2492
    %v2495 = vunpack.c.l.s4 1966171168
    %v2496 = vunpack.c.0.s8 %v2495
    %v2497 = vlaneseq
    %v2498 = vshrl.u32 %v2497, 7
    %v2499 = vsub.s32 %v2496, %v2498
    %v2500 = vrot.slane %v2486, %v2499
    %v2501 = vlaneseq
    %v2502 = vshrl.u32 %v2501, 7
    %v2503 = vsub.s32 0, %v2502
    %v2504 = vrot.slane %v2463, %v2503
    %2506 = vbcast.lane.b32.xlu0 %v2504, 256
    %v2507 = vpop.permute.xlu0 %2506
    %s2509 = sor.u32 256, 8
    %2510 = vbcast.lane.b32.xlu0 %v2504, %s2509
    %v2511 = vpop.permute.xlu0 %2510
    %s2513 = sor.u32 256, 16
    %2514 = vbcast.lane.b32.xlu0 %v2504, %s2513
    %v2515 = vpop.permute.xlu0 %2514
    %s2517 = sor.u32 256, 24
    %2518 = vbcast.lane.b32.xlu0 %v2504, %s2517
    %v2519 = vpop.permute.xlu0 %2518
    %s2521 = sor.u32 256, 32
    %2522 = vbcast.lane.b32.xlu0 %v2504, %s2521
    %v2523 = vpop.permute.xlu0 %2522
    %s2525 = sor.u32 256, 40
    %2526 = vbcast.lane.b32.xlu0 %v2504, %s2525
    %v2527 = vpop.permute.xlu0 %2526
    %s2529 = sor.u32 256, 48
    %2530 = vbcast.lane.b32.xlu0 %v2504, %s2529
    %v2531 = vpop.permute.xlu0 %2530
    %s2533 = sor.u32 256, 56
    %2534 = vbcast.lane.b32.xlu0 %v2504, %s2533
    %v2535 = vpop.permute.xlu0 %2534
    %s2537 = sor.u32 256, 64
    %2538 = vbcast.lane.b32.xlu0 %v2504, %s2537
    %v2539 = vpop.permute.xlu0 %2538
    %s2541 = sor.u32 256, 72
    %2542 = vbcast.lane.b32.xlu0 %v2504, %s2541
    %v2543 = vpop.permute.xlu0 %2542
    %s2545 = sor.u32 256, 80
    %2546 = vbcast.lane.b32.xlu0 %v2504, %s2545
    %v2547 = vpop.permute.xlu0 %2546
    %s2549 = sor.u32 256, 88
    %2550 = vbcast.lane.b32.xlu0 %v2504, %s2549
    %v2551 = vpop.permute.xlu0 %2550
    %s2553 = sor.u32 256, 96
    %2554 = vbcast.lane.b32.xlu0 %v2504, %s2553
    %v2555 = vpop.permute.xlu0 %2554
    %s2557 = sor.u32 256, 104
    %2558 = vbcast.lane.b32.xlu0 %v2504, %s2557
    %v2559 = vpop.permute.xlu0 %2558
    %s2561 = sor.u32 256, 112
    %2562 = vbcast.lane.b32.xlu0 %v2504, %s2561
    %v2563 = vpop.permute.xlu0 %2562
    %s2565 = sor.u32 256, 120
    %2566 = vbcast.lane.b32.xlu0 %v2504, %s2565
    %v2567 = vpop.permute.xlu0 %2566
    %v2568 = vlaneseq
    %v2569 = vshrl.u32 %v2568, 7
    %v2570 = vsub.s32 1, %v2569
    %v2571 = vrot.slane %v2463, %v2570
    %2573 = vbcast.lane.b32.xlu0 %v2571, 256
    %v2574 = vpop.permute.xlu0 %2573
    %s2576 = sor.u32 256, 8
    %2577 = vbcast.lane.b32.xlu0 %v2571, %s2576
    %v2578 = vpop.permute.xlu0 %2577
    %s2580 = sor.u32 256, 16
    %2581 = vbcast.lane.b32.xlu0 %v2571, %s2580
    %v2582 = vpop.permute.xlu0 %2581
    %s2584 = sor.u32 256, 24
    %2585 = vbcast.lane.b32.xlu0 %v2571, %s2584
    %v2586 = vpop.permute.xlu0 %2585
    %s2588 = sor.u32 256, 32
    %2589 = vbcast.lane.b32.xlu0 %v2571, %s2588
    %v2590 = vpop.permute.xlu0 %2589
    %s2592 = sor.u32 256, 40
    %2593 = vbcast.lane.b32.xlu0 %v2571, %s2592
    %v2594 = vpop.permute.xlu0 %2593
    %s2596 = sor.u32 256, 48
    %2597 = vbcast.lane.b32.xlu0 %v2571, %s2596
    %v2598 = vpop.permute.xlu0 %2597
    %s2600 = sor.u32 256, 56
    %2601 = vbcast.lane.b32.xlu0 %v2571, %s2600
    %v2602 = vpop.permute.xlu0 %2601
    %s2604 = sor.u32 256, 64
    %2605 = vbcast.lane.b32.xlu0 %v2571, %s2604
    %v2606 = vpop.permute.xlu0 %2605
    %s2608 = sor.u32 256, 72
    %2609 = vbcast.lane.b32.xlu0 %v2571, %s2608
    %v2610 = vpop.permute.xlu0 %2609
    %s2612 = sor.u32 256, 80
    %2613 = vbcast.lane.b32.xlu0 %v2571, %s2612
    %v2614 = vpop.permute.xlu0 %2613
    %s2616 = sor.u32 256, 88
    %2617 = vbcast.lane.b32.xlu0 %v2571, %s2616
    %v2618 = vpop.permute.xlu0 %2617
    %s2620 = sor.u32 256, 96
    %2621 = vbcast.lane.b32.xlu0 %v2571, %s2620
    %v2622 = vpop.permute.xlu0 %2621
    %s2624 = sor.u32 256, 104
    %2625 = vbcast.lane.b32.xlu0 %v2571, %s2624
    %v2626 = vpop.permute.xlu0 %2625
    %s2628 = sor.u32 256, 112
    %2629 = vbcast.lane.b32.xlu0 %v2571, %s2628
    %v2630 = vpop.permute.xlu0 %2629
    %s2632 = sor.u32 256, 120
    %2633 = vbcast.lane.b32.xlu0 %v2571, %s2632
    %v2634 = vpop.permute.xlu0 %2633
    %v2635 = vlaneseq
    %v2636 = vshrl.u32 %v2635, 7
    %v2637 = vsub.s32 0, %v2636
    %v2638 = vrot.slane %v2493, %v2637
    %v2639 = vlaneseq
    %v2640 = vshrl.u32 %v2639, 7
    %v2641 = vsub.s32 0, %v2640
    %v2642 = vrot.slane %v2500, %v2641
    %v2645 = vmul.f32 %v2638, %v2507
    %v2646 = vmul.f32 %v2638, %v2511
    %v2647 = vmul.f32 %v2638, %v2515
    %v2648 = vmul.f32 %v2638, %v2519
    %v2649 = vmul.f32 %v2638, %v2523
    %v2650 = vmul.f32 %v2638, %v2527
    %v2651 = vmul.f32 %v2638, %v2531
    %v2652 = vmul.f32 %v2638, %v2535
    %v2653 = vmul.f32 %v2638, %v2539
    %v2654 = vmul.f32 %v2638, %v2543
    %v2655 = vmul.f32 %v2638, %v2547
    %v2656 = vmul.f32 %v2638, %v2551
    %v2657 = vmul.f32 %v2638, %v2555
    %v2658 = vmul.f32 %v2638, %v2559
    %v2659 = vmul.f32 %v2638, %v2563
    %v2660 = vmul.f32 %v2638, %v2567
    %v2661 = vmul.f32 %v2642, %v2574
    %v2662 = vmul.f32 %v2642, %v2578
    %v2663 = vmul.f32 %v2642, %v2582
    %v2664 = vmul.f32 %v2642, %v2586
    %v2665 = vmul.f32 %v2642, %v2590
    %v2666 = vmul.f32 %v2642, %v2594
    %v2667 = vmul.f32 %v2642, %v2598
    %v2668 = vmul.f32 %v2642, %v2602
    %v2669 = vmul.f32 %v2642, %v2606
    %v2670 = vmul.f32 %v2642, %v2610
    %v2671 = vmul.f32 %v2642, %v2614
    %v2672 = vmul.f32 %v2642, %v2618
    %v2673 = vmul.f32 %v2642, %v2622
    %v2674 = vmul.f32 %v2642, %v2626
    %v2675 = vmul.f32 %v2642, %v2630
    %v2676 = vmul.f32 %v2642, %v2634
    %v2679 = vunpack.c.l.s4 1966171168
    %v2680 = vunpack.c.0.s8 %v2679
    %v2681 = vlaneseq
    %v2682 = vshrl.u32 %v2681, 7
    %v2683 = vsub.s32 %v2680, %v2682
    %v2684 = vrot.slane %v2477, %v2683
    %v2685 = vcombine.high %v2684, %v2684
    %v2687 = vunpack.c.l.s4 1966171168
    %v2688 = vunpack.c.0.s8 %v2687
    %v2689 = vlaneseq
    %v2690 = vshrl.u32 %v2689, 7
    %v2691 = vsub.s32 %v2688, %v2690
    %v2692 = vrot.slane %v2684, %v2691
    %v2694 = vunpack.c.l.s4 1966171168
    %v2695 = vunpack.c.0.s8 %v2694
    %v2696 = vlaneseq
    %v2697 = vshrl.u32 %v2696, 7
    %v2698 = vsub.s32 %v2695, %v2697
    %v2699 = vrot.slane %v2685, %v2698
    %v2700 = vlaneseq
    %v2701 = vshrl.u32 %v2700, 7
    %v2702 = vsub.s32 0, %v2701
    %v2703 = vrot.slane %v2692, %v2702
    %v2704 = vlaneseq
    %v2705 = vshrl.u32 %v2704, 7
    %v2706 = vsub.s32 0, %v2705
    %v2707 = vrot.slane %v2699, %v2706
    %v2710 = vsub.f32 %v2645, %v2703
    %v2711 = vsub.f32 %v2646, %v2703
    %v2712 = vsub.f32 %v2647, %v2703
    %v2713 = vsub.f32 %v2648, %v2703
    %v2714 = vsub.f32 %v2649, %v2703
    %v2715 = vsub.f32 %v2650, %v2703
    %v2716 = vsub.f32 %v2651, %v2703
    %v2717 = vsub.f32 %v2652, %v2703
    %v2718 = vsub.f32 %v2653, %v2703
    %v2719 = vsub.f32 %v2654, %v2703
    %v2720 = vsub.f32 %v2655, %v2703
    %v2721 = vsub.f32 %v2656, %v2703
    %v2722 = vsub.f32 %v2657, %v2703
    %v2723 = vsub.f32 %v2658, %v2703
    %v2724 = vsub.f32 %v2659, %v2703
    %v2725 = vsub.f32 %v2660, %v2703
    %v2726 = vsub.f32 %v2661, %v2707
    %v2727 = vsub.f32 %v2662, %v2707
    %v2728 = vsub.f32 %v2663, %v2707
    %v2729 = vsub.f32 %v2664, %v2707
    %v2730 = vsub.f32 %v2665, %v2707
    %v2731 = vsub.f32 %v2666, %v2707
    %v2732 = vsub.f32 %v2667, %v2707
    %v2733 = vsub.f32 %v2668, %v2707
    %v2734 = vsub.f32 %v2669, %v2707
    %v2735 = vsub.f32 %v2670, %v2707
    %v2736 = vsub.f32 %v2671, %v2707
    %v2737 = vsub.f32 %v2672, %v2707
    %v2738 = vsub.f32 %v2673, %v2707
    %v2739 = vsub.f32 %v2674, %v2707
    %v2740 = vsub.f32 %v2675, %v2707
    %v2741 = vsub.f32 %v2676, %v2707
    %v2742 = vmul.f32 %v2710, 1.442695
    %v2743 = vpow.pop %v2742
    %v2744 = vmul.f32 %v2711, 1.442695
    %v2745 = vpow.pop %v2744
    %v2746 = vmul.f32 %v2712, 1.442695
    %v2747 = vpow.pop %v2746
    %v2748 = vmul.f32 %v2713, 1.442695
    %v2749 = vpow.pop %v2748
    %v2750 = vmul.f32 %v2714, 1.442695
    %v2751 = vpow.pop %v2750
    %v2752 = vmul.f32 %v2715, 1.442695
    %v2753 = vpow.pop %v2752
    %v2754 = vmul.f32 %v2716, 1.442695
    %v2755 = vpow.pop %v2754
    %v2756 = vmul.f32 %v2717, 1.442695
    %v2757 = vpow.pop %v2756
    %v2758 = vmul.f32 %v2718, 1.442695
    %v2759 = vpow.pop %v2758
    %v2760 = vmul.f32 %v2719, 1.442695
    %v2761 = vpow.pop %v2760
    %v2762 = vmul.f32 %v2720, 1.442695
    %v2763 = vpow.pop %v2762
    %v2764 = vmul.f32 %v2721, 1.442695
    %v2765 = vpow.pop %v2764
    %v2766 = vmul.f32 %v2722, 1.442695
    %v2767 = vpow.pop %v2766
    %v2768 = vmul.f32 %v2723, 1.442695
    %v2769 = vpow.pop %v2768
    %v2770 = vmul.f32 %v2724, 1.442695
    %v2771 = vpow.pop %v2770
    %v2772 = vmul.f32 %v2725, 1.442695
    %v2773 = vpow.pop %v2772
    %v2774 = vmul.f32 %v2726, 1.442695
    %v2775 = vpow.pop %v2774
    %v2776 = vmul.f32 %v2727, 1.442695
    %v2777 = vpow.pop %v2776
    %v2778 = vmul.f32 %v2728, 1.442695
    %v2779 = vpow.pop %v2778
    %v2780 = vmul.f32 %v2729, 1.442695
    %v2781 = vpow.pop %v2780
    %v2782 = vmul.f32 %v2730, 1.442695
    %v2783 = vpow.pop %v2782
    %v2784 = vmul.f32 %v2731, 1.442695
    %v2785 = vpow.pop %v2784
    %v2786 = vmul.f32 %v2732, 1.442695
    %v2787 = vpow.pop %v2786
    %v2788 = vmul.f32 %v2733, 1.442695
    %v2789 = vpow.pop %v2788
    %v2790 = vmul.f32 %v2734, 1.442695
    %v2791 = vpow.pop %v2790
    %v2792 = vmul.f32 %v2735, 1.442695
    %v2793 = vpow.pop %v2792
    %v2794 = vmul.f32 %v2736, 1.442695
    %v2795 = vpow.pop %v2794
    %v2796 = vmul.f32 %v2737, 1.442695
    %v2797 = vpow.pop %v2796
    %v2798 = vmul.f32 %v2738, 1.442695
    %v2799 = vpow.pop %v2798
    %v2800 = vmul.f32 %v2739, 1.442695
    %v2801 = vpow.pop %v2800
    %v2802 = vmul.f32 %v2740, 1.442695
    %v2803 = vpow.pop %v2802
    %v2804 = vmul.f32 %v2741, 1.442695
    %v2805 = vpow.pop %v2804
    %v2806 = vsel %vm1855, %v2465, 1.0
    %2807 = vmatprep.subr.mxu0 0.0
    %2808 = vmatpush1.msra.mxu0 %v2743
    %2809 = vmatprep.subr.mxu0 0.0
    %2810 = vmatpush1.msra.mxu0 %v2745
    %2811 = vmatprep.subr.mxu0 0.0
    %2812 = vmatpush1.msra.mxu0 %v2747
    %2813 = vmatprep.subr.mxu0 0.0
    %2814 = vmatpush1.msra.mxu0 %v2749
    %2815 = vmatprep.subr.mxu0 0.0
    %2816 = vmatpush1.msra.mxu0 %v2751
    %2817 = vmatprep.subr.mxu0 0.0
    %2818 = vmatpush1.msra.mxu0 %v2753
    %2819 = vmatprep.subr.mxu0 0.0
    %2820 = vmatpush1.msra.mxu0 %v2755
    %2821 = vmatprep.subr.mxu0 0.0
    %2822 = vmatpush1.msra.mxu0 %v2757
    %2823 = vmatprep.subr.mxu0 0.0
    %2824 = vmatpush1.msra.mxu0 %v2759
    %2825 = vmatprep.subr.mxu0 0.0
    %2826 = vmatpush1.msra.mxu0 %v2761
    %2827 = vmatprep.subr.mxu0 0.0
    %2828 = vmatpush1.msra.mxu0 %v2763
    %2829 = vmatprep.subr.mxu0 0.0
    %2830 = vmatpush1.msra.mxu0 %v2765
    %2831 = vmatprep.subr.mxu0 0.0
    %2832 = vmatpush1.msra.mxu0 %v2767
    %2833 = vmatprep.subr.mxu0 0.0
    %2834 = vmatpush1.msra.mxu0 %v2769
    %2835 = vmatprep.subr.mxu0 0.0
    %2836 = vmatpush1.msra.mxu0 %v2771
    %2837 = vmatprep.subr.mxu0 0.0
    %2838 = vmatpush1.msra.mxu0 %v2773
    %2839 = vmatprep.subr.mxu0 0.0
    %2840 = vmatpush1.msra.mxu0 0.0
    %2841 = vmatprep.subr.mxu0 0.0
    %2842 = vmatpush1.msra.mxu0 0.0
    %2843 = vmatprep.subr.mxu0 0.0
    %2844 = vmatpush1.msra.mxu0 0.0
    %2845 = vmatprep.subr.mxu0 0.0
    %2846 = vmatpush1.msra.mxu0 0.0
    %2847 = vmatprep.subr.mxu0 0.0
    %2848 = vmatpush1.msra.mxu0 0.0
    %2849 = vmatprep.subr.mxu0 0.0
    %2850 = vmatpush1.msra.mxu0 0.0
    %2851 = vmatprep.subr.mxu0 0.0
    %2852 = vmatpush1.msra.mxu0 0.0
    %2853 = vmatprep.subr.mxu0 0.0
    %2854 = vmatpush1.msra.mxu0 0.0
    %2855 = vmatprep.subr.mxu0 0.0
    %2856 = vmatpush1.msra.mxu0 0.0
    %2857 = vmatprep.subr.mxu0 0.0
    %2858 = vmatpush1.msra.mxu0 0.0
    %2859 = vmatprep.subr.mxu0 0.0
    %2860 = vmatpush1.msra.mxu0 0.0
    %2861 = vmatprep.subr.mxu0 0.0
    %2862 = vmatpush1.msra.mxu0 0.0
    %2863 = vmatprep.subr.mxu0 0.0
    %2864 = vmatpush1.msra.mxu0 0.0
    %2865 = vmatprep.subr.mxu0 0.0
    %2866 = vmatpush1.msra.mxu0 0.0
    %2867 = vmatprep.subr.mxu0 0.0
    %2868 = vmatpush1.msra.mxu0 0.0
    %2869 = vmatprep.subr.mxu0 0.0
    %2870 = vmatpush1.msra.mxu0 0.0
    %2871 = vmatprep.mubr.f32.mxu0 0.0
    %2872 = vmatmul.mubr.f32.gmra.mrb[0].mxu0 %v2806
    %v2873 = vpop.f32.mrb[0].mxu0
    %v2874 = vadd.f32 0.0, %v2873
    %v2875 = vpop.f32.mrb[0].mxu0
    %2876 = vdwg.mxu0
    %v2878 = vrot.slane %v2465, 1
    %v2880 = vsel %vm1855, %v2878, 1.0
    %2881 = vmatprep.subr.mxu0 0.0
    %2882 = vmatpush1.msra.mxu0 %v2775
    %2883 = vmatprep.subr.mxu0 0.0
    %2884 = vmatpush1.msra.mxu0 %v2777
    %2885 = vmatprep.subr.mxu0 0.0
    %2886 = vmatpush1.msra.mxu0 %v2779
    %2887 = vmatprep.subr.mxu0 0.0
    %2888 = vmatpush1.msra.mxu0 %v2781
    %2889 = vmatprep.subr.mxu0 0.0
    %2890 = vmatpush1.msra.mxu0 %v2783
    %2891 = vmatprep.subr.mxu0 0.0
    %2892 = vmatpush1.msra.mxu0 %v2785
    %2893 = vmatprep.subr.mxu0 0.0
    %2894 = vmatpush1.msra.mxu0 %v2787
    %2895 = vmatprep.subr.mxu0 0.0
    %2896 = vmatpush1.msra.mxu0 %v2789
    %2897 = vmatprep.subr.mxu0 0.0
    %2898 = vmatpush1.msra.mxu0 %v2791
    %2899 = vmatprep.subr.mxu0 0.0
    %2900 = vmatpush1.msra.mxu0 %v2793
    %2901 = vmatprep.subr.mxu0 0.0
    %2902 = vmatpush1.msra.mxu0 %v2795
    %2903 = vmatprep.subr.mxu0 0.0
    %2904 = vmatpush1.msra.mxu0 %v2797
    %2905 = vmatprep.subr.mxu0 0.0
    %2906 = vmatpush1.msra.mxu0 %v2799
    %2907 = vmatprep.subr.mxu0 0.0
    %2908 = vmatpush1.msra.mxu0 %v2801
    %2909 = vmatprep.subr.mxu0 0.0
    %2910 = vmatpush1.msra.mxu0 %v2803
    %2911 = vmatprep.subr.mxu0 0.0
    %2912 = vmatpush1.msra.mxu0 %v2805
    %2913 = vmatprep.subr.mxu0 0.0
    %2914 = vmatpush1.msra.mxu0 0.0
    %2915 = vmatprep.subr.mxu0 0.0
    %2916 = vmatpush1.msra.mxu0 0.0
    %2917 = vmatprep.subr.mxu0 0.0
    %2918 = vmatpush1.msra.mxu0 0.0
    %2919 = vmatprep.subr.mxu0 0.0
    %2920 = vmatpush1.msra.mxu0 0.0
    %2921 = vmatprep.subr.mxu0 0.0
    %2922 = vmatpush1.msra.mxu0 0.0
    %2923 = vmatprep.subr.mxu0 0.0
    %2924 = vmatpush1.msra.mxu0 0.0
    %2925 = vmatprep.subr.mxu0 0.0
    %2926 = vmatpush1.msra.mxu0 0.0
    %2927 = vmatprep.subr.mxu0 0.0
    %2928 = vmatpush1.msra.mxu0 0.0
    %2929 = vmatprep.subr.mxu0 0.0
    %2930 = vmatpush1.msra.mxu0 0.0
    %2931 = vmatprep.subr.mxu0 0.0
    %2932 = vmatpush1.msra.mxu0 0.0
    %2933 = vmatprep.subr.mxu0 0.0
    %2934 = vmatpush1.msra.mxu0 0.0
    %2935 = vmatprep.subr.mxu0 0.0
    %2936 = vmatpush1.msra.mxu0 0.0
    %2937 = vmatprep.subr.mxu0 0.0
    %2938 = vmatpush1.msra.mxu0 0.0
    %2939 = vmatprep.subr.mxu0 0.0
    %2940 = vmatpush1.msra.mxu0 0.0
    %2941 = vmatprep.subr.mxu0 0.0
    %2942 = vmatpush1.msra.mxu0 0.0
    %2943 = vmatprep.subr.mxu0 0.0
    %2944 = vmatpush1.msra.mxu0 0.0
    %2945 = vmatprep.mubr.f32.mxu0 0.0
    %2946 = vmatmul.mubr.f32.gmra.mrb[0].mxu0 %v2880
    %v2947 = vpop.f32.mrb[0].mxu0
    %v2948 = vadd.f32 0.0, %v2947
    %v2949 = vpop.f32.mrb[0].mxu0
    %2950 = vdwg.mxu0
    %v2952 = vrot.slane %v2948, 7
    %v2954 = vsel %vm1855, %v2874, %v2952
    %v2956 = vrot.slane %v2874, 1
    %v2958 = vsel %vm1855, %v2956, %v2948
    %v2959 = vrcp.pop %v2958
    %v2960 = vmul.f32 %v2954, %v2959
    %2961 = vmatprep.subr.mxu0 0.0
    %2962 = vmatpush1.msra.mxu0 %v2059
    %2963 = vmatprep.subr.mxu0 0.0
    %2964 = vmatpush1.msra.mxu0 %v2061
    %2965 = vmatprep.subr.mxu0 0.0
    %2966 = vmatpush1.msra.mxu0 %v2063
    %2967 = vmatprep.subr.mxu0 0.0
    %2968 = vmatpush1.msra.mxu0 %v2065
    %2969 = vmatprep.subr.mxu0 0.0
    %2970 = vmatpush1.msra.mxu0 %v2067
    %2971 = vmatprep.subr.mxu0 0.0
    %2972 = vmatpush1.msra.mxu0 %v2069
    %2973 = vmatprep.subr.mxu0 0.0
    %2974 = vmatpush1.msra.mxu0 %v2071
    %2975 = vmatprep.subr.mxu0 0.0
    %2976 = vmatpush1.msra.mxu0 %v2073
    %2977 = vmatprep.subr.mxu0 0.0
    %2978 = vmatpush1.msra.mxu0 %v2075
    %2979 = vmatprep.subr.mxu0 0.0
    %2980 = vmatpush1.msra.mxu0 %v2077
    %2981 = vmatprep.subr.mxu0 0.0
    %2982 = vmatpush1.msra.mxu0 %v2079
    %2983 = vmatprep.subr.mxu0 0.0
    %2984 = vmatpush1.msra.mxu0 %v2081
    %2985 = vmatprep.subr.mxu0 0.0
    %2986 = vmatpush1.msra.mxu0 %v2083
    %2987 = vmatprep.subr.mxu0 0.0
    %2988 = vmatpush1.msra.mxu0 %v2085
    %2989 = vmatprep.subr.mxu0 0.0
    %2990 = vmatpush1.msra.mxu0 %v2087
    %2991 = vmatprep.subr.mxu0 0.0
    %2992 = vmatpush1.msra.mxu0 %v2089
    %2993 = vmatprep.subr.mxu0 0.0
    %2994 = vmatpush1.msra.mxu0 0.0
    %2995 = vmatprep.subr.mxu0 0.0
    %2996 = vmatpush1.msra.mxu0 0.0
    %2997 = vmatprep.subr.mxu0 0.0
    %2998 = vmatpush1.msra.mxu0 0.0
    %2999 = vmatprep.subr.mxu0 0.0
    %3000 = vmatpush1.msra.mxu0 0.0
    %3001 = vmatprep.subr.mxu0 0.0
    %3002 = vmatpush1.msra.mxu0 0.0
    %3003 = vmatprep.subr.mxu0 0.0
    %3004 = vmatpush1.msra.mxu0 0.0
    %3005 = vmatprep.subr.mxu0 0.0
    %3006 = vmatpush1.msra.mxu0 0.0
    %3007 = vmatprep.subr.mxu0 0.0
    %3008 = vmatpush1.msra.mxu0 0.0
    %3009 = vmatprep.subr.mxu0 0.0
    %3010 = vmatpush1.msra.mxu0 0.0
    %3011 = vmatprep.subr.mxu0 0.0
    %3012 = vmatpush1.msra.mxu0 0.0
    %3013 = vmatprep.subr.mxu0 0.0
    %3014 = vmatpush1.msra.mxu0 0.0
    %3015 = vmatprep.subr.mxu0 0.0
    %3016 = vmatpush1.msra.mxu0 0.0
    %3017 = vmatprep.subr.mxu0 0.0
    %3018 = vmatpush1.msra.mxu0 0.0
    %3019 = vmatprep.subr.mxu0 0.0
    %3020 = vmatpush1.msra.mxu0 0.0
    %3021 = vmatprep.subr.mxu0 0.0
    %3022 = vmatpush1.msra.mxu0 0.0
    %3023 = vmatprep.subr.mxu0 0.0
    %3024 = vmatpush1.msra.mxu0 0.0
    %3025 = vmatprep.mubr.f32.mxu0 0.0
    %3026 = vmatmul.mubr.f32.gmra.mrb[0].mxu0 %v2960
    %v3027 = vpop.f32.mrb[0].mxu0
    %v3028 = vadd.f32 %v2040, %v3027
    %v3029 = vpop.f32.mrb[0].mxu0
    %3030 = vdwg.mxu0
    %v3031 = vmul.f32 %v2177, 0.8
    %v3032 = vadd.f32 %v3031, %v3028
    %v3033 = vmul.f32 %v2180, 0.5
    %v3034 = vsub.f32 %v3032, %v3033
    %vm3035 = vcmp.gt.f32.partialorder %v3034, 0.5
    %v3036 = vsel %vm3035, 1, 0
    %v3037 = vcvt.s32.f32 %v3036
    %v3038 = vadd.f32 %v2181, %v3037
    %v3039 = vadd.f32 %v2183, %v2191
    %v3040 = vadd.f32 %v3039, %v2294
    %v3041 = vadd.f32 %v2184, %v2382
    %v3042 = vmul.f32 %v2195, 0.8
    %v3043 = vadd.f32 %v3042, %v1110
    %v3044 = vmul.f32 %v2198, 0.5
    %v3045 = vsub.f32 %v3043, %v3044
    %vm3046 = vcmp.gt.f32.partialorder %v3045, 0.5
    %v3047 = vsel %vm3046, 1, 0
    %v3048 = vcvt.s32.f32 %v3047
    %v3049 = vmul.f32 %v3045, 0.8
    %v3050 = vadd.f32 %v3049, %v1110
    %v3051 = vmul.f32 %v3048, 0.5
    %v3052 = vsub.f32 %v3050, %v3051
    %vm3053 = vcmp.gt.f32.partialorder %v3052, 0.5
    %v3054 = vsel %vm3053, 1, 0
    %v3055 = vcvt.s32.f32 %v3054
    %v3056 = vpack.c.bf16 %v3055, %v3055
    %3057 = vmatprep.subr.bf16.mxu0 0
    %3058 = vmatpush1.bf16.msra.mxu0 %v1137
    %3059 = vmatprep.subr.bf16.mxu0 0
    %3060 = vmatpush1.bf16.msra.mxu0 %v1138
    %3061 = vmatprep.subr.bf16.mxu0 0
    %3062 = vmatpush1.bf16.msra.mxu0 %v1139
    %3063 = vmatprep.subr.bf16.mxu0 0
    %3064 = vmatpush1.bf16.msra.mxu0 %v1140
    %3065 = vmatprep.subr.bf16.mxu0 0
    %3066 = vmatpush1.bf16.msra.mxu0 %v1141
    %3067 = vmatprep.subr.bf16.mxu0 0
    %3068 = vmatpush1.bf16.msra.mxu0 %v1142
    %3069 = vmatprep.subr.bf16.mxu0 0
    %3070 = vmatpush1.bf16.msra.mxu0 %v1143
    %3071 = vmatprep.subr.bf16.mxu0 0
    %3072 = vmatpush1.bf16.msra.mxu0 %v1144
    %3073 = vmatprep.subr.bf16.mxu0 0
    %3074 = vmatpush1.bf16.msra.mxu0 0
    %3075 = vmatprep.subr.bf16.mxu0 0
    %3076 = vmatpush1.bf16.msra.mxu0 0
    %3077 = vmatprep.subr.bf16.mxu0 0
    %3078 = vmatpush1.bf16.msra.mxu0 0
    %3079 = vmatprep.subr.bf16.mxu0 0
    %3080 = vmatpush1.bf16.msra.mxu0 0
    %3081 = vmatprep.subr.bf16.mxu0 0
    %3082 = vmatpush1.bf16.msra.mxu0 0
    %3083 = vmatprep.subr.bf16.mxu0 0
    %3084 = vmatpush1.bf16.msra.mxu0 0
    %3085 = vmatprep.subr.bf16.mxu0 0
    %3086 = vmatpush1.bf16.msra.mxu0 0
    %3087 = vmatprep.subr.bf16.mxu0 0
    %3088 = vmatpush1.bf16.msra.mxu0 0
    %3089 = vmatprep.mubr.bf16.mxu0 0
    %3090 = vmatmul.mubr.bf16.gmra.mrb[0].mxu0 %v3056
    %v3091 = vpop.f32.mrb[0].mxu0
    %v3092 = vadd.f32 %v1153, %v3091
    %v3093 = vpop.f32.mrb[0].mxu0
    %v3094 = vpop.f32.mrb[0].mxu0
    %v3095 = vpop.f32.mrb[0].mxu0
    %3096 = vdwg.mxu0
    %v3097 = vmul.f32 %v2243, 0.8
    %v3098 = vadd.f32 %v3097, %v3092
    %v3099 = vmul.f32 %v2246, 0.5
    %v3100 = vsub.f32 %v3098, %v3099
    %vm3101 = vcmp.gt.f32.partialorder %v3100, 0.5
    %v3102 = vsel %vm3101, 1, 0
    %v3103 = vcvt.s32.f32 %v3102
    %v3104 = vpack.c.bf16 %v3103, %v3103
    %3105 = vmatprep.subr.bf16.mxu0 0
    %3106 = vmatpush1.bf16.msra.mxu0 %v1198
    %3107 = vmatprep.subr.bf16.mxu0 0
    %3108 = vmatpush1.bf16.msra.mxu0 %v1199
    %3109 = vmatprep.subr.bf16.mxu0 0
    %3110 = vmatpush1.bf16.msra.mxu0 %v1200
    %3111 = vmatprep.subr.bf16.mxu0 0
    %3112 = vmatpush1.bf16.msra.mxu0 %v1201
    %3113 = vmatprep.subr.bf16.mxu0 0
    %3114 = vmatpush1.bf16.msra.mxu0 %v1202
    %3115 = vmatprep.subr.bf16.mxu0 0
    %3116 = vmatpush1.bf16.msra.mxu0 %v1203
    %3117 = vmatprep.subr.bf16.mxu0 0
    %3118 = vmatpush1.bf16.msra.mxu0 %v1204
    %3119 = vmatprep.subr.bf16.mxu0 0
    %3120 = vmatpush1.bf16.msra.mxu0 %v1205
    %3121 = vmatprep.subr.bf16.mxu0 0
    %3122 = vmatpush1.bf16.msra.mxu0 0
    %3123 = vmatprep.subr.bf16.mxu0 0
    %3124 = vmatpush1.bf16.msra.mxu0 0
    %3125 = vmatprep.subr.bf16.mxu0 0
    %3126 = vmatpush1.bf16.msra.mxu0 0
    %3127 = vmatprep.subr.bf16.mxu0 0
    %3128 = vmatpush1.bf16.msra.mxu0 0
    %3129 = vmatprep.subr.bf16.mxu0 0
    %3130 = vmatpush1.bf16.msra.mxu0 0
    %3131 = vmatprep.subr.bf16.mxu0 0
    %3132 = vmatpush1.bf16.msra.mxu0 0
    %3133 = vmatprep.subr.bf16.mxu0 0
    %3134 = vmatpush1.bf16.msra.mxu0 0
    %3135 = vmatprep.subr.bf16.mxu0 0
    %3136 = vmatpush1.bf16.msra.mxu0 0
    %3137 = vmatprep.mubr.bf16.mxu0 0
    %3138 = vmatmul.mubr.bf16.gmra.mrb[0].mxu0 %v3104
    %v3139 = vpop.f32.mrb[0].mxu0
    %v3140 = vadd.f32 %v1214, %v3139
    %v3141 = vpop.f32.mrb[0].mxu0
    %v3142 = vpop.f32.mrb[0].mxu0
    %v3143 = vpop.f32.mrb[0].mxu0
    %3144 = vdwg.mxu0
    %v3145 = vmul.f32 %v2291, 0.8
    %v3146 = vadd.f32 %v3145, %v3140
    %v3147 = vmul.f32 %v2294, 0.5
    %v3148 = vsub.f32 %v3146, %v3147
    %vm3149 = vcmp.gt.f32.partialorder %v3148, 0.5
    %v3150 = vsel %vm3149, 1, 0
    %v3151 = vcvt.s32.f32 %v3150
    %v3152 = vpack.c.bf16 %v3048, %v3048
    %3153 = vmatprep.subr.bf16.mxu0 0
    %3154 = vmatpush1.bf16.msra.mxu0 %v1261
    %3155 = vmatprep.subr.bf16.mxu0 0
    %3156 = vmatpush1.bf16.msra.mxu0 %v1262
    %3157 = vmatprep.subr.bf16.mxu0 0
    %3158 = vmatpush1.bf16.msra.mxu0 %v1263
    %3159 = vmatprep.subr.bf16.mxu0 0
    %3160 = vmatpush1.bf16.msra.mxu0 %v1264
    %3161 = vmatprep.subr.bf16.mxu0 0
    %3162 = vmatpush1.bf16.msra.mxu0 %v1265
    %3163 = vmatprep.subr.bf16.mxu0 0
    %3164 = vmatpush1.bf16.msra.mxu0 %v1266
    %3165 = vmatprep.subr.bf16.mxu0 0
    %3166 = vmatpush1.bf16.msra.mxu0 %v1267
    %3167 = vmatprep.subr.bf16.mxu0 0
    %3168 = vmatpush1.bf16.msra.mxu0 %v1268
    %3169 = vmatprep.subr.bf16.mxu0 0
    %3170 = vmatpush1.bf16.msra.mxu0 0
    %3171 = vmatprep.subr.bf16.mxu0 0
    %3172 = vmatpush1.bf16.msra.mxu0 0
    %3173 = vmatprep.subr.bf16.mxu0 0
    %3174 = vmatpush1.bf16.msra.mxu0 0
    %3175 = vmatprep.subr.bf16.mxu0 0
    %3176 = vmatpush1.bf16.msra.mxu0 0
    %3177 = vmatprep.subr.bf16.mxu0 0
    %3178 = vmatpush1.bf16.msra.mxu0 0
    %3179 = vmatprep.subr.bf16.mxu0 0
    %3180 = vmatpush1.bf16.msra.mxu0 0
    %3181 = vmatprep.subr.bf16.mxu0 0
    %3182 = vmatpush1.bf16.msra.mxu0 0
    %3183 = vmatprep.subr.bf16.mxu0 0
    %3184 = vmatpush1.bf16.msra.mxu0 0
    %3185 = vmatprep.mubr.bf16.mxu0 0
    %3186 = vmatmul.mubr.bf16.gmra.mrb[0].mxu0 %v3152
    %v3187 = vpop.f32.mrb[0].mxu0
    %v3188 = vadd.f32 %v1275, %v3187
    %v3189 = vpop.f32.mrb[0].mxu0
    %v3190 = vpop.f32.mrb[0].mxu0
    %v3191 = vpop.f32.mrb[0].mxu0
    %3192 = vdwg.mxu0
    %3193 = vmatprep.subr.bf16.mxu0 0
    %3194 = vmatpush1.bf16.msra.mxu0 %v1317
    %3195 = vmatprep.subr.bf16.mxu0 0
    %3196 = vmatpush1.bf16.msra.mxu0 %v1318
    %3197 = vmatprep.subr.bf16.mxu0 0
    %3198 = vmatpush1.bf16.msra.mxu0 %v1319
    %3199 = vmatprep.subr.bf16.mxu0 0
    %3200 = vmatpush1.bf16.msra.mxu0 %v1320
    %3201 = vmatprep.subr.bf16.mxu0 0
    %3202 = vmatpush1.bf16.msra.mxu0 0
    %3203 = vmatprep.subr.bf16.mxu0 0
    %3204 = vmatpush1.bf16.msra.mxu0 0
    %3205 = vmatprep.subr.bf16.mxu0 0
    %3206 = vmatpush1.bf16.msra.mxu0 0
    %3207 = vmatprep.subr.bf16.mxu0 0
    %3208 = vmatpush1.bf16.msra.mxu0 0
    %3209 = vmatprep.subr.bf16.mxu0 0
    %3210 = vmatpush1.bf16.msra.mxu0 0
    %3211 = vmatprep.subr.bf16.mxu0 0
    %3212 = vmatpush1.bf16.msra.mxu0 0
    %3213 = vmatprep.subr.bf16.mxu0 0
    %3214 = vmatpush1.bf16.msra.mxu0 0
    %3215 = vmatprep.subr.bf16.mxu0 0
    %3216 = vmatpush1.bf16.msra.mxu0 0
    %3217 = vmatprep.subr.bf16.mxu0 0
    %3218 = vmatpush1.bf16.msra.mxu0 0
    %3219 = vmatprep.subr.bf16.mxu0 0
    %3220 = vmatpush1.bf16.msra.mxu0 0
    %3221 = vmatprep.subr.bf16.mxu0 0
    %3222 = vmatpush1.bf16.msra.mxu0 0
    %3223 = vmatprep.subr.bf16.mxu0 0
    %3224 = vmatpush1.bf16.msra.mxu0 0
    %3225 = vmatprep.mubr.bf16.mxu0 0
    %3226 = vmatmul.mubr.bf16.gmra.mrb[0].mxu0 %v2385
    %v3227 = vpop.f32.mrb[0].mxu0
    %v3228 = vadd.f32 %v1328, %v3227
    %v3229 = vpop.f32.mrb[0].mxu0
    %v3230 = vpop.f32.mrb[0].mxu0
    %v3231 = vpop.f32.mrb[0].mxu0
    %3232 = vdwg.mxu0
    %v3233 = vmul.f32 %v2379, 0.95
    %v3234 = vadd.f32 %v3233, %v3188
    %v3235 = vadd.f32 %v3234, %v3228
    %v3236 = vsub.f32 %v3235, %v2382
    %vm3237 = vcmp.gt.f32.partialorder %v3236, 1.0
    %v3238 = vsel %vm3237, 1, 0
    %v3239 = vcvt.s32.f32 %v3238
    %v3240 = vpack.c.bf16 %v3239, %v3239
    %v3242 = vsel %vm1330, %v3240, 0
    %3244 = vmatprep.subr.bf16.mxu0 0
    %3245 = vmatpush1.bf16.msra.mxu0 %v1383
    %3246 = vmatprep.subr.bf16.mxu0 0
    %3247 = vmatpush1.bf16.msra.mxu0 %v1384
    %3248 = vmatprep.subr.bf16.mxu0 0
    %3249 = vmatpush1.bf16.msra.mxu0 %v1385
    %3250 = vmatprep.subr.bf16.mxu0 0
    %3251 = vmatpush1.bf16.msra.mxu0 %v1386
    %3252 = vmatprep.subr.bf16.mxu0 0
    %3253 = vmatpush1.bf16.msra.mxu0 0
    %3254 = vmatprep.subr.bf16.mxu0 0
    %3255 = vmatpush1.bf16.msra.mxu0 0
    %3256 = vmatprep.subr.bf16.mxu0 0
    %3257 = vmatpush1.bf16.msra.mxu0 0
    %3258 = vmatprep.subr.bf16.mxu0 0
    %3259 = vmatpush1.bf16.msra.mxu0 0
    %3260 = vmatprep.subr.bf16.mxu0 0
    %3261 = vmatpush1.bf16.msra.mxu0 0
    %3262 = vmatprep.subr.bf16.mxu0 0
    %3263 = vmatpush1.bf16.msra.mxu0 0
    %3264 = vmatprep.subr.bf16.mxu0 0
    %3265 = vmatpush1.bf16.msra.mxu0 0
    %3266 = vmatprep.subr.bf16.mxu0 0
    %3267 = vmatpush1.bf16.msra.mxu0 0
    %3268 = vmatprep.subr.bf16.mxu0 0
    %3269 = vmatpush1.bf16.msra.mxu0 0
    %3270 = vmatprep.subr.bf16.mxu0 0
    %3271 = vmatpush1.bf16.msra.mxu0 0
    %3272 = vmatprep.subr.bf16.mxu0 0
    %3273 = vmatpush1.bf16.msra.mxu0 0
    %3274 = vmatprep.subr.bf16.mxu0 0
    %3275 = vmatpush1.bf16.msra.mxu0 0
    %3276 = vmatprep.mubr.bf16.mxu0 0
    %3277 = vmatmul.mubr.bf16.gmra.mrb[0].mxu0 %v3242
    %v3278 = vpop.f32.mrb[0].mxu0
    %v3279 = vadd.f32 %v1402, %v3278
    %v3280 = vpop.f32.mrb[0].mxu0
    %v3281 = vpop.f32.mrb[0].mxu0
    %v3282 = vpop.f32.mrb[0].mxu0
    %3283 = vdwg.mxu0
    %v3284 = vpack.c.bf16 %v3151, %v3151
    %3285 = vmatprep.subr.bf16.mxu0 %v1448
    %3286 = vmatpush1.bf16.msra.mxu0 %v1447
    %3287 = vmatprep.subr.bf16.mxu0 %v1450
    %3288 = vmatpush1.bf16.msra.mxu0 %v1449
    %3289 = vmatprep.subr.bf16.mxu0 %v1452
    %3290 = vmatpush1.bf16.msra.mxu0 %v1451
    %3291 = vmatprep.subr.bf16.mxu0 %v1454
    %3292 = vmatpush1.bf16.msra.mxu0 %v1453
    %3293 = vmatprep.subr.bf16.mxu0 %v1456
    %3294 = vmatpush1.bf16.msra.mxu0 %v1455
    %3295 = vmatprep.subr.bf16.mxu0 %v1458
    %3296 = vmatpush1.bf16.msra.mxu0 %v1457
    %3297 = vmatprep.subr.bf16.mxu0 %v1460
    %3298 = vmatpush1.bf16.msra.mxu0 %v1459
    %3299 = vmatprep.subr.bf16.mxu0 %v1462
    %3300 = vmatpush1.bf16.msra.mxu0 %v1461
    %3301 = vmatprep.subr.bf16.mxu0 0
    %3302 = vmatpush1.bf16.msra.mxu0 0
    %3303 = vmatprep.subr.bf16.mxu0 0
    %3304 = vmatpush1.bf16.msra.mxu0 0
    %3305 = vmatprep.subr.bf16.mxu0 0
    %3306 = vmatpush1.bf16.msra.mxu0 0
    %3307 = vmatprep.subr.bf16.mxu0 0
    %3308 = vmatpush1.bf16.msra.mxu0 0
    %3309 = vmatprep.subr.bf16.mxu0 0
    %3310 = vmatpush1.bf16.msra.mxu0 0
    %3311 = vmatprep.subr.bf16.mxu0 0
    %3312 = vmatpush1.bf16.msra.mxu0 0
    %3313 = vmatprep.subr.bf16.mxu0 0
    %3314 = vmatpush1.bf16.msra.mxu0 0
    %3315 = vmatprep.subr.bf16.mxu0 0
    %3316 = vmatpush1.bf16.msra.mxu0 0
    %3317 = vmatprep.mubr.bf16.mxu0 0
    %3318 = vmatmul.mubr.bf16.gmra.mrb[0].mxu0 %v3284
    %v3319 = vpop.f32.mrb[0].mxu0
    %v3320 = vadd.f32 %v1469, %v3319
    %v3321 = vpop.f32.mrb[0].mxu0
    %v3322 = vadd.f32 %v1473, %v3321
    %v3323 = vpop.f32.mrb[0].mxu0
    %v3324 = vpop.f32.mrb[0].mxu0
    %3325 = vdwg.mxu0
    %v3326 = vsel %vm1517, %v3320, -inf
    %3327 = vmax.xlane.f32.xlu0 %v3326
    %v3328 = vpop.xlane.xlu0 %3327
    %v3329 = vsel %vm1517, %v3320, inf
    %3330 = vmin.xlane.f32.xlu0 %v3329
    %v3331 = vpop.xlane.xlu0 %3330
    %v3332 = vmul.f32 %v3279, %v3328
    %v3333 = vmul.f32 %v3279, %v3331
    %v3334 = vmax.f32 %v3332, %v3333
    %v3337 = vunpack.c.l.s4 1966171168
    %v3338 = vunpack.c.0.s8 %v3337
    %v3339 = vlaneseq
    %v3340 = vshrl.u32 %v3339, 7
    %v3341 = vsub.s32 %v3338, %v3340
    %v3342 = vrot.slane %v3279, %v3341
    %v3343 = vcombine.high %v3342, %v3342
    %v3345 = vunpack.c.l.s4 1966171168
    %v3346 = vunpack.c.0.s8 %v3345
    %v3347 = vlaneseq
    %v3348 = vshrl.u32 %v3347, 7
    %v3349 = vsub.s32 %v3346, %v3348
    %v3350 = vrot.slane %v3342, %v3349
    %v3352 = vunpack.c.l.s4 1966171168
    %v3353 = vunpack.c.0.s8 %v3352
    %v3354 = vlaneseq
    %v3355 = vshrl.u32 %v3354, 7
    %v3356 = vsub.s32 %v3353, %v3355
    %v3357 = vrot.slane %v3343, %v3356
    %v3358 = vlaneseq
    %v3359 = vshrl.u32 %v3358, 7
    %v3360 = vsub.s32 0, %v3359
    %v3361 = vrot.slane %v3320, %v3360
    %3363 = vbcast.lane.b32.xlu0 %v3361, 256
    %v3364 = vpop.permute.xlu0 %3363
    %s3366 = sor.u32 256, 8
    %3367 = vbcast.lane.b32.xlu0 %v3361, %s3366
    %v3368 = vpop.permute.xlu0 %3367
    %s3370 = sor.u32 256, 16
    %3371 = vbcast.lane.b32.xlu0 %v3361, %s3370
    %v3372 = vpop.permute.xlu0 %3371
    %s3374 = sor.u32 256, 24
    %3375 = vbcast.lane.b32.xlu0 %v3361, %s3374
    %v3376 = vpop.permute.xlu0 %3375
    %s3378 = sor.u32 256, 32
    %3379 = vbcast.lane.b32.xlu0 %v3361, %s3378
    %v3380 = vpop.permute.xlu0 %3379
    %s3382 = sor.u32 256, 40
    %3383 = vbcast.lane.b32.xlu0 %v3361, %s3382
    %v3384 = vpop.permute.xlu0 %3383
    %s3386 = sor.u32 256, 48
    %3387 = vbcast.lane.b32.xlu0 %v3361, %s3386
    %v3388 = vpop.permute.xlu0 %3387
    %s3390 = sor.u32 256, 56
    %3391 = vbcast.lane.b32.xlu0 %v3361, %s3390
    %v3392 = vpop.permute.xlu0 %3391
    %s3394 = sor.u32 256, 64
    %3395 = vbcast.lane.b32.xlu0 %v3361, %s3394
    %v3396 = vpop.permute.xlu0 %3395
    %s3398 = sor.u32 256, 72
    %3399 = vbcast.lane.b32.xlu0 %v3361, %s3398
    %v3400 = vpop.permute.xlu0 %3399
    %s3402 = sor.u32 256, 80
    %3403 = vbcast.lane.b32.xlu0 %v3361, %s3402
    %v3404 = vpop.permute.xlu0 %3403
    %s3406 = sor.u32 256, 88
    %3407 = vbcast.lane.b32.xlu0 %v3361, %s3406
    %v3408 = vpop.permute.xlu0 %3407
    %s3410 = sor.u32 256, 96
    %3411 = vbcast.lane.b32.xlu0 %v3361, %s3410
    %v3412 = vpop.permute.xlu0 %3411
    %s3414 = sor.u32 256, 104
    %3415 = vbcast.lane.b32.xlu0 %v3361, %s3414
    %v3416 = vpop.permute.xlu0 %3415
    %s3418 = sor.u32 256, 112
    %3419 = vbcast.lane.b32.xlu0 %v3361, %s3418
    %v3420 = vpop.permute.xlu0 %3419
    %s3422 = sor.u32 256, 120
    %3423 = vbcast.lane.b32.xlu0 %v3361, %s3422
    %v3424 = vpop.permute.xlu0 %3423
    %v3425 = vlaneseq
    %v3426 = vshrl.u32 %v3425, 7
    %v3427 = vsub.s32 1, %v3426
    %v3428 = vrot.slane %v3320, %v3427
    %3430 = vbcast.lane.b32.xlu0 %v3428, 256
    %v3431 = vpop.permute.xlu0 %3430
    %s3433 = sor.u32 256, 8
    %3434 = vbcast.lane.b32.xlu0 %v3428, %s3433
    %v3435 = vpop.permute.xlu0 %3434
    %s3437 = sor.u32 256, 16
    %3438 = vbcast.lane.b32.xlu0 %v3428, %s3437
    %v3439 = vpop.permute.xlu0 %3438
    %s3441 = sor.u32 256, 24
    %3442 = vbcast.lane.b32.xlu0 %v3428, %s3441
    %v3443 = vpop.permute.xlu0 %3442
    %s3445 = sor.u32 256, 32
    %3446 = vbcast.lane.b32.xlu0 %v3428, %s3445
    %v3447 = vpop.permute.xlu0 %3446
    %s3449 = sor.u32 256, 40
    %3450 = vbcast.lane.b32.xlu0 %v3428, %s3449
    %v3451 = vpop.permute.xlu0 %3450
    %s3453 = sor.u32 256, 48
    %3454 = vbcast.lane.b32.xlu0 %v3428, %s3453
    %v3455 = vpop.permute.xlu0 %3454
    %s3457 = sor.u32 256, 56
    %3458 = vbcast.lane.b32.xlu0 %v3428, %s3457
    %v3459 = vpop.permute.xlu0 %3458
    %s3461 = sor.u32 256, 64
    %3462 = vbcast.lane.b32.xlu0 %v3428, %s3461
    %v3463 = vpop.permute.xlu0 %3462
    %s3465 = sor.u32 256, 72
    %3466 = vbcast.lane.b32.xlu0 %v3428, %s3465
    %v3467 = vpop.permute.xlu0 %3466
    %s3469 = sor.u32 256, 80
    %3470 = vbcast.lane.b32.xlu0 %v3428, %s3469
    %v3471 = vpop.permute.xlu0 %3470
    %s3473 = sor.u32 256, 88
    %3474 = vbcast.lane.b32.xlu0 %v3428, %s3473
    %v3475 = vpop.permute.xlu0 %3474
    %s3477 = sor.u32 256, 96
    %3478 = vbcast.lane.b32.xlu0 %v3428, %s3477
    %v3479 = vpop.permute.xlu0 %3478
    %s3481 = sor.u32 256, 104
    %3482 = vbcast.lane.b32.xlu0 %v3428, %s3481
    %v3483 = vpop.permute.xlu0 %3482
    %s3485 = sor.u32 256, 112
    %3486 = vbcast.lane.b32.xlu0 %v3428, %s3485
    %v3487 = vpop.permute.xlu0 %3486
    %s3489 = sor.u32 256, 120
    %3490 = vbcast.lane.b32.xlu0 %v3428, %s3489
    %v3491 = vpop.permute.xlu0 %3490
    %v3492 = vlaneseq
    %v3493 = vshrl.u32 %v3492, 7
    %v3494 = vsub.s32 0, %v3493
    %v3495 = vrot.slane %v3350, %v3494
    %v3496 = vlaneseq
    %v3497 = vshrl.u32 %v3496, 7
    %v3498 = vsub.s32 0, %v3497
    %v3499 = vrot.slane %v3357, %v3498
    %v3502 = vmul.f32 %v3495, %v3364
    %v3503 = vmul.f32 %v3495, %v3368
    %v3504 = vmul.f32 %v3495, %v3372
    %v3505 = vmul.f32 %v3495, %v3376
    %v3506 = vmul.f32 %v3495, %v3380
    %v3507 = vmul.f32 %v3495, %v3384
    %v3508 = vmul.f32 %v3495, %v3388
    %v3509 = vmul.f32 %v3495, %v3392
    %v3510 = vmul.f32 %v3495, %v3396
    %v3511 = vmul.f32 %v3495, %v3400
    %v3512 = vmul.f32 %v3495, %v3404
    %v3513 = vmul.f32 %v3495, %v3408
    %v3514 = vmul.f32 %v3495, %v3412
    %v3515 = vmul.f32 %v3495, %v3416
    %v3516 = vmul.f32 %v3495, %v3420
    %v3517 = vmul.f32 %v3495, %v3424
    %v3518 = vmul.f32 %v3499, %v3431
    %v3519 = vmul.f32 %v3499, %v3435
    %v3520 = vmul.f32 %v3499, %v3439
    %v3521 = vmul.f32 %v3499, %v3443
    %v3522 = vmul.f32 %v3499, %v3447
    %v3523 = vmul.f32 %v3499, %v3451
    %v3524 = vmul.f32 %v3499, %v3455
    %v3525 = vmul.f32 %v3499, %v3459
    %v3526 = vmul.f32 %v3499, %v3463
    %v3527 = vmul.f32 %v3499, %v3467
    %v3528 = vmul.f32 %v3499, %v3471
    %v3529 = vmul.f32 %v3499, %v3475
    %v3530 = vmul.f32 %v3499, %v3479
    %v3531 = vmul.f32 %v3499, %v3483
    %v3532 = vmul.f32 %v3499, %v3487
    %v3533 = vmul.f32 %v3499, %v3491
    %v3536 = vunpack.c.l.s4 1966171168
    %v3537 = vunpack.c.0.s8 %v3536
    %v3538 = vlaneseq
    %v3539 = vshrl.u32 %v3538, 7
    %v3540 = vsub.s32 %v3537, %v3539
    %v3541 = vrot.slane %v3334, %v3540
    %v3542 = vcombine.high %v3541, %v3541
    %v3544 = vunpack.c.l.s4 1966171168
    %v3545 = vunpack.c.0.s8 %v3544
    %v3546 = vlaneseq
    %v3547 = vshrl.u32 %v3546, 7
    %v3548 = vsub.s32 %v3545, %v3547
    %v3549 = vrot.slane %v3541, %v3548
    %v3551 = vunpack.c.l.s4 1966171168
    %v3552 = vunpack.c.0.s8 %v3551
    %v3553 = vlaneseq
    %v3554 = vshrl.u32 %v3553, 7
    %v3555 = vsub.s32 %v3552, %v3554
    %v3556 = vrot.slane %v3542, %v3555
    %v3557 = vlaneseq
    %v3558 = vshrl.u32 %v3557, 7
    %v3559 = vsub.s32 0, %v3558
    %v3560 = vrot.slane %v3549, %v3559
    %v3561 = vlaneseq
    %v3562 = vshrl.u32 %v3561, 7
    %v3563 = vsub.s32 0, %v3562
    %v3564 = vrot.slane %v3556, %v3563
    %v3567 = vsub.f32 %v3502, %v3560
    %v3568 = vsub.f32 %v3503, %v3560
    %v3569 = vsub.f32 %v3504, %v3560
    %v3570 = vsub.f32 %v3505, %v3560
    %v3571 = vsub.f32 %v3506, %v3560
    %v3572 = vsub.f32 %v3507, %v3560
    %v3573 = vsub.f32 %v3508, %v3560
    %v3574 = vsub.f32 %v3509, %v3560
    %v3575 = vsub.f32 %v3510, %v3560
    %v3576 = vsub.f32 %v3511, %v3560
    %v3577 = vsub.f32 %v3512, %v3560
    %v3578 = vsub.f32 %v3513, %v3560
    %v3579 = vsub.f32 %v3514, %v3560
    %v3580 = vsub.f32 %v3515, %v3560
    %v3581 = vsub.f32 %v3516, %v3560
    %v3582 = vsub.f32 %v3517, %v3560
    %v3583 = vsub.f32 %v3518, %v3564
    %v3584 = vsub.f32 %v3519, %v3564
    %v3585 = vsub.f32 %v3520, %v3564
    %v3586 = vsub.f32 %v3521, %v3564
    %v3587 = vsub.f32 %v3522, %v3564
    %v3588 = vsub.f32 %v3523, %v3564
    %v3589 = vsub.f32 %v3524, %v3564
    %v3590 = vsub.f32 %v3525, %v3564
    %v3591 = vsub.f32 %v3526, %v3564
    %v3592 = vsub.f32 %v3527, %v3564
    %v3593 = vsub.f32 %v3528, %v3564
    %v3594 = vsub.f32 %v3529, %v3564
    %v3595 = vsub.f32 %v3530, %v3564
    %v3596 = vsub.f32 %v3531, %v3564
    %v3597 = vsub.f32 %v3532, %v3564
    %v3598 = vsub.f32 %v3533, %v3564
    %v3599 = vmul.f32 %v3567, 1.442695
    %v3600 = vpow.pop %v3599
    %v3601 = vmul.f32 %v3568, 1.442695
    %v3602 = vpow.pop %v3601
    %v3603 = vmul.f32 %v3569, 1.442695
    %v3604 = vpow.pop %v3603
    %v3605 = vmul.f32 %v3570, 1.442695
    %v3606 = vpow.pop %v3605
    %v3607 = vmul.f32 %v3571, 1.442695
    %v3608 = vpow.pop %v3607
    %v3609 = vmul.f32 %v3572, 1.442695
    %v3610 = vpow.pop %v3609
    %v3611 = vmul.f32 %v3573, 1.442695
    %v3612 = vpow.pop %v3611
    %v3613 = vmul.f32 %v3574, 1.442695
    %v3614 = vpow.pop %v3613
    %v3615 = vmul.f32 %v3575, 1.442695
    %v3616 = vpow.pop %v3615
    %v3617 = vmul.f32 %v3576, 1.442695
    %v3618 = vpow.pop %v3617
    %v3619 = vmul.f32 %v3577, 1.442695
    %v3620 = vpow.pop %v3619
    %v3621 = vmul.f32 %v3578, 1.442695
    %v3622 = vpow.pop %v3621
    %v3623 = vmul.f32 %v3579, 1.442695
    %v3624 = vpow.pop %v3623
    %v3625 = vmul.f32 %v3580, 1.442695
    %v3626 = vpow.pop %v3625
    %v3627 = vmul.f32 %v3581, 1.442695
    %v3628 = vpow.pop %v3627
    %v3629 = vmul.f32 %v3582, 1.442695
    %v3630 = vpow.pop %v3629
    %v3631 = vmul.f32 %v3583, 1.442695
    %v3632 = vpow.pop %v3631
    %v3633 = vmul.f32 %v3584, 1.442695
    %v3634 = vpow.pop %v3633
    %v3635 = vmul.f32 %v3585, 1.442695
    %v3636 = vpow.pop %v3635
    %v3637 = vmul.f32 %v3586, 1.442695
    %v3638 = vpow.pop %v3637
    %v3639 = vmul.f32 %v3587, 1.442695
    %v3640 = vpow.pop %v3639
    %v3641 = vmul.f32 %v3588, 1.442695
    %v3642 = vpow.pop %v3641
    %v3643 = vmul.f32 %v3589, 1.442695
    %v3644 = vpow.pop %v3643
    %v3645 = vmul.f32 %v3590, 1.442695
    %v3646 = vpow.pop %v3645
    %v3647 = vmul.f32 %v3591, 1.442695
    %v3648 = vpow.pop %v3647
    %v3649 = vmul.f32 %v3592, 1.442695
    %v3650 = vpow.pop %v3649
    %v3651 = vmul.f32 %v3593, 1.442695
    %v3652 = vpow.pop %v3651
    %v3653 = vmul.f32 %v3594, 1.442695
    %v3654 = vpow.pop %v3653
    %v3655 = vmul.f32 %v3595, 1.442695
    %v3656 = vpow.pop %v3655
    %v3657 = vmul.f32 %v3596, 1.442695
    %v3658 = vpow.pop %v3657
    %v3659 = vmul.f32 %v3597, 1.442695
    %v3660 = vpow.pop %v3659
    %v3661 = vmul.f32 %v3598, 1.442695
    %v3662 = vpow.pop %v3661
    %v3663 = vsel %vm1855, %v3322, 1.0
    %3664 = vmatprep.subr.mxu0 0.0
    %3665 = vmatpush1.msra.mxu0 %v3600
    %3666 = vmatprep.subr.mxu0 0.0
    %3667 = vmatpush1.msra.mxu0 %v3602
    %3668 = vmatprep.subr.mxu0 0.0
    %3669 = vmatpush1.msra.mxu0 %v3604
    %3670 = vmatprep.subr.mxu0 0.0
    %3671 = vmatpush1.msra.mxu0 %v3606
    %3672 = vmatprep.subr.mxu0 0.0
    %3673 = vmatpush1.msra.mxu0 %v3608
    %3674 = vmatprep.subr.mxu0 0.0
    %3675 = vmatpush1.msra.mxu0 %v3610
    %3676 = vmatprep.subr.mxu0 0.0
    %3677 = vmatpush1.msra.mxu0 %v3612
    %3678 = vmatprep.subr.mxu0 0.0
    %3679 = vmatpush1.msra.mxu0 %v3614
    %3680 = vmatprep.subr.mxu0 0.0
    %3681 = vmatpush1.msra.mxu0 %v3616
    %3682 = vmatprep.subr.mxu0 0.0
    %3683 = vmatpush1.msra.mxu0 %v3618
    %3684 = vmatprep.subr.mxu0 0.0
    %3685 = vmatpush1.msra.mxu0 %v3620
    %3686 = vmatprep.subr.mxu0 0.0
    %3687 = vmatpush1.msra.mxu0 %v3622
    %3688 = vmatprep.subr.mxu0 0.0
    %3689 = vmatpush1.msra.mxu0 %v3624
    %3690 = vmatprep.subr.mxu0 0.0
    %3691 = vmatpush1.msra.mxu0 %v3626
    %3692 = vmatprep.subr.mxu0 0.0
    %3693 = vmatpush1.msra.mxu0 %v3628
    %3694 = vmatprep.subr.mxu0 0.0
    %3695 = vmatpush1.msra.mxu0 %v3630
    %3696 = vmatprep.subr.mxu0 0.0
    %3697 = vmatpush1.msra.mxu0 0.0
    %3698 = vmatprep.subr.mxu0 0.0
    %3699 = vmatpush1.msra.mxu0 0.0
    %3700 = vmatprep.subr.mxu0 0.0
    %3701 = vmatpush1.msra.mxu0 0.0
    %3702 = vmatprep.subr.mxu0 0.0
    %3703 = vmatpush1.msra.mxu0 0.0
    %3704 = vmatprep.subr.mxu0 0.0
    %3705 = vmatpush1.msra.mxu0 0.0
    %3706 = vmatprep.subr.mxu0 0.0
    %3707 = vmatpush1.msra.mxu0 0.0
    %3708 = vmatprep.subr.mxu0 0.0
    %3709 = vmatpush1.msra.mxu0 0.0
    %3710 = vmatprep.subr.mxu0 0.0
    %3711 = vmatpush1.msra.mxu0 0.0
    %3712 = vmatprep.subr.mxu0 0.0
    %3713 = vmatpush1.msra.mxu0 0.0
    %3714 = vmatprep.subr.mxu0 0.0
    %3715 = vmatpush1.msra.mxu0 0.0
    %3716 = vmatprep.subr.mxu0 0.0
    %3717 = vmatpush1.msra.mxu0 0.0
    %3718 = vmatprep.subr.mxu0 0.0
    %3719 = vmatpush1.msra.mxu0 0.0
    %3720 = vmatprep.subr.mxu0 0.0
    %3721 = vmatpush1.msra.mxu0 0.0
    %3722 = vmatprep.subr.mxu0 0.0
    %3723 = vmatpush1.msra.mxu0 0.0
    %3724 = vmatprep.subr.mxu0 0.0
    %3725 = vmatpush1.msra.mxu0 0.0
    %3726 = vmatprep.subr.mxu0 0.0
    %3727 = vmatpush1.msra.mxu0 0.0
    %3728 = vmatprep.mubr.f32.mxu0 0.0
    %3729 = vmatmul.mubr.f32.gmra.mrb[0].mxu0 %v3663
    %v3730 = vpop.f32.mrb[0].mxu0
    %v3731 = vadd.f32 0.0, %v3730
    %v3732 = vpop.f32.mrb[0].mxu0
    %3733 = vdwg.mxu0
    %v3735 = vrot.slane %v3322, 1
    %v3737 = vsel %vm1855, %v3735, 1.0
    %3738 = vmatprep.subr.mxu0 0.0
    %3739 = vmatpush1.msra.mxu0 %v3632
    %3740 = vmatprep.subr.mxu0 0.0
    %3741 = vmatpush1.msra.mxu0 %v3634
    %3742 = vmatprep.subr.mxu0 0.0
    %3743 = vmatpush1.msra.mxu0 %v3636
    %3744 = vmatprep.subr.mxu0 0.0
    %3745 = vmatpush1.msra.mxu0 %v3638
    %3746 = vmatprep.subr.mxu0 0.0
    %3747 = vmatpush1.msra.mxu0 %v3640
    %3748 = vmatprep.subr.mxu0 0.0
    %3749 = vmatpush1.msra.mxu0 %v3642
    %3750 = vmatprep.subr.mxu0 0.0
    %3751 = vmatpush1.msra.mxu0 %v3644
    %3752 = vmatprep.subr.mxu0 0.0
    %3753 = vmatpush1.msra.mxu0 %v3646
    %3754 = vmatprep.subr.mxu0 0.0
    %3755 = vmatpush1.msra.mxu0 %v3648
    %3756 = vmatprep.subr.mxu0 0.0
    %3757 = vmatpush1.msra.mxu0 %v3650
    %3758 = vmatprep.subr.mxu0 0.0
    %3759 = vmatpush1.msra.mxu0 %v3652
    %3760 = vmatprep.subr.mxu0 0.0
    %3761 = vmatpush1.msra.mxu0 %v3654
    %3762 = vmatprep.subr.mxu0 0.0
    %3763 = vmatpush1.msra.mxu0 %v3656
    %3764 = vmatprep.subr.mxu0 0.0
    %3765 = vmatpush1.msra.mxu0 %v3658
    %3766 = vmatprep.subr.mxu0 0.0
    %3767 = vmatpush1.msra.mxu0 %v3660
    %3768 = vmatprep.subr.mxu0 0.0
    %3769 = vmatpush1.msra.mxu0 %v3662
    %3770 = vmatprep.subr.mxu0 0.0
    %3771 = vmatpush1.msra.mxu0 0.0
    %3772 = vmatprep.subr.mxu0 0.0
    %3773 = vmatpush1.msra.mxu0 0.0
    %3774 = vmatprep.subr.mxu0 0.0
    %3775 = vmatpush1.msra.mxu0 0.0
    %3776 = vmatprep.subr.mxu0 0.0
    %3777 = vmatpush1.msra.mxu0 0.0
    %3778 = vmatprep.subr.mxu0 0.0
    %3779 = vmatpush1.msra.mxu0 0.0
    %3780 = vmatprep.subr.mxu0 0.0
    %3781 = vmatpush1.msra.mxu0 0.0
    %3782 = vmatprep.subr.mxu0 0.0
    %3783 = vmatpush1.msra.mxu0 0.0
    %3784 = vmatprep.subr.mxu0 0.0
    %3785 = vmatpush1.msra.mxu0 0.0
    %3786 = vmatprep.subr.mxu0 0.0
    %3787 = vmatpush1.msra.mxu0 0.0
    %3788 = vmatprep.subr.mxu0 0.0
    %3789 = vmatpush1.msra.mxu0 0.0
    %3790 = vmatprep.subr.mxu0 0.0
    %3791 = vmatpush1.msra.mxu0 0.0
    %3792 = vmatprep.subr.mxu0 0.0
    %3793 = vmatpush1.msra.mxu0 0.0
    %3794 = vmatprep.subr.mxu0 0.0
    %3795 = vmatpush1.msra.mxu0 0.0
    %3796 = vmatprep.subr.mxu0 0.0
    %3797 = vmatpush1.msra.mxu0 0.0
    %3798 = vmatprep.subr.mxu0 0.0
    %3799 = vmatpush1.msra.mxu0 0.0
    %3800 = vmatprep.subr.mxu0 0.0
    %3801 = vmatpush1.msra.mxu0 0.0
    %3802 = vmatprep.mubr.f32.mxu0 0.0
    %3803 = vmatmul.mubr.f32.gmra.mrb[0].mxu0 %v3737
    %v3804 = vpop.f32.mrb[0].mxu0
    %v3805 = vadd.f32 0.0, %v3804
    %v3806 = vpop.f32.mrb[0].mxu0
    %3807 = vdwg.mxu0
    %v3809 = vrot.slane %v3805, 7
    %v3811 = vsel %vm1855, %v3731, %v3809
    %v3813 = vrot.slane %v3731, 1
    %v3815 = vsel %vm1855, %v3813, %v3805
    %v3816 = vrcp.pop %v3815
    %v3817 = vmul.f32 %v3811, %v3816
    %3818 = vmatprep.subr.mxu0 0.0
    %3819 = vmatpush1.msra.mxu0 %v2059
    %3820 = vmatprep.subr.mxu0 0.0
    %3821 = vmatpush1.msra.mxu0 %v2061
    %3822 = vmatprep.subr.mxu0 0.0
    %3823 = vmatpush1.msra.mxu0 %v2063
    %3824 = vmatprep.subr.mxu0 0.0
    %3825 = vmatpush1.msra.mxu0 %v2065
    %3826 = vmatprep.subr.mxu0 0.0
    %3827 = vmatpush1.msra.mxu0 %v2067
    %3828 = vmatprep.subr.mxu0 0.0
    %3829 = vmatpush1.msra.mxu0 %v2069
    %3830 = vmatprep.subr.mxu0 0.0
    %3831 = vmatpush1.msra.mxu0 %v2071
    %3832 = vmatprep.subr.mxu0 0.0
    %3833 = vmatpush1.msra.mxu0 %v2073
    %3834 = vmatprep.subr.mxu0 0.0
    %3835 = vmatpush1.msra.mxu0 %v2075
    %3836 = vmatprep.subr.mxu0 0.0
    %3837 = vmatpush1.msra.mxu0 %v2077
    %3838 = vmatprep.subr.mxu0 0.0
    %3839 = vmatpush1.msra.mxu0 %v2079
    %3840 = vmatprep.subr.mxu0 0.0
    %3841 = vmatpush1.msra.mxu0 %v2081
    %3842 = vmatprep.subr.mxu0 0.0
    %3843 = vmatpush1.msra.mxu0 %v2083
    %3844 = vmatprep.subr.mxu0 0.0
    %3845 = vmatpush1.msra.mxu0 %v2085
    %3846 = vmatprep.subr.mxu0 0.0
    %3847 = vmatpush1.msra.mxu0 %v2087
    %3848 = vmatprep.subr.mxu0 0.0
    %3849 = vmatpush1.msra.mxu0 %v2089
    %3850 = vmatprep.subr.mxu0 0.0
    %3851 = vmatpush1.msra.mxu0 0.0
    %3852 = vmatprep.subr.mxu0 0.0
    %3853 = vmatpush1.msra.mxu0 0.0
    %3854 = vmatprep.subr.mxu0 0.0
    %3855 = vmatpush1.msra.mxu0 0.0
    %3856 = vmatprep.subr.mxu0 0.0
    %3857 = vmatpush1.msra.mxu0 0.0
    %3858 = vmatprep.subr.mxu0 0.0
    %3859 = vmatpush1.msra.mxu0 0.0
    %3860 = vmatprep.subr.mxu0 0.0
    %3861 = vmatpush1.msra.mxu0 0.0
    %3862 = vmatprep.subr.mxu0 0.0
    %3863 = vmatpush1.msra.mxu0 0.0
    %3864 = vmatprep.subr.mxu0 0.0
    %3865 = vmatpush1.msra.mxu0 0.0
    %3866 = vmatprep.subr.mxu0 0.0
    %3867 = vmatpush1.msra.mxu0 0.0
    %3868 = vmatprep.subr.mxu0 0.0
    %3869 = vmatpush1.msra.mxu0 0.0
    %3870 = vmatprep.subr.mxu0 0.0
    %3871 = vmatpush1.msra.mxu0 0.0
    %3872 = vmatprep.subr.mxu0 0.0
    %3873 = vmatpush1.msra.mxu0 0.0
    %3874 = vmatprep.subr.mxu0 0.0
    %3875 = vmatpush1.msra.mxu0 0.0
    %3876 = vmatprep.subr.mxu0 0.0
    %3877 = vmatpush1.msra.mxu0 0.0
    %3878 = vmatprep.subr.mxu0 0.0
    %3879 = vmatpush1.msra.mxu0 0.0
    %3880 = vmatprep.subr.mxu0 0.0
    %3881 = vmatpush1.msra.mxu0 0.0
    %3882 = vmatprep.mubr.f32.mxu0 0.0
    %3883 = vmatmul.mubr.f32.gmra.mrb[0].mxu0 %v3817
    %v3884 = vpop.f32.mrb[0].mxu0
    %v3885 = vadd.f32 %v2040, %v3884
    %v3886 = vpop.f32.mrb[0].mxu0
    %3887 = vdwg.mxu0
    %v3888 = vmul.f32 %v3034, 0.8
    %v3889 = vadd.f32 %v3888, %v3885
    %v3890 = vmul.f32 %v3037, 0.5
    %v3891 = vsub.f32 %v3889, %v3890
    %vm3892 = vcmp.gt.f32.partialorder %v3891, 0.5
    %v3893 = vsel %vm3892, 1, 0
    %v3894 = vcvt.s32.f32 %v3893
    %v3895 = vadd.f32 %v3038, %v3894
    %v3896 = vadd.f32 %v3040, %v3048
    %v3897 = vadd.f32 %v3896, %v3151
    %v3898 = vadd.f32 %v3041, %v3239
    %vm3899 = vcmask 1024
    %3900 = vst.msk [vmem:[%s5] sm:$0x3] %vm3899, %v3895
    %v3901 = vsel %vm1517, %v3897, 0.0
    %3902 = vadd.xlane.f32.xlu0 %v3901
    %v3903 = vpop.xlane.xlu0 %3902
    %v3904 = vrot.slane %v3903, 4
    %v3905 = vadd.f32 %v3903, %v3904
    %v3906 = vrot.slane %v3905, 2
    %v3907 = vadd.f32 %v3905, %v3906
    %v3908 = vrot.slane %v3907, 1
    %v3909 = vadd.f32 %v3907, %v3908
    %s3910 = vtos %v3909
    %vm3911 = vcmask 517120
    %v3912 = vsel %vm3911, %v3898, 0.0
    %3913 = vadd.xlane.f32.xlu0 %v3912
    %v3914 = vpop.xlane.xlu0 %3913
    %v3915 = vrot.slane %v3914, 4
    %v3916 = vadd.f32 %v3914, %v3915
    %v3917 = vrot.slane %v3916, 2
    %v3918 = vadd.f32 %v3916, %v3917
    %v3919 = vrot.slane %v3918, 1
    %v3920 = vadd.f32 %v3918, %v3919
    %s3921 = vtos %v3920
    %s3922 = sadd.f32 %s3910, %s3921
    %v3923 = vsel %vm3899, %v3895, 0.0
    %3924 = vadd.xlane.f32.xlu0 %v3923
    %v3925 = vpop.xlane.xlu0 %3924
    %v3926 = vrot.slane %v3925, 4
    %v3927 = vadd.f32 %v3925, %v3926
    %v3928 = vrot.slane %v3927, 2
    %v3929 = vadd.f32 %v3927, %v3928
    %v3930 = vrot.slane %v3929, 1
    %v3931 = vadd.f32 %v3929, %v3930
    %s3932 = vtos %v3931
    %s3933 = sadd.f32 %s3922, %s3932
    %v3934 = vstv %s3933
    %v3935 = vadd.f32 %v3934, 0.0
    %vm3936 = vcmask 0
    %3937 = vst.msk [vmem:[#allocation5] sm:$0x1] %vm3936, %v3935
    // Predicated region
    $region88: #{rsnn_vit2_forward.1} parent=1 // pred_check
      _
    $region89: #{rsnn_vit2_forward.1} parent=1 // pred_check_branch
      %3939 = sbr.rel (0) target = $region91
    $region90: #{rsnn_vit2_forward.1} parent=1 // pred_region
      _
    $region91: #{rsnn_vit2_forward.1} parent=1 // pred_fallthru
      _
    // Predicated region
    $region92: #{rsnn_vit2_forward.1} parent=1 // pred_check
      _
    $region93: #{rsnn_vit2_forward.1} parent=1 // pred_check_branch
      %3941 = sbr.rel (0) target = $region95
    $region94: #{rsnn_vit2_forward.1} parent=1 // pred_region
      %s3943 = ssub.s32 16, 16
      %3944 = vsyncadd [#allocation6], %s3943
      %s3946 = sshll.u32 [#allocation5], 4
      %s3947 = int_to_ptr.vmem [resolvable:$true] %s3946
      %3949 = dma.vmem_to_hbm [thread:$0]  %s3947, 16, %s6, [#allocation6]
    $region95: #{rsnn_vit2_forward.1} parent=1 // pred_fallthru
      _
    // Predicated region
    $region96: #{rsnn_vit2_forward.1} parent=1 // pred_check
      _
    $region97: #{rsnn_vit2_forward.1} parent=1 // pred_check_branch
      %3951 = sbr.rel (0) target = $region99
    $region98: #{rsnn_vit2_forward.1} parent=1 // pred_region
      _
    $region99: #{rsnn_vit2_forward.1} parent=1 // pred_fallthru
      _
    // Predicated region
    $region100: #{rsnn_vit2_forward.1} parent=1 // pred_check
      _
    $region101: #{rsnn_vit2_forward.1} parent=1 // pred_check_branch
      %3953 = sbr.rel (0) target = $region103
    $region102: #{rsnn_vit2_forward.1} parent=1 // pred_region
      %3954 = dma.done [#allocation6], 16
    $region103: #{rsnn_vit2_forward.1} parent=1 // pred_fallthru
      _
    %3955 = vsyncpa [#allocation6], 1
  %3956 = vsyncmov [#allocation4]
  %s3957 = vpop.sfrf %3956
  %p3958 = scmp.eq.s32.totalorder %s3957, 0
  %p3959 = pneg %p3958
  %3961 = shalt.err (%p3959)
  %s3962 = scalar_lea.sflag [#allocation4], 1
  %3963 = vsyncmov %s3962
  %s3964 = vpop.sfrf %3963
  %p3965 = scmp.eq.s32.totalorder %s3964, 0
  %p3966 = pneg %p3965
  %3968 = shalt.err (%p3966)

</llo_original>
